<compile_context>
chip_gen: v6e
topology: v6e:2x2x1
jax: 0.10.0
libtpu: 0.0.40
codegen_flags: <defaults>
</compile_context>

<pallas_src>
import jax
import jax.numpy as jnp
from jax.experimental import pallas as pl
from jax.experimental.pallas import tpu as pltpu


# --------------------------------------------------------------------------- #
# Fused Pallas kernel (one batch element per grid step)
# --------------------------------------------------------------------------- #
def _ir_block_kernel(x_ref,
                     Ba1_ref, ba1_ref, Ba2_ref, ba2_ref,
                     Bb1_ref, bb1_ref, Bb2_ref, bb2_ref,
                     Bb3_ref, bb3_ref,
                     o_ref,
                     xpad_ref, a1pad_ref, b1pad_ref):
    D, H, CW = o_ref.shape
    CqW = a1pad_ref.shape[-1]

    def conv3_relu(src_pad_ref, B_ref, b_ref):
        """'same' 3x3x3 conv + bias + ReLU with the width axis folded into lanes.

        src_pad_ref: (D+2, H+2, K)  zero-padded along D/H (W halo is encoded as
                                    zero bands inside B_ref)
        B_ref:       (3, 3, K, Nc)  banded weights, K = Cin*W, Nc = Cout*W
        b_ref:       (1, Nc)        bias flattened over (channel, width)
        returns (D*H, Nc) float32
        """
        K = src_pad_ref.shape[-1]
        Nc = B_ref.shape[-1]
        acc = jnp.zeros((D * H, Nc), jnp.float32)
        # 9 depth/height taps; each tap is ONE MXU matmul over K = Cin*W.
        for kd in range(3):
            for kh in range(3):
                slab = src_pad_ref[kd:kd + D, kh:kh + H, :].reshape(D * H, K)
                acc += jnp.dot(slab, B_ref[kd, kh],
                               preferred_element_type=jnp.float32)
        return jnp.maximum(acc + b_ref[...], 0.0)

    def conv1_relu(x2d, B_ref, b_ref):
        """1x1x1 conv + bias + ReLU as a single matmul."""
        y = jnp.dot(x2d, B_ref[...], preferred_element_type=jnp.float32)
        return jnp.maximum(y + b_ref[...], 0.0)

    x = x_ref[...].astype(jnp.float32)             # (D, H, C*W)
    x2d = x.reshape(D * H, CW)

    # Zero-pad the input along D/H into VMEM scratch (no HBM padding pass).
    xpad_ref[...] = jnp.zeros(xpad_ref.shape, jnp.float32)
    xpad_ref[1:1 + D, 1:1 + H, :] = x

    # ---- branch 1: conv_a1 (3^3) -> ReLU -> conv_a2 (3^3) -> ReLU ----------
    a1 = conv3_relu(xpad_ref, Ba1_ref, ba1_ref)            # (D*H, Cq*W)
    a1pad_ref[...] = jnp.zeros(a1pad_ref.shape, jnp.float32)
    a1pad_ref[1:1 + D, 1:1 + H, :] = a1.reshape(D, H, CqW)
    br1 = conv3_relu(a1pad_ref, Ba2_ref, ba2_ref)          # (D*H, C*W), zero on branch-2 lanes

    # ---- branch 2: conv_b1 (1^3) -> ReLU -> conv_b2 (3^3) -> ReLU
    #                -> conv_b3 (1^3) -> ReLU -------------------------------
    b1 = conv1_relu(x2d, Bb1_ref, bb1_ref)                 # (D*H, Cq*W)
    b1pad_ref[...] = jnp.zeros(b1pad_ref.shape, jnp.float32)
    b1pad_ref[1:1 + D, 1:1 + H, :] = b1.reshape(D, H, CqW)
    b2 = conv3_relu(b1pad_ref, Bb2_ref, bb2_ref)           # (D*H, Cq*W)
    br2 = conv1_relu(b2, Bb3_ref, bb3_ref)                 # (D*H, C*W), zero on branch-1 lanes

    # ---- residual + concat: branches occupy disjoint channel lane bands ----
    out = x2d + br1 + br2
    o_ref[...] = out.reshape(D, H, CW).astype(o_ref.dtype)


# --------------------------------------------------------------------------- #
# pallas_call wrapper
# --------------------------------------------------------------------------- #
def _ir_block_pallas(x_flat, prep):
    """x_flat: (N, D, H, C*W) channel-major lane layout; prep: banded weights."""
    N, D, H, CW = x_flat.shape
    CqW = prep["Ba1"].shape[-1]

    weights = (prep["Ba1"], prep["ba1"], prep["Ba2"], prep["ba2"],
               prep["Bb1"], prep["bb1"], prep["Bb2"], prep["bb2"],
               prep["Bb3"], prep["bb3"])

    def vol_spec(lanes):
        return pl.BlockSpec((pl.Squeezed(), D, H, lanes),
                            lambda n: (n, 0, 0, 0))

    def full_spec(shape):
        return pl.BlockSpec(shape, lambda n: (0,) * len(shape))

    return pl.pallas_call(
        _ir_block_kernel,
        out_shape=jax.ShapeDtypeStruct((N, D, H, CW), x_flat.dtype),
        grid=(N,),
        in_specs=[vol_spec(CW)] + [full_spec(w.shape) for w in weights],
        out_specs=vol_spec(CW),
        scratch_shapes=[
            pltpu.VMEM((D + 2, H + 2, CW), jnp.float32),    # padded input
            pltpu.VMEM((D + 2, H + 2, CqW), jnp.float32),   # padded conv_a1 out
            pltpu.VMEM((D + 2, H + 2, CqW), jnp.float32),   # padded conv_b1 out
        ],
        compiler_params=pltpu.CompilerParams(
            dimension_semantics=("parallel",),              # batch across TCs (v7x)
            vmem_limit_bytes=48 * 1024 * 1024,              # well under v7x's 64 MiB
        ),
    )(x_flat, *weights)


# --------------------------------------------------------------------------- #
# Parameter preparation: fold the width axis into banded weight matrices
# --------------------------------------------------------------------------- #
def _banded_conv(w, b, width, out_channels_total=None, out_channel_offset=0):
    """Build banded weights for the lane layout (channel*W + w).

    w: (KD, KH, KW, Cin, Cout), b: (Cout,)
    B[kd, kh, ci*W + wi, (off+co)*W + wo] = w[kd, kh, kw, ci, co]
        with wi = wo + kw - KW//2 when 0 <= wi < W  ('same' W-padding baked in).
    bias[(off+co)*W + wo] = b[co], zero elsewhere.
    """
    KD, KH, KW, Cin, Cout = w.shape
    pw = KW // 2
    Ct = Cout if out_channels_total is None else out_channels_total
    B = jnp.zeros((KD, KH, Cin * width, Ct * width), w.dtype)
    for kw in range(KW):
        for wo in range(width):
            wi = wo + kw - pw
            if 0 <= wi < width:
                col0 = out_channel_offset * width + wo
                B = B.at[:, :, wi::width,
                         col0:col0 + Cout * width:width].set(w[:, :, kw, :, :])
    bias = jnp.zeros((Ct * width,), b.dtype)
    bias = bias.at[out_channel_offset * width:
                   (out_channel_offset + Cout) * width].set(jnp.repeat(b, width))
    return B, bias.reshape(1, Ct * width)


def prepare_ir_block_params(params, width):
    """Precompute (once, outside the jitted forward) the banded weight matrices."""
    C = params["conv_a1"]["w"].shape[3]          # num_filters
    Ch = C // 2
    Ba1, ba1 = _banded_conv(params["conv_a1"]["w"], params["conv_a1"]["b"], width)
    # conv_a2 / conv_b3 are widened to the full C*W output lane range with
    # disjoint non-zero channel bands so concat + residual are plain adds.
    Ba2, ba2 = _banded_conv(params["conv_a2"]["w"], params["conv_a2"]["b"], width,
                            out_channels_total=C, out_channel_offset=0)
    Bb1, bb1 = _banded_conv(params["conv_b1"]["w"], params["conv_b1"]["b"], width)
    Bb2, bb2 = _banded_conv(params["conv_b2"]["w"], params["conv_b2"]["b"], width)
    Bb3, bb3 = _banded_conv(params["conv_b3"]["w"], params["conv_b3"]["b"], width,
                            out_channels_total=C, out_channel_offset=Ch)
    return {
        "Ba1": Ba1, "ba1": ba1,
        "Ba2": Ba2, "ba2": ba2,
        "Bb1": Bb1[0, 0], "bb1": bb1,            # 1x1x1: squeeze the (1, 1) taps
        "Bb2": Bb2, "bb2": bb2,
        "Bb3": Bb3[0, 0], "bb3": bb3,
    }


def init_ir_block_params(num_filters, key):
    """Deterministic synthetic parameters, shapes matching the PyTorch module."""
    c = num_filters
    shapes = {
        "conv_a1": ((3, 3, 3, c, c // 4), (c // 4,)),
        "conv_a2": ((3, 3, 3, c // 4, c // 2), (c // 2,)),
        "conv_b1": ((1, 1, 1, c, c // 4), (c // 4,)),
        "conv_b2": ((3, 3, 3, c // 4, c // 4), (c // 4,)),
        "conv_b3": ((1, 1, 1, c // 4, c // 2), (c // 2,)),
    }
    params = {}
    for name, (wshape, bshape) in shapes.items():
        key, kw, kb = jax.random.split(key, 3)
        params[name] = {
            "w": 0.1 * jax.random.normal(kw, wshape, jnp.float32),
            "b": 0.1 * jax.random.normal(kb, bshape, jnp.float32),
        }
    return params


# --------------------------------------------------------------------------- #
# Forward pass (PyTorch NCDHW in / NCDHW out)
# --------------------------------------------------------------------------- #
@jax.jit
def ir_block_forward(indata_ncdhw, prep):
    N, C, D, H, W = indata_ncdhw.shape
    # NCDHW -> (N, D, H, C*W): lane axis holds (channel, width) channel-major,
    # so the branch concat is just two contiguous lane bands (layout plumbing
    # stays in the XLA wrapper; the kernel sees lane-dense slabs).
    x_flat = jnp.transpose(indata_ncdhw, (0, 2, 3, 1, 4)).reshape(N, D, H, C * W)
    out_flat = _ir_block_pallas(x_flat, prep)
    out = out_flat.reshape(N, D, H, C, W)
    return jnp.transpose(out, (0, 3, 1, 2, 4))   # -> NCDHW


# --------------------------------------------------------------------------- #
# Pure-JAX reference (correctness check only)
# --------------------------------------------------------------------------- #
def _conv3d_ref(x, w, b):
    y = jax.lax.conv_general_dilated(
        x, w, window_strides=(1, 1, 1), padding="SAME",
        dimension_numbers=("NDHWC", "DHWIO", "NDHWC"))
    return jax.nn.relu(y + b)


def ir_block_ref(indata_ncdhw, params):
    x = jnp.transpose(indata_ncdhw, (0, 2, 3, 4, 1))
    b1 = _conv3d_ref(x, params["conv_a1"]["w"], params["conv_a1"]["b"])
    b1 = _conv3d_ref(b1, params["conv_a2"]["w"], params["conv_a2"]["b"])
    b2 = _conv3d_ref(x, params["conv_b1"]["w"], params["conv_b1"]["b"])
    b2 = _conv3d_ref(b2, params["conv_b2"]["w"], params["conv_b2"]["b"])
    b2 = _conv3d_ref(b2, params["conv_b3"]["w"], params["conv_b3"]["b"])
    out = x + jnp.concatenate([b1, b2], axis=-1)
    return jnp.transpose(out, (0, 4, 1, 2, 3))


if __name__ == "__main__":
    num_filters = 8          # must be divisible by 4
    N, D, H, W = 2, 8, 8, 8

    key = jax.random.PRNGKey(0)
    k_in, k_par = jax.random.split(key)
    indata = jax.random.normal(k_in, (N, num_filters, D, H, W), jnp.float32)
    params = init_ir_block_params(num_filters, k_par)
    prep = prepare_ir_block_params(params, width=W)

    out = ir_block_forward(indata, prep)
    out = jax.block_until_ready(out)

    ref = ir_block_ref(indata, params)
    assert out.shape == (N, num_filters, D, H, W)
    assert jnp.allclose(out, ref, atol=1e-3, rtol=1e-3), "mismatch vs reference"

    print("KERNEL_OK")
</pallas_src>

<mosaic_0001>
module attributes {stable_mosaic.version = 11 : i64} {
  func.func @_ir_block_kernel(%arg0: i32, %arg1: memref<1x8x8x64xf32, #tpu.memory_space<vmem>>, %arg2: memref<3x3x64x16xf32, #tpu.memory_space<vmem>>, %arg3: memref<1x16xf32, #tpu.memory_space<vmem>>, %arg4: memref<3x3x16x64xf32, #tpu.memory_space<vmem>>, %arg5: memref<1x64xf32, #tpu.memory_space<vmem>>, %arg6: memref<64x16xf32, #tpu.memory_space<vmem>>, %arg7: memref<1x16xf32, #tpu.memory_space<vmem>>, %arg8: memref<3x3x16x16xf32, #tpu.memory_space<vmem>>, %arg9: memref<1x16xf32, #tpu.memory_space<vmem>>, %arg10: memref<16x64xf32, #tpu.memory_space<vmem>>, %arg11: memref<1x64xf32, #tpu.memory_space<vmem>>, %arg12: memref<1x8x8x64xf32, #tpu.memory_space<vmem>>, %arg13: memref<10x10x64xf32, #tpu.memory_space<vmem>>, %arg14: memref<10x10x16xf32, #tpu.memory_space<vmem>>, %arg15: memref<10x10x16xf32, #tpu.memory_space<vmem>>) attributes {dimension_semantics = [#tpu.dimension_semantics<parallel>], iteration_bounds = array<i64: 2>, scalar_prefetch = 0 : i64, scratch_operands = 3 : i64, tpu.core_type = #tpu.core_type<tc>, window_params = [{transform_indices = @transform_0, window_bounds = array<i64: 1, 8, 8, 64>}, {pipeline_mode = #tpu.pipeline_mode<synchronous>, transform_indices = @transform_1, window_bounds = array<i64: 3, 3, 64, 16>}, {pipeline_mode = #tpu.pipeline_mode<synchronous>, transform_indices = @transform_2, window_bounds = array<i64: 1, 16>}, {pipeline_mode = #tpu.pipeline_mode<synchronous>, transform_indices = @transform_3, window_bounds = array<i64: 3, 3, 16, 64>}, {pipeline_mode = #tpu.pipeline_mode<synchronous>, transform_indices = @transform_4, window_bounds = array<i64: 1, 64>}, {pipeline_mode = #tpu.pipeline_mode<synchronous>, transform_indices = @transform_5, window_bounds = array<i64: 64, 16>}, {pipeline_mode = #tpu.pipeline_mode<synchronous>, transform_indices = @transform_6, window_bounds = array<i64: 1, 16>}, {pipeline_mode = #tpu.pipeline_mode<synchronous>, transform_indices = @transform_7, window_bounds = array<i64: 3, 3, 16, 16>}, {pipeline_mode = #tpu.pipeline_mode<synchronous>, transform_indices = @transform_8, window_bounds = array<i64: 1, 16>}, {pipeline_mode = #tpu.pipeline_mode<synchronous>, transform_indices = @transform_9, window_bounds = array<i64: 16, 64>}, {pipeline_mode = #tpu.pipeline_mode<synchronous>, transform_indices = @transform_10, window_bounds = array<i64: 1, 64>}, {transform_indices = @transform_11, window_bounds = array<i64: 1, 8, 8, 64>}]} {
    %c0 = arith.constant 0 : index
    %c0_0 = arith.constant 0 : index
    %c0_1 = arith.constant 0 : index
    %c0_2 = arith.constant 0 : index
    %0 = vector.load %arg1[%c0, %c0_0, %c0_1, %c0_2] : memref<1x8x8x64xf32, #tpu.memory_space<vmem>>, vector<1x8x8x64xf32>
    %1 = vector.shape_cast %0 : vector<1x8x8x64xf32> to vector<8x8x64xf32>
    %2 = vector.shape_cast %1 : vector<8x8x64xf32> to vector<64x64xf32>
    %cst = arith.constant 0.000000e+00 : f32
    %3 = vector.broadcast %cst : f32 to vector<10x10x64xf32>
    %c0_3 = arith.constant 0 : index
    %c0_4 = arith.constant 0 : index
    %c0_5 = arith.constant 0 : index
    %4 = vector.load %arg13[%c0_3, %c0_4, %c0_5] : memref<10x10x64xf32, #tpu.memory_space<vmem>>, vector<10x10x64xf32>
    tpu.vector_store %arg13[%c0_3, %c0_4, %c0_5], %3 {strides = array<i32>} : memref<10x10x64xf32, #tpu.memory_space<vmem>>, vector<10x10x64xf32>,
    %c1 = arith.constant 1 : index
    %c1_6 = arith.constant 1 : index
    %c0_7 = arith.constant 0 : index
    %5 = vector.load %arg13[%c1, %c1_6, %c0_7] : memref<10x10x64xf32, #tpu.memory_space<vmem>>, vector<8x8x64xf32>
    tpu.vector_store %arg13[%c1, %c1_6, %c0_7], %1 {strides = array<i32>} : memref<10x10x64xf32, #tpu.memory_space<vmem>>, vector<8x8x64xf32>,
    %cst_8 = arith.constant 0.000000e+00 : f32
    %6 = vector.broadcast %cst_8 : f32 to vector<64x16xf32>
    %c0_9 = arith.constant 0 : index
    %c0_10 = arith.constant 0 : index
    %c0_11 = arith.constant 0 : index
    %7 = vector.load %arg13[%c0_9, %c0_10, %c0_11] : memref<10x10x64xf32, #tpu.memory_space<vmem>>, vector<8x8x64xf32>
    %8 = vector.shape_cast %7 : vector<8x8x64xf32> to vector<64x64xf32>
    %c0_12 = arith.constant 0 : index
    %c0_13 = arith.constant 0 : index
    %c0_14 = arith.constant 0 : index
    %c0_15 = arith.constant 0 : index
    %9 = vector.load %arg2[%c0_12, %c0_13, %c0_14, %c0_15] : memref<3x3x64x16xf32, #tpu.memory_space<vmem>>, vector<1x1x64x16xf32>
    %10 = vector.shape_cast %9 : vector<1x1x64x16xf32> to vector<64x16xf32>
    %cst_16 = arith.constant dense<0.000000e+00> : vector<64x16xf32>
    %11 = tpu.matmul %8, %10, %cst_16 {dimension_numbers = #tpu.dot_dimension_numbers<[1], [0], [0], [1], [0, 0, 1, 1], [], []>} : vector<64x64xf32>, vector<64x16xf32>, vector<64x16xf32> -> vector<64x16xf32>
    %12 = arith.addf %6, %11 : vector<64x16xf32>
    %c0_17 = arith.constant 0 : index
    %c1_18 = arith.constant 1 : index
    %c0_19 = arith.constant 0 : index
    %13 = vector.load %arg13[%c0_17, %c1_18, %c0_19] : memref<10x10x64xf32, #tpu.memory_space<vmem>>, vector<8x8x64xf32>
    %14 = vector.shape_cast %13 : vector<8x8x64xf32> to vector<64x64xf32>
    %c0_20 = arith.constant 0 : index
    %c1_21 = arith.constant 1 : index
    %c0_22 = arith.constant 0 : index
    %c0_23 = arith.constant 0 : index
    %15 = vector.load %arg2[%c0_20, %c1_21, %c0_22, %c0_23] : memref<3x3x64x16xf32, #tpu.memory_space<vmem>>, vector<1x1x64x16xf32>
    %16 = vector.shape_cast %15 : vector<1x1x64x16xf32> to vector<64x16xf32>
    %cst_24 = arith.constant dense<0.000000e+00> : vector<64x16xf32>
    %17 = tpu.matmul %14, %16, %cst_24 {dimension_numbers = #tpu.dot_dimension_numbers<[1], [0], [0], [1], [0, 0, 1, 1], [], []>} : vector<64x64xf32>, vector<64x16xf32>, vector<64x16xf32> -> vector<64x16xf32>
    %18 = arith.addf %12, %17 : vector<64x16xf32>
    %c0_25 = arith.constant 0 : index
    %c2 = arith.constant 2 : index
    %c0_26 = arith.constant 0 : index
    %19 = vector.load %arg13[%c0_25, %c2, %c0_26] : memref<10x10x64xf32, #tpu.memory_space<vmem>>, vector<8x8x64xf32>
    %20 = vector.shape_cast %19 : vector<8x8x64xf32> to vector<64x64xf32>
    %c0_27 = arith.constant 0 : index
    %c2_28 = arith.constant 2 : index
    %c0_29 = arith.constant 0 : index
    %c0_30 = arith.constant 0 : index
    %21 = vector.load %arg2[%c0_27, %c2_28, %c0_29, %c0_30] : memref<3x3x64x16xf32, #tpu.memory_space<vmem>>, vector<1x1x64x16xf32>
    %22 = vector.shape_cast %21 : vector<1x1x64x16xf32> to vector<64x16xf32>
    %cst_31 = arith.constant dense<0.000000e+00> : vector<64x16xf32>
    %23 = tpu.matmul %20, %22, %cst_31 {dimension_numbers = #tpu.dot_dimension_numbers<[1], [0], [0], [1], [0, 0, 1, 1], [], []>} : vector<64x64xf32>, vector<64x16xf32>, vector<64x16xf32> -> vector<64x16xf32>
    %24 = arith.addf %18, %23 : vector<64x16xf32>
    %c1_32 = arith.constant 1 : index
    %c0_33 = arith.constant 0 : index
    %c0_34 = arith.constant 0 : index
    %25 = vector.load %arg13[%c1_32, %c0_33, %c0_34] : memref<10x10x64xf32, #tpu.memory_space<vmem>>, vector<8x8x64xf32>
    %26 = vector.shape_cast %25 : vector<8x8x64xf32> to vector<64x64xf32>
    %c1_35 = arith.constant 1 : index
    %c0_36 = arith.constant 0 : index
    %c0_37 = arith.constant 0 : index
    %c0_38 = arith.constant 0 : index
    %27 = vector.load %arg2[%c1_35, %c0_36, %c0_37, %c0_38] : memref<3x3x64x16xf32, #tpu.memory_space<vmem>>, vector<1x1x64x16xf32>
    %28 = vector.shape_cast %27 : vector<1x1x64x16xf32> to vector<64x16xf32>
    %cst_39 = arith.constant dense<0.000000e+00> : vector<64x16xf32>
    %29 = tpu.matmul %26, %28, %cst_39 {dimension_numbers = #tpu.dot_dimension_numbers<[1], [0], [0], [1], [0, 0, 1, 1], [], []>} : vector<64x64xf32>, vector<64x16xf32>, vector<64x16xf32> -> vector<64x16xf32>
    %30 = arith.addf %24, %29 : vector<64x16xf32>
    %c1_40 = arith.constant 1 : index
    %c1_41 = arith.constant 1 : index
    %c0_42 = arith.constant 0 : index
    %31 = vector.load %arg13[%c1_40, %c1_41, %c0_42] : memref<10x10x64xf32, #tpu.memory_space<vmem>>, vector<8x8x64xf32>
    %32 = vector.shape_cast %31 : vector<8x8x64xf32> to vector<64x64xf32>
    %c1_43 = arith.constant 1 : index
    %c1_44 = arith.constant 1 : index
    %c0_45 = arith.constant 0 : index
    %c0_46 = arith.constant 0 : index
    %33 = vector.load %arg2[%c1_43, %c1_44, %c0_45, %c0_46] : memref<3x3x64x16xf32, #tpu.memory_space<vmem>>, vector<1x1x64x16xf32>
    %34 = vector.shape_cast %33 : vector<1x1x64x16xf32> to vector<64x16xf32>
    %cst_47 = arith.constant dense<0.000000e+00> : vector<64x16xf32>
    %35 = tpu.matmul %32, %34, %cst_47 {dimension_numbers = #tpu.dot_dimension_numbers<[1], [0], [0], [1], [0, 0, 1, 1], [], []>} : vector<64x64xf32>, vector<64x16xf32>, vector<64x16xf32> -> vector<64x16xf32>
    %36 = arith.addf %30, %35 : vector<64x16xf32>
    %c1_48 = arith.constant 1 : index
    %c2_49 = arith.constant 2 : index
    %c0_50 = arith.constant 0 : index
    %37 = vector.load %arg13[%c1_48, %c2_49, %c0_50] : memref<10x10x64xf32, #tpu.memory_space<vmem>>, vector<8x8x64xf32>
    %38 = vector.shape_cast %37 : vector<8x8x64xf32> to vector<64x64xf32>
    %c1_51 = arith.constant 1 : index
    %c2_52 = arith.constant 2 : index
    %c0_53 = arith.constant 0 : index
    %c0_54 = arith.constant 0 : index
    %39 = vector.load %arg2[%c1_51, %c2_52, %c0_53, %c0_54] : memref<3x3x64x16xf32, #tpu.memory_space<vmem>>, vector<1x1x64x16xf32>
    %40 = vector.shape_cast %39 : vector<1x1x64x16xf32> to vector<64x16xf32>
    %cst_55 = arith.constant dense<0.000000e+00> : vector<64x16xf32>
    %41 = tpu.matmul %38, %40, %cst_55 {dimension_numbers = #tpu.dot_dimension_numbers<[1], [0], [0], [1], [0, 0, 1, 1], [], []>} : vector<64x64xf32>, vector<64x16xf32>, vector<64x16xf32> -> vector<64x16xf32>
    %42 = arith.addf %36, %41 : vector<64x16xf32>
    %c2_56 = arith.constant 2 : index
    %c0_57 = arith.constant 0 : index
    %c0_58 = arith.constant 0 : index
    %43 = vector.load %arg13[%c2_56, %c0_57, %c0_58] : memref<10x10x64xf32, #tpu.memory_space<vmem>>, vector<8x8x64xf32>
    %44 = vector.shape_cast %43 : vector<8x8x64xf32> to vector<64x64xf32>
    %c2_59 = arith.constant 2 : index
    %c0_60 = arith.constant 0 : index
    %c0_61 = arith.constant 0 : index
    %c0_62 = arith.constant 0 : index
    %45 = vector.load %arg2[%c2_59, %c0_60, %c0_61, %c0_62] : memref<3x3x64x16xf32, #tpu.memory_space<vmem>>, vector<1x1x64x16xf32>
    %46 = vector.shape_cast %45 : vector<1x1x64x16xf32> to vector<64x16xf32>
    %cst_63 = arith.constant dense<0.000000e+00> : vector<64x16xf32>
    %47 = tpu.matmul %44, %46, %cst_63 {dimension_numbers = #tpu.dot_dimension_numbers<[1], [0], [0], [1], [0, 0, 1, 1], [], []>} : vector<64x64xf32>, vector<64x16xf32>, vector<64x16xf32> -> vector<64x16xf32>
    %48 = arith.addf %42, %47 : vector<64x16xf32>
    %c2_64 = arith.constant 2 : index
    %c1_65 = arith.constant 1 : index
    %c0_66 = arith.constant 0 : index
    %49 = vector.load %arg13[%c2_64, %c1_65, %c0_66] : memref<10x10x64xf32, #tpu.memory_space<vmem>>, vector<8x8x64xf32>
    %50 = vector.shape_cast %49 : vector<8x8x64xf32> to vector<64x64xf32>
    %c2_67 = arith.constant 2 : index
    %c1_68 = arith.constant 1 : index
    %c0_69 = arith.constant 0 : index
    %c0_70 = arith.constant 0 : index
    %51 = vector.load %arg2[%c2_67, %c1_68, %c0_69, %c0_70] : memref<3x3x64x16xf32, #tpu.memory_space<vmem>>, vector<1x1x64x16xf32>
    %52 = vector.shape_cast %51 : vector<1x1x64x16xf32> to vector<64x16xf32>
    %cst_71 = arith.constant dense<0.000000e+00> : vector<64x16xf32>
    %53 = tpu.matmul %50, %52, %cst_71 {dimension_numbers = #tpu.dot_dimension_numbers<[1], [0], [0], [1], [0, 0, 1, 1], [], []>} : vector<64x64xf32>, vector<64x16xf32>, vector<64x16xf32> -> vector<64x16xf32>
    %54 = arith.addf %48, %53 : vector<64x16xf32>
    %c2_72 = arith.constant 2 : index
    %c2_73 = arith.constant 2 : index
    %c0_74 = arith.constant 0 : index
    %55 = vector.load %arg13[%c2_72, %c2_73, %c0_74] : memref<10x10x64xf32, #tpu.memory_space<vmem>>, vector<8x8x64xf32>
    %56 = vector.shape_cast %55 : vector<8x8x64xf32> to vector<64x64xf32>
    %c2_75 = arith.constant 2 : index
    %c2_76 = arith.constant 2 : index
    %c0_77 = arith.constant 0 : index
    %c0_78 = arith.constant 0 : index
    %57 = vector.load %arg2[%c2_75, %c2_76, %c0_77, %c0_78] : memref<3x3x64x16xf32, #tpu.memory_space<vmem>>, vector<1x1x64x16xf32>
    %58 = vector.shape_cast %57 : vector<1x1x64x16xf32> to vector<64x16xf32>
    %cst_79 = arith.constant dense<0.000000e+00> : vector<64x16xf32>
    %59 = tpu.matmul %56, %58, %cst_79 {dimension_numbers = #tpu.dot_dimension_numbers<[1], [0], [0], [1], [0, 0, 1, 1], [], []>} : vector<64x64xf32>, vector<64x16xf32>, vector<64x16xf32> -> vector<64x16xf32>
    %60 = arith.addf %54, %59 : vector<64x16xf32>
    %c0_80 = arith.constant 0 : index
    %c0_81 = arith.constant 0 : index
    %61 = vector.load %arg3[%c0_80, %c0_81] : memref<1x16xf32, #tpu.memory_space<vmem>>, vector<1x16xf32>
    %62 = vector.broadcast %61 : vector<1x16xf32> to vector<64x16xf32>
    %63 = arith.addf %60, %62 : vector<64x16xf32>
    %cst_82 = arith.constant 0.000000e+00 : f32
    %64 = vector.broadcast %cst_82 : f32 to vector<64x16xf32>
    %65 = arith.maximumf %63, %64 : vector<64x16xf32>
    %cst_83 = arith.constant 0.000000e+00 : f32
    %66 = vector.broadcast %cst_83 : f32 to vector<10x10x16xf32>
    %c0_84 = arith.constant 0 : index
    %c0_85 = arith.constant 0 : index
    %c0_86 = arith.constant 0 : index
    %67 = vector.load %arg14[%c0_84, %c0_85, %c0_86] : memref<10x10x16xf32, #tpu.memory_space<vmem>>, vector<10x10x16xf32>
    tpu.vector_store %arg14[%c0_84, %c0_85, %c0_86], %66 {strides = array<i32>} : memref<10x10x16xf32, #tpu.memory_space<vmem>>, vector<10x10x16xf32>,
    %68 = vector.shape_cast %65 : vector<64x16xf32> to vector<8x8x16xf32>
    %c1_87 = arith.constant 1 : index
    %c1_88 = arith.constant 1 : index
    %c0_89 = arith.constant 0 : index
    %69 = vector.load %arg14[%c1_87, %c1_88, %c0_89] : memref<10x10x16xf32, #tpu.memory_space<vmem>>, vector<8x8x16xf32>
    tpu.vector_store %arg14[%c1_87, %c1_88, %c0_89], %68 {strides = array<i32>} : memref<10x10x16xf32, #tpu.memory_space<vmem>>, vector<8x8x16xf32>,
    %cst_90 = arith.constant 0.000000e+00 : f32
    %70 = vector.broadcast %cst_90 : f32 to vector<64x64xf32>
    %c0_91 = arith.constant 0 : index
    %c0_92 = arith.constant 0 : index
    %c0_93 = arith.constant 0 : index
    %71 = vector.load %arg14[%c0_91, %c0_92, %c0_93] : memref<10x10x16xf32, #tpu.memory_space<vmem>>, vector<8x8x16xf32>
    %72 = vector.shape_cast %71 : vector<8x8x16xf32> to vector<64x16xf32>
    %c0_94 = arith.constant 0 : index
    %c0_95 = arith.constant 0 : index
    %c0_96 = arith.constant 0 : index
    %c0_97 = arith.constant 0 : index
    %73 = vector.load %arg4[%c0_94, %c0_95, %c0_96, %c0_97] : memref<3x3x16x64xf32, #tpu.memory_space<vmem>>, vector<1x1x16x64xf32>
    %74 = vector.shape_cast %73 : vector<1x1x16x64xf32> to vector<16x64xf32>
    %cst_98 = arith.constant dense<0.000000e+00> : vector<64x64xf32>
    %75 = tpu.matmul %72, %74, %cst_98 {dimension_numbers = #tpu.dot_dimension_numbers<[1], [0], [0], [1], [0, 0, 1, 1], [], []>} : vector<64x16xf32>, vector<16x64xf32>, vector<64x64xf32> -> vector<64x64xf32>
    %76 = arith.addf %70, %75 : vector<64x64xf32>
    %c0_99 = arith.constant 0 : index
    %c1_100 = arith.constant 1 : index
    %c0_101 = arith.constant 0 : index
    %77 = vector.load %arg14[%c0_99, %c1_100, %c0_101] : memref<10x10x16xf32, #tpu.memory_space<vmem>>, vector<8x8x16xf32>
    %78 = vector.shape_cast %77 : vector<8x8x16xf32> to vector<64x16xf32>
    %c0_102 = arith.constant 0 : index
    %c1_103 = arith.constant 1 : index
    %c0_104 = arith.constant 0 : index
    %c0_105 = arith.constant 0 : index
    %79 = vector.load %arg4[%c0_102, %c1_103, %c0_104, %c0_105] : memref<3x3x16x64xf32, #tpu.memory_space<vmem>>, vector<1x1x16x64xf32>
    %80 = vector.shape_cast %79 : vector<1x1x16x64xf32> to vector<16x64xf32>
    %cst_106 = arith.constant dense<0.000000e+00> : vector<64x64xf32>
    %81 = tpu.matmul %78, %80, %cst_106 {dimension_numbers = #tpu.dot_dimension_numbers<[1], [0], [0], [1], [0, 0, 1, 1], [], []>} : vector<64x16xf32>, vector<16x64xf32>, vector<64x64xf32> -> vector<64x64xf32>
    %82 = arith.addf %76, %81 : vector<64x64xf32>
    %c0_107 = arith.constant 0 : index
    %c2_108 = arith.constant 2 : index
    %c0_109 = arith.constant 0 : index
    %83 = vector.load %arg14[%c0_107, %c2_108, %c0_109] : memref<10x10x16xf32, #tpu.memory_space<vmem>>, vector<8x8x16xf32>
    %84 = vector.shape_cast %83 : vector<8x8x16xf32> to vector<64x16xf32>
    %c0_110 = arith.constant 0 : index
    %c2_111 = arith.constant 2 : index
    %c0_112 = arith.constant 0 : index
    %c0_113 = arith.constant 0 : index
    %85 = vector.load %arg4[%c0_110, %c2_111, %c0_112, %c0_113] : memref<3x3x16x64xf32, #tpu.memory_space<vmem>>, vector<1x1x16x64xf32>
    %86 = vector.shape_cast %85 : vector<1x1x16x64xf32> to vector<16x64xf32>
    %cst_114 = arith.constant dense<0.000000e+00> : vector<64x64xf32>
    %87 = tpu.matmul %84, %86, %cst_114 {dimension_numbers = #tpu.dot_dimension_numbers<[1], [0], [0], [1], [0, 0, 1, 1], [], []>} : vector<64x16xf32>, vector<16x64xf32>, vector<64x64xf32> -> vector<64x64xf32>
    %88 = arith.addf %82, %87 : vector<64x64xf32>
    %c1_115 = arith.constant 1 : index
    %c0_116 = arith.constant 0 : index
    %c0_117 = arith.constant 0 : index
    %89 = vector.load %arg14[%c1_115, %c0_116, %c0_117] : memref<10x10x16xf32, #tpu.memory_space<vmem>>, vector<8x8x16xf32>
    %90 = vector.shape_cast %89 : vector<8x8x16xf32> to vector<64x16xf32>
    %c1_118 = arith.constant 1 : index
    %c0_119 = arith.constant 0 : index
    %c0_120 = arith.constant 0 : index
    %c0_121 = arith.constant 0 : index
    %91 = vector.load %arg4[%c1_118, %c0_119, %c0_120, %c0_121] : memref<3x3x16x64xf32, #tpu.memory_space<vmem>>, vector<1x1x16x64xf32>
    %92 = vector.shape_cast %91 : vector<1x1x16x64xf32> to vector<16x64xf32>
    %cst_122 = arith.constant dense<0.000000e+00> : vector<64x64xf32>
    %93 = tpu.matmul %90, %92, %cst_122 {dimension_numbers = #tpu.dot_dimension_numbers<[1], [0], [0], [1], [0, 0, 1, 1], [], []>} : vector<64x16xf32>, vector<16x64xf32>, vector<64x64xf32> -> vector<64x64xf32>
    %94 = arith.addf %88, %93 : vector<64x64xf32>
    %c1_123 = arith.constant 1 : index
    %c1_124 = arith.constant 1 : index
    %c0_125 = arith.constant 0 : index
    %95 = vector.load %arg14[%c1_123, %c1_124, %c0_125] : memref<10x10x16xf32, #tpu.memory_space<vmem>>, vector<8x8x16xf32>
    %96 = vector.shape_cast %95 : vector<8x8x16xf32> to vector<64x16xf32>
    %c1_126 = arith.constant 1 : index
    %c1_127 = arith.constant 1 : index
    %c0_128 = arith.constant 0 : index
    %c0_129 = arith.constant 0 : index
    %97 = vector.load %arg4[%c1_126, %c1_127, %c0_128, %c0_129] : memref<3x3x16x64xf32, #tpu.memory_space<vmem>>, vector<1x1x16x64xf32>
    %98 = vector.shape_cast %97 : vector<1x1x16x64xf32> to vector<16x64xf32>
    %cst_130 = arith.constant dense<0.000000e+00> : vector<64x64xf32>
    %99 = tpu.matmul %96, %98, %cst_130 {dimension_numbers = #tpu.dot_dimension_numbers<[1], [0], [0], [1], [0, 0, 1, 1], [], []>} : vector<64x16xf32>, vector<16x64xf32>, vector<64x64xf32> -> vector<64x64xf32>
    %100 = arith.addf %94, %99 : vector<64x64xf32>
    %c1_131 = arith.constant 1 : index
    %c2_132 = arith.constant 2 : index
    %c0_133 = arith.constant 0 : index
    %101 = vector.load %arg14[%c1_131, %c2_132, %c0_133] : memref<10x10x16xf32, #tpu.memory_space<vmem>>, vector<8x8x16xf32>
    %102 = vector.shape_cast %101 : vector<8x8x16xf32> to vector<64x16xf32>
    %c1_134 = arith.constant 1 : index
    %c2_135 = arith.constant 2 : index
    %c0_136 = arith.constant 0 : index
    %c0_137 = arith.constant 0 : index
    %103 = vector.load %arg4[%c1_134, %c2_135, %c0_136, %c0_137] : memref<3x3x16x64xf32, #tpu.memory_space<vmem>>, vector<1x1x16x64xf32>
    %104 = vector.shape_cast %103 : vector<1x1x16x64xf32> to vector<16x64xf32>
    %cst_138 = arith.constant dense<0.000000e+00> : vector<64x64xf32>
    %105 = tpu.matmul %102, %104, %cst_138 {dimension_numbers = #tpu.dot_dimension_numbers<[1], [0], [0], [1], [0, 0, 1, 1], [], []>} : vector<64x16xf32>, vector<16x64xf32>, vector<64x64xf32> -> vector<64x64xf32>
    %106 = arith.addf %100, %105 : vector<64x64xf32>
    %c2_139 = arith.constant 2 : index
    %c0_140 = arith.constant 0 : index
    %c0_141 = arith.constant 0 : index
    %107 = vector.load %arg14[%c2_139, %c0_140, %c0_141] : memref<10x10x16xf32, #tpu.memory_space<vmem>>, vector<8x8x16xf32>
    %108 = vector.shape_cast %107 : vector<8x8x16xf32> to vector<64x16xf32>
    %c2_142 = arith.constant 2 : index
    %c0_143 = arith.constant 0 : index
    %c0_144 = arith.constant 0 : index
    %c0_145 = arith.constant 0 : index
    %109 = vector.load %arg4[%c2_142, %c0_143, %c0_144, %c0_145] : memref<3x3x16x64xf32, #tpu.memory_space<vmem>>, vector<1x1x16x64xf32>
    %110 = vector.shape_cast %109 : vector<1x1x16x64xf32> to vector<16x64xf32>
    %cst_146 = arith.constant dense<0.000000e+00> : vector<64x64xf32>
    %111 = tpu.matmul %108, %110, %cst_146 {dimension_numbers = #tpu.dot_dimension_numbers<[1], [0], [0], [1], [0, 0, 1, 1], [], []>} : vector<64x16xf32>, vector<16x64xf32>, vector<64x64xf32> -> vector<64x64xf32>
    %112 = arith.addf %106, %111 : vector<64x64xf32>
    %c2_147 = arith.constant 2 : index
    %c1_148 = arith.constant 1 : index
    %c0_149 = arith.constant 0 : index
    %113 = vector.load %arg14[%c2_147, %c1_148, %c0_149] : memref<10x10x16xf32, #tpu.memory_space<vmem>>, vector<8x8x16xf32>
    %114 = vector.shape_cast %113 : vector<8x8x16xf32> to vector<64x16xf32>
    %c2_150 = arith.constant 2 : index
    %c1_151 = arith.constant 1 : index
    %c0_152 = arith.constant 0 : index
    %c0_153 = arith.constant 0 : index
    %115 = vector.load %arg4[%c2_150, %c1_151, %c0_152, %c0_153] : memref<3x3x16x64xf32, #tpu.memory_space<vmem>>, vector<1x1x16x64xf32>
    %116 = vector.shape_cast %115 : vector<1x1x16x64xf32> to vector<16x64xf32>
    %cst_154 = arith.constant dense<0.000000e+00> : vector<64x64xf32>
    %117 = tpu.matmul %114, %116, %cst_154 {dimension_numbers = #tpu.dot_dimension_numbers<[1], [0], [0], [1], [0, 0, 1, 1], [], []>} : vector<64x16xf32>, vector<16x64xf32>, vector<64x64xf32> -> vector<64x64xf32>
    %118 = arith.addf %112, %117 : vector<64x64xf32>
    %c2_155 = arith.constant 2 : index
    %c2_156 = arith.constant 2 : index
    %c0_157 = arith.constant 0 : index
    %119 = vector.load %arg14[%c2_155, %c2_156, %c0_157] : memref<10x10x16xf32, #tpu.memory_space<vmem>>, vector<8x8x16xf32>
    %120 = vector.shape_cast %119 : vector<8x8x16xf32> to vector<64x16xf32>
    %c2_158 = arith.constant 2 : index
    %c2_159 = arith.constant 2 : index
    %c0_160 = arith.constant 0 : index
    %c0_161 = arith.constant 0 : index
    %121 = vector.load %arg4[%c2_158, %c2_159, %c0_160, %c0_161] : memref<3x3x16x64xf32, #tpu.memory_space<vmem>>, vector<1x1x16x64xf32>
    %122 = vector.shape_cast %121 : vector<1x1x16x64xf32> to vector<16x64xf32>
    %cst_162 = arith.constant dense<0.000000e+00> : vector<64x64xf32>
    %123 = tpu.matmul %120, %122, %cst_162 {dimension_numbers = #tpu.dot_dimension_numbers<[1], [0], [0], [1], [0, 0, 1, 1], [], []>} : vector<64x16xf32>, vector<16x64xf32>, vector<64x64xf32> -> vector<64x64xf32>
    %124 = arith.addf %118, %123 : vector<64x64xf32>
    %c0_163 = arith.constant 0 : index
    %c0_164 = arith.constant 0 : index
    %125 = vector.load %arg5[%c0_163, %c0_164] : memref<1x64xf32, #tpu.memory_space<vmem>>, vector<1x64xf32>
    %126 = vector.broadcast %125 : vector<1x64xf32> to vector<64x64xf32>
    %127 = arith.addf %124, %126 : vector<64x64xf32>
    %cst_165 = arith.constant 0.000000e+00 : f32
    %128 = vector.broadcast %cst_165 : f32 to vector<64x64xf32>
    %129 = arith.maximumf %127, %128 : vector<64x64xf32>
    %c0_166 = arith.constant 0 : index
    %c0_167 = arith.constant 0 : index
    %130 = vector.load %arg6[%c0_166, %c0_167] : memref<64x16xf32, #tpu.memory_space<vmem>>, vector<64x16xf32>
    %cst_168 = arith.constant dense<0.000000e+00> : vector<64x16xf32>
    %131 = tpu.matmul %2, %130, %cst_168 {dimension_numbers = #tpu.dot_dimension_numbers<[1], [0], [0], [1], [0, 0, 1, 1], [], []>} : vector<64x64xf32>, vector<64x16xf32>, vector<64x16xf32> -> vector<64x16xf32>
    %c0_169 = arith.constant 0 : index
    %c0_170 = arith.constant 0 : index
    %132 = vector.load %arg7[%c0_169, %c0_170] : memref<1x16xf32, #tpu.memory_space<vmem>>, vector<1x16xf32>
    %133 = vector.broadcast %132 : vector<1x16xf32> to vector<64x16xf32>
    %134 = arith.addf %131, %133 : vector<64x16xf32>
    %cst_171 = arith.constant 0.000000e+00 : f32
    %135 = vector.broadcast %cst_171 : f32 to vector<64x16xf32>
    %136 = arith.maximumf %134, %135 : vector<64x16xf32>
    %cst_172 = arith.constant 0.000000e+00 : f32
    %137 = vector.broadcast %cst_172 : f32 to vector<10x10x16xf32>
    %c0_173 = arith.constant 0 : index
    %c0_174 = arith.constant 0 : index
    %c0_175 = arith.constant 0 : index
    %138 = vector.load %arg15[%c0_173, %c0_174, %c0_175] : memref<10x10x16xf32, #tpu.memory_space<vmem>>, vector<10x10x16xf32>
    tpu.vector_store %arg15[%c0_173, %c0_174, %c0_175], %137 {strides = array<i32>} : memref<10x10x16xf32, #tpu.memory_space<vmem>>, vector<10x10x16xf32>,
    %139 = vector.shape_cast %136 : vector<64x16xf32> to vector<8x8x16xf32>
    %c1_176 = arith.constant 1 : index
    %c1_177 = arith.constant 1 : index
    %c0_178 = arith.constant 0 : index
    %140 = vector.load %arg15[%c1_176, %c1_177, %c0_178] : memref<10x10x16xf32, #tpu.memory_space<vmem>>, vector<8x8x16xf32>
    tpu.vector_store %arg15[%c1_176, %c1_177, %c0_178], %139 {strides = array<i32>} : memref<10x10x16xf32, #tpu.memory_space<vmem>>, vector<8x8x16xf32>,
    %cst_179 = arith.constant 0.000000e+00 : f32
    %141 = vector.broadcast %cst_179 : f32 to vector<64x16xf32>
    %c0_180 = arith.constant 0 : index
    %c0_181 = arith.constant 0 : index
    %c0_182 = arith.constant 0 : index
    %142 = vector.load %arg15[%c0_180, %c0_181, %c0_182] : memref<10x10x16xf32, #tpu.memory_space<vmem>>, vector<8x8x16xf32>
    %143 = vector.shape_cast %142 : vector<8x8x16xf32> to vector<64x16xf32>
    %c0_183 = arith.constant 0 : index
    %c0_184 = arith.constant 0 : index
    %c0_185 = arith.constant 0 : index
    %c0_186 = arith.constant 0 : index
    %144 = vector.load %arg8[%c0_183, %c0_184, %c0_185, %c0_186] : memref<3x3x16x16xf32, #tpu.memory_space<vmem>>, vector<1x1x16x16xf32>
    %145 = vector.shape_cast %144 : vector<1x1x16x16xf32> to vector<16x16xf32>
    %cst_187 = arith.constant dense<0.000000e+00> : vector<64x16xf32>
    %146 = tpu.matmul %143, %145, %cst_187 {dimension_numbers = #tpu.dot_dimension_numbers<[1], [0], [0], [1], [0, 0, 1, 1], [], []>} : vector<64x16xf32>, vector<16x16xf32>, vector<64x16xf32> -> vector<64x16xf32>
    %147 = arith.addf %141, %146 : vector<64x16xf32>
    %c0_188 = arith.constant 0 : index
    %c1_189 = arith.constant 1 : index
    %c0_190 = arith.constant 0 : index
    %148 = vector.load %arg15[%c0_188, %c1_189, %c0_190] : memref<10x10x16xf32, #tpu.memory_space<vmem>>, vector<8x8x16xf32>
    %149 = vector.shape_cast %148 : vector<8x8x16xf32> to vector<64x16xf32>
    %c0_191 = arith.constant 0 : index
    %c1_192 = arith.constant 1 : index
    %c0_193 = arith.constant 0 : index
    %c0_194 = arith.constant 0 : index
    %150 = vector.load %arg8[%c0_191, %c1_192, %c0_193, %c0_194] : memref<3x3x16x16xf32, #tpu.memory_space<vmem>>, vector<1x1x16x16xf32>
    %151 = vector.shape_cast %150 : vector<1x1x16x16xf32> to vector<16x16xf32>
    %cst_195 = arith.constant dense<0.000000e+00> : vector<64x16xf32>
    %152 = tpu.matmul %149, %151, %cst_195 {dimension_numbers = #tpu.dot_dimension_numbers<[1], [0], [0], [1], [0, 0, 1, 1], [], []>} : vector<64x16xf32>, vector<16x16xf32>, vector<64x16xf32> -> vector<64x16xf32>
    %153 = arith.addf %147, %152 : vector<64x16xf32>
    %c0_196 = arith.constant 0 : index
    %c2_197 = arith.constant 2 : index
    %c0_198 = arith.constant 0 : index
    %154 = vector.load %arg15[%c0_196, %c2_197, %c0_198] : memref<10x10x16xf32, #tpu.memory_space<vmem>>, vector<8x8x16xf32>
    %155 = vector.shape_cast %154 : vector<8x8x16xf32> to vector<64x16xf32>
    %c0_199 = arith.constant 0 : index
    %c2_200 = arith.constant 2 : index
    %c0_201 = arith.constant 0 : index
    %c0_202 = arith.constant 0 : index
    %156 = vector.load %arg8[%c0_199, %c2_200, %c0_201, %c0_202] : memref<3x3x16x16xf32, #tpu.memory_space<vmem>>, vector<1x1x16x16xf32>
    %157 = vector.shape_cast %156 : vector<1x1x16x16xf32> to vector<16x16xf32>
    %cst_203 = arith.constant dense<0.000000e+00> : vector<64x16xf32>
    %158 = tpu.matmul %155, %157, %cst_203 {dimension_numbers = #tpu.dot_dimension_numbers<[1], [0], [0], [1], [0, 0, 1, 1], [], []>} : vector<64x16xf32>, vector<16x16xf32>, vector<64x16xf32> -> vector<64x16xf32>
    %159 = arith.addf %153, %158 : vector<64x16xf32>
    %c1_204 = arith.constant 1 : index
    %c0_205 = arith.constant 0 : index
    %c0_206 = arith.constant 0 : index
    %160 = vector.load %arg15[%c1_204, %c0_205, %c0_206] : memref<10x10x16xf32, #tpu.memory_space<vmem>>, vector<8x8x16xf32>
    %161 = vector.shape_cast %160 : vector<8x8x16xf32> to vector<64x16xf32>
    %c1_207 = arith.constant 1 : index
    %c0_208 = arith.constant 0 : index
    %c0_209 = arith.constant 0 : index
    %c0_210 = arith.constant 0 : index
    %162 = vector.load %arg8[%c1_207, %c0_208, %c0_209, %c0_210] : memref<3x3x16x16xf32, #tpu.memory_space<vmem>>, vector<1x1x16x16xf32>
    %163 = vector.shape_cast %162 : vector<1x1x16x16xf32> to vector<16x16xf32>
    %cst_211 = arith.constant dense<0.000000e+00> : vector<64x16xf32>
    %164 = tpu.matmul %161, %163, %cst_211 {dimension_numbers = #tpu.dot_dimension_numbers<[1], [0], [0], [1], [0, 0, 1, 1], [], []>} : vector<64x16xf32>, vector<16x16xf32>, vector<64x16xf32> -> vector<64x16xf32>
    %165 = arith.addf %159, %164 : vector<64x16xf32>
    %c1_212 = arith.constant 1 : index
    %c1_213 = arith.constant 1 : index
    %c0_214 = arith.constant 0 : index
    %166 = vector.load %arg15[%c1_212, %c1_213, %c0_214] : memref<10x10x16xf32, #tpu.memory_space<vmem>>, vector<8x8x16xf32>
    %167 = vector.shape_cast %166 : vector<8x8x16xf32> to vector<64x16xf32>
    %c1_215 = arith.constant 1 : index
    %c1_216 = arith.constant 1 : index
    %c0_217 = arith.constant 0 : index
    %c0_218 = arith.constant 0 : index
    %168 = vector.load %arg8[%c1_215, %c1_216, %c0_217, %c0_218] : memref<3x3x16x16xf32, #tpu.memory_space<vmem>>, vector<1x1x16x16xf32>
    %169 = vector.shape_cast %168 : vector<1x1x16x16xf32> to vector<16x16xf32>
    %cst_219 = arith.constant dense<0.000000e+00> : vector<64x16xf32>
    %170 = tpu.matmul %167, %169, %cst_219 {dimension_numbers = #tpu.dot_dimension_numbers<[1], [0], [0], [1], [0, 0, 1, 1], [], []>} : vector<64x16xf32>, vector<16x16xf32>, vector<64x16xf32> -> vector<64x16xf32>
    %171 = arith.addf %165, %170 : vector<64x16xf32>
    %c1_220 = arith.constant 1 : index
    %c2_221 = arith.constant 2 : index
    %c0_222 = arith.constant 0 : index
    %172 = vector.load %arg15[%c1_220, %c2_221, %c0_222] : memref<10x10x16xf32, #tpu.memory_space<vmem>>, vector<8x8x16xf32>
    %173 = vector.shape_cast %172 : vector<8x8x16xf32> to vector<64x16xf32>
    %c1_223 = arith.constant 1 : index
    %c2_224 = arith.constant 2 : index
    %c0_225 = arith.constant 0 : index
    %c0_226 = arith.constant 0 : index
    %174 = vector.load %arg8[%c1_223, %c2_224, %c0_225, %c0_226] : memref<3x3x16x16xf32, #tpu.memory_space<vmem>>, vector<1x1x16x16xf32>
    %175 = vector.shape_cast %174 : vector<1x1x16x16xf32> to vector<16x16xf32>
    %cst_227 = arith.constant dense<0.000000e+00> : vector<64x16xf32>
    %176 = tpu.matmul %173, %175, %cst_227 {dimension_numbers = #tpu.dot_dimension_numbers<[1], [0], [0], [1], [0, 0, 1, 1], [], []>} : vector<64x16xf32>, vector<16x16xf32>, vector<64x16xf32> -> vector<64x16xf32>
    %177 = arith.addf %171, %176 : vector<64x16xf32>
    %c2_228 = arith.constant 2 : index
    %c0_229 = arith.constant 0 : index
    %c0_230 = arith.constant 0 : index
    %178 = vector.load %arg15[%c2_228, %c0_229, %c0_230] : memref<10x10x16xf32, #tpu.memory_space<vmem>>, vector<8x8x16xf32>
    %179 = vector.shape_cast %178 : vector<8x8x16xf32> to vector<64x16xf32>
    %c2_231 = arith.constant 2 : index
    %c0_232 = arith.constant 0 : index
    %c0_233 = arith.constant 0 : index
    %c0_234 = arith.constant 0 : index
    %180 = vector.load %arg8[%c2_231, %c0_232, %c0_233, %c0_234] : memref<3x3x16x16xf32, #tpu.memory_space<vmem>>, vector<1x1x16x16xf32>
    %181 = vector.shape_cast %180 : vector<1x1x16x16xf32> to vector<16x16xf32>
    %cst_235 = arith.constant dense<0.000000e+00> : vector<64x16xf32>
    %182 = tpu.matmul %179, %181, %cst_235 {dimension_numbers = #tpu.dot_dimension_numbers<[1], [0], [0], [1], [0, 0, 1, 1], [], []>} : vector<64x16xf32>, vector<16x16xf32>, vector<64x16xf32> -> vector<64x16xf32>
    %183 = arith.addf %177, %182 : vector<64x16xf32>
    %c2_236 = arith.constant 2 : index
    %c1_237 = arith.constant 1 : index
    %c0_238 = arith.constant 0 : index
    %184 = vector.load %arg15[%c2_236, %c1_237, %c0_238] : memref<10x10x16xf32, #tpu.memory_space<vmem>>, vector<8x8x16xf32>
    %185 = vector.shape_cast %184 : vector<8x8x16xf32> to vector<64x16xf32>
    %c2_239 = arith.constant 2 : index
    %c1_240 = arith.constant 1 : index
    %c0_241 = arith.constant 0 : index
    %c0_242 = arith.constant 0 : index
    %186 = vector.load %arg8[%c2_239, %c1_240, %c0_241, %c0_242] : memref<3x3x16x16xf32, #tpu.memory_space<vmem>>, vector<1x1x16x16xf32>
    %187 = vector.shape_cast %186 : vector<1x1x16x16xf32> to vector<16x16xf32>
    %cst_243 = arith.constant dense<0.000000e+00> : vector<64x16xf32>
    %188 = tpu.matmul %185, %187, %cst_243 {dimension_numbers = #tpu.dot_dimension_numbers<[1], [0], [0], [1], [0, 0, 1, 1], [], []>} : vector<64x16xf32>, vector<16x16xf32>, vector<64x16xf32> -> vector<64x16xf32>
    %189 = arith.addf %183, %188 : vector<64x16xf32>
    %c2_244 = arith.constant 2 : index
    %c2_245 = arith.constant 2 : index
    %c0_246 = arith.constant 0 : index
    %190 = vector.load %arg15[%c2_244, %c2_245, %c0_246] : memref<10x10x16xf32, #tpu.memory_space<vmem>>, vector<8x8x16xf32>
    %191 = vector.shape_cast %190 : vector<8x8x16xf32> to vector<64x16xf32>
    %c2_247 = arith.constant 2 : index
    %c2_248 = arith.constant 2 : index
    %c0_249 = arith.constant 0 : index
    %c0_250 = arith.constant 0 : index
    %192 = vector.load %arg8[%c2_247, %c2_248, %c0_249, %c0_250] : memref<3x3x16x16xf32, #tpu.memory_space<vmem>>, vector<1x1x16x16xf32>
    %193 = vector.shape_cast %192 : vector<1x1x16x16xf32> to vector<16x16xf32>
    %cst_251 = arith.constant dense<0.000000e+00> : vector<64x16xf32>
    %194 = tpu.matmul %191, %193, %cst_251 {dimension_numbers = #tpu.dot_dimension_numbers<[1], [0], [0], [1], [0, 0, 1, 1], [], []>} : vector<64x16xf32>, vector<16x16xf32>, vector<64x16xf32> -> vector<64x16xf32>
    %195 = arith.addf %189, %194 : vector<64x16xf32>
    %c0_252 = arith.constant 0 : index
    %c0_253 = arith.constant 0 : index
    %196 = vector.load %arg9[%c0_252, %c0_253] : memref<1x16xf32, #tpu.memory_space<vmem>>, vector<1x16xf32>
    %197 = vector.broadcast %196 : vector<1x16xf32> to vector<64x16xf32>
    %198 = arith.addf %195, %197 : vector<64x16xf32>
    %cst_254 = arith.constant 0.000000e+00 : f32
    %199 = vector.broadcast %cst_254 : f32 to vector<64x16xf32>
    %200 = arith.maximumf %198, %199 : vector<64x16xf32>
    %c0_255 = arith.constant 0 : index
    %c0_256 = arith.constant 0 : index
    %201 = vector.load %arg10[%c0_255, %c0_256] : memref<16x64xf32, #tpu.memory_space<vmem>>, vector<16x64xf32>
    %cst_257 = arith.constant dense<0.000000e+00> : vector<64x64xf32>
    %202 = tpu.matmul %200, %201, %cst_257 {dimension_numbers = #tpu.dot_dimension_numbers<[1], [0], [0], [1], [0, 0, 1, 1], [], []>} : vector<64x16xf32>, vector<16x64xf32>, vector<64x64xf32> -> vector<64x64xf32>
    %c0_258 = arith.constant 0 : index
    %c0_259 = arith.constant 0 : index
    %203 = vector.load %arg11[%c0_258, %c0_259] : memref<1x64xf32, #tpu.memory_space<vmem>>, vector<1x64xf32>
    %204 = vector.broadcast %203 : vector<1x64xf32> to vector<64x64xf32>
    %205 = arith.addf %202, %204 : vector<64x64xf32>
    %cst_260 = arith.constant 0.000000e+00 : f32
    %206 = vector.broadcast %cst_260 : f32 to vector<64x64xf32>
    %207 = arith.maximumf %205, %206 : vector<64x64xf32>
    %208 = arith.addf %2, %129 : vector<64x64xf32>
    %209 = arith.addf %208, %207 : vector<64x64xf32>
    %210 = vector.shape_cast %209 : vector<64x64xf32> to vector<8x8x64xf32>
    %c0_261 = arith.constant 0 : index
    %c0_262 = arith.constant 0 : index
    %c0_263 = arith.constant 0 : index
    %c0_264 = arith.constant 0 : index
    %211 = vector.load %arg12[%c0_261, %c0_262, %c0_263, %c0_264] : memref<1x8x8x64xf32, #tpu.memory_space<vmem>>, vector<1x8x8x64xf32>
    %212 = vector.shape_cast %211 : vector<1x8x8x64xf32> to vector<8x8x64xf32>
    %213 = vector.shape_cast %210 : vector<8x8x64xf32> to vector<1x8x8x64xf32>
    tpu.vector_store %arg12[%c0_261, %c0_262, %c0_263, %c0_264], %213 {strides = array<i32>} : memref<1x8x8x64xf32, #tpu.memory_space<vmem>>, vector<1x8x8x64xf32>,
    return
  }
  func.func @transform_0(%arg0: i32) -> (i32, i32, i32, i32) {
    %c0_i32 = arith.constant 0 : i32
    %c0_i32_0 = arith.constant 0 : i32
    %c0_i32_1 = arith.constant 0 : i32
    %c0_i32_2 = arith.constant 0 : i32
    return %arg0, %c0_i32, %c0_i32_0, %c0_i32_1 : i32, i32, i32, i32
  }
  func.func @transform_1(%arg0: i32) -> (i32, i32, i32, i32) {
    %c0_i32 = arith.constant 0 : i32
    %c0_i32_0 = arith.constant 0 : i32
    %c0_i32_1 = arith.constant 0 : i32
    %c0_i32_2 = arith.constant 0 : i32
    %c0_i32_3 = arith.constant 0 : i32
    return %c0_i32, %c0_i32_0, %c0_i32_1, %c0_i32_2 : i32, i32, i32, i32
  }
  func.func @transform_2(%arg0: i32) -> (i32, i32) {
    %c0_i32 = arith.constant 0 : i32
    %c0_i32_0 = arith.constant 0 : i32
    %c0_i32_1 = arith.constant 0 : i32
    return %c0_i32, %c0_i32_0 : i32, i32
  }
  func.func @transform_3(%arg0: i32) -> (i32, i32, i32, i32) {
    %c0_i32 = arith.constant 0 : i32
    %c0_i32_0 = arith.constant 0 : i32
    %c0_i32_1 = arith.constant 0 : i32
    %c0_i32_2 = arith.constant 0 : i32
    %c0_i32_3 = arith.constant 0 : i32
    return %c0_i32, %c0_i32_0, %c0_i32_1, %c0_i32_2 : i32, i32, i32, i32
  }
  func.func @transform_4(%arg0: i32) -> (i32, i32) {
    %c0_i32 = arith.constant 0 : i32
    %c0_i32_0 = arith.constant 0 : i32
    %c0_i32_1 = arith.constant 0 : i32
    return %c0_i32, %c0_i32_0 : i32, i32
  }
  func.func @transform_5(%arg0: i32) -> (i32, i32) {
    %c0_i32 = arith.constant 0 : i32
    %c0_i32_0 = arith.constant 0 : i32
    %c0_i32_1 = arith.constant 0 : i32
    return %c0_i32, %c0_i32_0 : i32, i32
  }
  func.func @transform_6(%arg0: i32) -> (i32, i32) {
    %c0_i32 = arith.constant 0 : i32
    %c0_i32_0 = arith.constant 0 : i32
    %c0_i32_1 = arith.constant 0 : i32
    return %c0_i32, %c0_i32_0 : i32, i32
  }
  func.func @transform_7(%arg0: i32) -> (i32, i32, i32, i32) {
    %c0_i32 = arith.constant 0 : i32
    %c0_i32_0 = arith.constant 0 : i32
    %c0_i32_1 = arith.constant 0 : i32
    %c0_i32_2 = arith.constant 0 : i32
    %c0_i32_3 = arith.constant 0 : i32
    return %c0_i32, %c0_i32_0, %c0_i32_1, %c0_i32_2 : i32, i32, i32, i32
  }
  func.func @transform_8(%arg0: i32) -> (i32, i32) {
    %c0_i32 = arith.constant 0 : i32
    %c0_i32_0 = arith.constant 0 : i32
    %c0_i32_1 = arith.constant 0 : i32
    return %c0_i32, %c0_i32_0 : i32, i32
  }
  func.func @transform_9(%arg0: i32) -> (i32, i32) {
    %c0_i32 = arith.constant 0 : i32
    %c0_i32_0 = arith.constant 0 : i32
    %c0_i32_1 = arith.constant 0 : i32
    return %c0_i32, %c0_i32_0 : i32, i32
  }
  func.func @transform_10(%arg0: i32) -> (i32, i32) {
    %c0_i32 = arith.constant 0 : i32
    %c0_i32_0 = arith.constant 0 : i32
    %c0_i32_1 = arith.constant 0 : i32
    return %c0_i32, %c0_i32_0 : i32, i32
  }
  func.func @transform_11(%arg0: i32) -> (i32, i32, i32, i32) {
    %c0_i32 = arith.constant 0 : i32
    %c0_i32_0 = arith.constant 0 : i32
    %c0_i32_1 = arith.constant 0 : i32
    %c0_i32_2 = arith.constant 0 : i32
    return %arg0, %c0_i32, %c0_i32_0, %c0_i32_1 : i32, i32, i32, i32
  }
}

</mosaic_0001>

<llo_original>
// kernel: ir_block_forward.1
$region0: #{ir_block_forward.1}
  #allocation0 [shape = 'u32[]', space=smem, size = 0x4, offset = 0x4, fixed_abs, tag = 'smem constant byte address 0x4 - core index']
  #allocation1 [shape = 'u32[144,128]{1,0:T(1,128)}', space=vmem, size = 0x12000, scoped, tag = 'internal scratch']
  #allocation2 [shape = 'f32[10,10,64]{2,1,0:T(8,128)}', space=vmem, size = 0x14000, scoped, tag = 'scratch operand']
  #allocation3 [shape = 'f32[10,10,16]{2,1,0:T(8,128)}', space=vmem, size = 0x14000, scoped, tag = 'scratch operand']
  #allocation4 [shape = 'f32[10,10,16]{2,1,0:T(8,128)}', space=vmem, size = 0x14000, scoped, tag = 'scratch operand']
  %s0 = inlined_call_operand.vmem [shape: f32[2,8,8,64], index: 0, kind: input, shape index: {}]
  %s1 = inlined_call_operand.vmem [shape: f32[3,3,64,16], index: 1, kind: input, shape index: {}]
  %s2 = inlined_call_operand.vmem [shape: f32[1,16], index: 2, kind: input, shape index: {}]
  %s3 = inlined_call_operand.vmem [shape: f32[3,3,16,64], index: 3, kind: input, shape index: {}]
  %s4 = inlined_call_operand.vmem [shape: f32[1,64], index: 4, kind: input, shape index: {}]
  %s5 = inlined_call_operand.vmem [shape: f32[64,16], index: 5, kind: input, shape index: {}]
  %s6 = inlined_call_operand.vmem [shape: f32[1,16], index: 6, kind: input, shape index: {}]
  %s7 = inlined_call_operand.vmem [shape: f32[3,3,16,16], index: 7, kind: input, shape index: {}]
  %s8 = inlined_call_operand.vmem [shape: f32[1,16], index: 8, kind: input, shape index: {}]
  %s9 = inlined_call_operand.vmem [shape: f32[16,64], index: 9, kind: input, shape index: {}]
  %s10 = inlined_call_operand.vmem [shape: f32[1,64], index: 10, kind: input, shape index: {}]
  %s11 = inlined_call_operand.vmem [shape: f32[2,8,8,64], index: 11, kind: output, shape index: {}]
  %s12 = sld [smem:[#allocation0]]
  $region77: #{ir_block_forward.1} parent=0
    _
  %s14 = ssub.s32 1, %s12
  %s15 = scalar_select 0, %s14, %s12
  loop: start=0, step=1, limit=4
  $region2: #{ir_block_forward.1} parent=0 // loop_pre_header
    _
  $region3: #{ir_block_forward.1} parent=0 // loop_header
    %s17 = sphi 0, %s21
    %p18 = scmp.ge.s32.totalorder %s17, 4
    %s27 = sphi 0, %s29
    %s30 = sphi 0, %s27
    %s31 = sphi 0, %s30
    %s47 = sphi 0, %s31
    %s51 = sphi 0, %s51
    %s53 = sphi 0, %s51
    %s54 = sphi 0, %s53
    %s68 = sphi 0, %s54
    %s72 = sphi 0, %s72
    %s74 = sphi 0, %s72
    %s75 = sphi 0, %s74
    %s89 = sphi 0, %s75
    %s93 = sphi 0, %s93
    %s95 = sphi 0, %s93
    %s96 = sphi 0, %s95
    %s110 = sphi 0, %s96
    %s114 = sphi 0, %s114
    %s116 = sphi 0, %s114
    %s117 = sphi 0, %s116
    %s131 = sphi 0, %s117
    %s135 = sphi 0, %s135
    %s137 = sphi 0, %s135
    %s138 = sphi 0, %s137
    %s152 = sphi 0, %s138
    %s156 = sphi 0, %s156
    %s158 = sphi 0, %s156
    %s159 = sphi 0, %s158
    %s173 = sphi 0, %s159
    %s177 = sphi 0, %s177
    %s179 = sphi 0, %s177
    %s180 = sphi 0, %s179
    %s194 = sphi 0, %s180
    %s198 = sphi 0, %s198
    %s200 = sphi 0, %s198
    %s201 = sphi 0, %s200
    %s215 = sphi 0, %s201
    %s219 = sphi 0, %s219
    %s221 = sphi 0, %s219
    %s222 = sphi 0, %s221
    %s236 = sphi 0, %s222
    %s240 = sphi 0, %s240
    %s242 = sphi 0, %s240
    %s243 = sphi 0, %s242
    %s257 = sphi 0, %s243
    %s263 = sphi 0, %s265
    %s266 = sphi 0, %s263
    %s267 = sphi 0, %s266
    %s283 = sphi 0, %s267
  $region4: #{ir_block_forward.1} parent=0 // loop_header_branch
    %20 = sbr.rel (%p18) target = $region8
  $region5: #{ir_block_forward.1} parent=0 // loop_body
    %s22 = ssub.s32 %s17, 1
    %s23 = ssub.s32 %s17, 2
    %s24 = sadd.s32 %s17, 1
    %s25 = ssub.s32 %s17, %s24
    %p26 = scmp.eq.s32.totalorder %s25, 0
    %s28 = sadd.s32 %s27, 1
    %s29 = scalar_select %p26, %s27, %s28
    %p32 = pneg %p26
    %p33 = scmp.eq.s32.totalorder %s17, 1
    %p34 = por %p32, %p33
    %p35 = scmp.ne.s32.totalorder %s27, %s30
    %p36 = scmp.eq.s32.totalorder %s17, 0
    %p37 = por %p35, %p36
    %p38 = scmp.ne.s32.totalorder %s27, %s30
    %p39 = scmp.eq.s32.totalorder %s22, 1
    %p40 = por %p38, %p39
    %p41 = scmp.ne.s32.totalorder %s30, %s31
    %p42 = scmp.eq.s32.totalorder %s22, 0
    %p43 = por %p41, %p42
    %p44 = scmp.ne.s32.totalorder %s30, %s31
    %p45 = scmp.eq.s32.totalorder %s23, 1
    %p46 = por %p44, %p45
    %p48 = scmp.ne.s32.totalorder %s31, %s47
    %p49 = scmp.eq.s32.totalorder %s23, 0
    %p50 = por %p48, %p49
    %s52 = sadd.s32 %s51, 1
    %p55 = scmp.eq.s32.totalorder %s17, 1
    %p56 = scmp.ne.s32.totalorder %s51, %s53
    %p57 = scmp.eq.s32.totalorder %s17, 0
    %p58 = por %p56, %p57
    %p59 = scmp.ne.s32.totalorder %s51, %s53
    %p60 = scmp.eq.s32.totalorder %s22, 1
    %p61 = por %p59, %p60
    %p62 = scmp.ne.s32.totalorder %s53, %s54
    %p63 = scmp.eq.s32.totalorder %s22, 0
    %p64 = por %p62, %p63
    %p65 = scmp.ne.s32.totalorder %s53, %s54
    %p66 = scmp.eq.s32.totalorder %s23, 1
    %p67 = por %p65, %p66
    %p69 = scmp.ne.s32.totalorder %s54, %s68
    %p70 = scmp.eq.s32.totalorder %s23, 0
    %p71 = por %p69, %p70
    %s73 = sadd.s32 %s72, 1
    %p76 = scmp.eq.s32.totalorder %s17, 1
    %p77 = scmp.ne.s32.totalorder %s72, %s74
    %p78 = scmp.eq.s32.totalorder %s17, 0
    %p79 = por %p77, %p78
    %p80 = scmp.ne.s32.totalorder %s72, %s74
    %p81 = scmp.eq.s32.totalorder %s22, 1
    %p82 = por %p80, %p81
    %p83 = scmp.ne.s32.totalorder %s74, %s75
    %p84 = scmp.eq.s32.totalorder %s22, 0
    %p85 = por %p83, %p84
    %p86 = scmp.ne.s32.totalorder %s74, %s75
    %p87 = scmp.eq.s32.totalorder %s23, 1
    %p88 = por %p86, %p87
    %p90 = scmp.ne.s32.totalorder %s75, %s89
    %p91 = scmp.eq.s32.totalorder %s23, 0
    %p92 = por %p90, %p91
    %s94 = sadd.s32 %s93, 1
    %p97 = scmp.eq.s32.totalorder %s17, 1
    %p98 = scmp.ne.s32.totalorder %s93, %s95
    %p99 = scmp.eq.s32.totalorder %s17, 0
    %p100 = por %p98, %p99
    %p101 = scmp.ne.s32.totalorder %s93, %s95
    %p102 = scmp.eq.s32.totalorder %s22, 1
    %p103 = por %p101, %p102
    %p104 = scmp.ne.s32.totalorder %s95, %s96
    %p105 = scmp.eq.s32.totalorder %s22, 0
    %p106 = por %p104, %p105
    %p107 = scmp.ne.s32.totalorder %s95, %s96
    %p108 = scmp.eq.s32.totalorder %s23, 1
    %p109 = por %p107, %p108
    %p111 = scmp.ne.s32.totalorder %s96, %s110
    %p112 = scmp.eq.s32.totalorder %s23, 0
    %p113 = por %p111, %p112
    %s115 = sadd.s32 %s114, 1
    %p118 = scmp.eq.s32.totalorder %s17, 1
    %p119 = scmp.ne.s32.totalorder %s114, %s116
    %p120 = scmp.eq.s32.totalorder %s17, 0
    %p121 = por %p119, %p120
    %p122 = scmp.ne.s32.totalorder %s114, %s116
    %p123 = scmp.eq.s32.totalorder %s22, 1
    %p124 = por %p122, %p123
    %p125 = scmp.ne.s32.totalorder %s116, %s117
    %p126 = scmp.eq.s32.totalorder %s22, 0
    %p127 = por %p125, %p126
    %p128 = scmp.ne.s32.totalorder %s116, %s117
    %p129 = scmp.eq.s32.totalorder %s23, 1
    %p130 = por %p128, %p129
    %p132 = scmp.ne.s32.totalorder %s117, %s131
    %p133 = scmp.eq.s32.totalorder %s23, 0
    %p134 = por %p132, %p133
    %s136 = sadd.s32 %s135, 1
    %p139 = scmp.eq.s32.totalorder %s17, 1
    %p140 = scmp.ne.s32.totalorder %s135, %s137
    %p141 = scmp.eq.s32.totalorder %s17, 0
    %p142 = por %p140, %p141
    %p143 = scmp.ne.s32.totalorder %s135, %s137
    %p144 = scmp.eq.s32.totalorder %s22, 1
    %p145 = por %p143, %p144
    %p146 = scmp.ne.s32.totalorder %s137, %s138
    %p147 = scmp.eq.s32.totalorder %s22, 0
    %p148 = por %p146, %p147
    %p149 = scmp.ne.s32.totalorder %s137, %s138
    %p150 = scmp.eq.s32.totalorder %s23, 1
    %p151 = por %p149, %p150
    %p153 = scmp.ne.s32.totalorder %s138, %s152
    %p154 = scmp.eq.s32.totalorder %s23, 0
    %p155 = por %p153, %p154
    %s157 = sadd.s32 %s156, 1
    %p160 = scmp.eq.s32.totalorder %s17, 1
    %p161 = scmp.ne.s32.totalorder %s156, %s158
    %p162 = scmp.eq.s32.totalorder %s17, 0
    %p163 = por %p161, %p162
    %p164 = scmp.ne.s32.totalorder %s156, %s158
    %p165 = scmp.eq.s32.totalorder %s22, 1
    %p166 = por %p164, %p165
    %p167 = scmp.ne.s32.totalorder %s158, %s159
    %p168 = scmp.eq.s32.totalorder %s22, 0
    %p169 = por %p167, %p168
    %p170 = scmp.ne.s32.totalorder %s158, %s159
    %p171 = scmp.eq.s32.totalorder %s23, 1
    %p172 = por %p170, %p171
    %p174 = scmp.ne.s32.totalorder %s159, %s173
    %p175 = scmp.eq.s32.totalorder %s23, 0
    %p176 = por %p174, %p175
    %s178 = sadd.s32 %s177, 1
    %p181 = scmp.eq.s32.totalorder %s17, 1
    %p182 = scmp.ne.s32.totalorder %s177, %s179
    %p183 = scmp.eq.s32.totalorder %s17, 0
    %p184 = por %p182, %p183
    %p185 = scmp.ne.s32.totalorder %s177, %s179
    %p186 = scmp.eq.s32.totalorder %s22, 1
    %p187 = por %p185, %p186
    %p188 = scmp.ne.s32.totalorder %s179, %s180
    %p189 = scmp.eq.s32.totalorder %s22, 0
    %p190 = por %p188, %p189
    %p191 = scmp.ne.s32.totalorder %s179, %s180
    %p192 = scmp.eq.s32.totalorder %s23, 1
    %p193 = por %p191, %p192
    %p195 = scmp.ne.s32.totalorder %s180, %s194
    %p196 = scmp.eq.s32.totalorder %s23, 0
    %p197 = por %p195, %p196
    %s199 = sadd.s32 %s198, 1
    %p202 = scmp.eq.s32.totalorder %s17, 1
    %p203 = scmp.ne.s32.totalorder %s198, %s200
    %p204 = scmp.eq.s32.totalorder %s17, 0
    %p205 = por %p203, %p204
    %p206 = scmp.ne.s32.totalorder %s198, %s200
    %p207 = scmp.eq.s32.totalorder %s22, 1
    %p208 = por %p206, %p207
    %p209 = scmp.ne.s32.totalorder %s200, %s201
    %p210 = scmp.eq.s32.totalorder %s22, 0
    %p211 = por %p209, %p210
    %p212 = scmp.ne.s32.totalorder %s200, %s201
    %p213 = scmp.eq.s32.totalorder %s23, 1
    %p214 = por %p212, %p213
    %p216 = scmp.ne.s32.totalorder %s201, %s215
    %p217 = scmp.eq.s32.totalorder %s23, 0
    %p218 = por %p216, %p217
    %s220 = sadd.s32 %s219, 1
    %p223 = scmp.eq.s32.totalorder %s17, 1
    %p224 = scmp.ne.s32.totalorder %s219, %s221
    %p225 = scmp.eq.s32.totalorder %s17, 0
    %p226 = por %p224, %p225
    %p227 = scmp.ne.s32.totalorder %s219, %s221
    %p228 = scmp.eq.s32.totalorder %s22, 1
    %p229 = por %p227, %p228
    %p230 = scmp.ne.s32.totalorder %s221, %s222
    %p231 = scmp.eq.s32.totalorder %s22, 0
    %p232 = por %p230, %p231
    %p233 = scmp.ne.s32.totalorder %s221, %s222
    %p234 = scmp.eq.s32.totalorder %s23, 1
    %p235 = por %p233, %p234
    %p237 = scmp.ne.s32.totalorder %s222, %s236
    %p238 = scmp.eq.s32.totalorder %s23, 0
    %p239 = por %p237, %p238
    %s241 = sadd.s32 %s240, 1
    %p244 = scmp.eq.s32.totalorder %s17, 1
    %p245 = scmp.ne.s32.totalorder %s240, %s242
    %p246 = scmp.eq.s32.totalorder %s17, 0
    %p247 = por %p245, %p246
    %p248 = scmp.ne.s32.totalorder %s240, %s242
    %p249 = scmp.eq.s32.totalorder %s22, 1
    %p250 = por %p248, %p249
    %p251 = scmp.ne.s32.totalorder %s242, %s243
    %p252 = scmp.eq.s32.totalorder %s22, 0
    %p253 = por %p251, %p252
    %p254 = scmp.ne.s32.totalorder %s242, %s243
    %p255 = scmp.eq.s32.totalorder %s23, 1
    %p256 = por %p254, %p255
    %p258 = scmp.ne.s32.totalorder %s243, %s257
    %p259 = scmp.eq.s32.totalorder %s23, 0
    %p260 = por %p258, %p259
    %s261 = ssub.s32 %s17, %s24
    %p262 = scmp.eq.s32.totalorder %s261, 0
    %s264 = sadd.s32 %s263, 1
    %s265 = scalar_select %p262, %s263, %s264
    %p268 = pneg %p262
    %p269 = scmp.eq.s32.totalorder %s17, 1
    %p270 = por %p268, %p269
    %p271 = scmp.ne.s32.totalorder %s263, %s266
    %p272 = scmp.eq.s32.totalorder %s17, 0
    %p273 = por %p271, %p272
    %p274 = scmp.ne.s32.totalorder %s263, %s266
    %p275 = scmp.eq.s32.totalorder %s22, 1
    %p276 = por %p274, %p275
    %p277 = scmp.ne.s32.totalorder %s266, %s267
    %p278 = scmp.eq.s32.totalorder %s22, 0
    %p279 = por %p277, %p278
    %p280 = scmp.ne.s32.totalorder %s266, %s267
    %p281 = scmp.eq.s32.totalorder %s23, 1
    %p282 = por %p280, %p281
    %p284 = scmp.ne.s32.totalorder %s267, %s283
    %p285 = scmp.eq.s32.totalorder %s23, 0
    %p286 = por %p284, %p285
    %p287 = scmp.le.s32.totalorder 1, %s17
    %p288 = scmp.lt.s32.totalorder %s17, 3
    %p289 = pnand %p287, %p288
    %p290 = pneg %p289
    // Predicated region
    $region9: #{ir_block_forward.1} parent=5 // pred_check
      _
    $region10: #{ir_block_forward.1} parent=5 // pred_check_branch
      %292 = sbr.rel (%p289) target = $region12
    $region11: #{ir_block_forward.1} parent=5 // pred_region
      %s293 = ssub.s32 %s17, 1
      // Predicated region
      $region13: #{ir_block_forward.1} parent=11 // pred_check
        %p294 = pneg %p64
      $region14: #{ir_block_forward.1} parent=11 // pred_check_branch
        %296 = sbr.rel (%p294) target = $region16
      $region15: #{ir_block_forward.1} parent=11 // pred_region
        _
      $region16: #{ir_block_forward.1} parent=11 // pred_fallthru
        _
      // Predicated region
      $region17: #{ir_block_forward.1} parent=11 // pred_check
        %p297 = pneg %p85
      $region18: #{ir_block_forward.1} parent=11 // pred_check_branch
        %299 = sbr.rel (%p297) target = $region20
      $region19: #{ir_block_forward.1} parent=11 // pred_region
        _
      $region20: #{ir_block_forward.1} parent=11 // pred_fallthru
        _
      // Predicated region
      $region21: #{ir_block_forward.1} parent=11 // pred_check
        %p300 = pneg %p106
      $region22: #{ir_block_forward.1} parent=11 // pred_check_branch
        %302 = sbr.rel (%p300) target = $region24
      $region23: #{ir_block_forward.1} parent=11 // pred_region
        _
      $region24: #{ir_block_forward.1} parent=11 // pred_fallthru
        _
      // Predicated region
      $region25: #{ir_block_forward.1} parent=11 // pred_check
        %p303 = pneg %p127
      $region26: #{ir_block_forward.1} parent=11 // pred_check_branch
        %305 = sbr.rel (%p303) target = $region28
      $region27: #{ir_block_forward.1} parent=11 // pred_region
        _
      $region28: #{ir_block_forward.1} parent=11 // pred_fallthru
        _
      // Predicated region
      $region29: #{ir_block_forward.1} parent=11 // pred_check
        %p306 = pneg %p148
      $region30: #{ir_block_forward.1} parent=11 // pred_check_branch
        %308 = sbr.rel (%p306) target = $region32
      $region31: #{ir_block_forward.1} parent=11 // pred_region
        _
      $region32: #{ir_block_forward.1} parent=11 // pred_fallthru
        _
      // Predicated region
      $region33: #{ir_block_forward.1} parent=11 // pred_check
        %p309 = pneg %p169
      $region34: #{ir_block_forward.1} parent=11 // pred_check_branch
        %311 = sbr.rel (%p309) target = $region36
      $region35: #{ir_block_forward.1} parent=11 // pred_region
        _
      $region36: #{ir_block_forward.1} parent=11 // pred_fallthru
        _
      // Predicated region
      $region37: #{ir_block_forward.1} parent=11 // pred_check
        %p312 = pneg %p190
      $region38: #{ir_block_forward.1} parent=11 // pred_check_branch
        %314 = sbr.rel (%p312) target = $region40
      $region39: #{ir_block_forward.1} parent=11 // pred_region
        _
      $region40: #{ir_block_forward.1} parent=11 // pred_fallthru
        _
      // Predicated region
      $region41: #{ir_block_forward.1} parent=11 // pred_check
        %p315 = pneg %p211
      $region42: #{ir_block_forward.1} parent=11 // pred_check_branch
        %317 = sbr.rel (%p315) target = $region44
      $region43: #{ir_block_forward.1} parent=11 // pred_region
        _
      $region44: #{ir_block_forward.1} parent=11 // pred_fallthru
        _
      // Predicated region
      $region45: #{ir_block_forward.1} parent=11 // pred_check
        %p318 = pneg %p232
      $region46: #{ir_block_forward.1} parent=11 // pred_check_branch
        %320 = sbr.rel (%p318) target = $region48
      $region47: #{ir_block_forward.1} parent=11 // pred_region
        _
      $region48: #{ir_block_forward.1} parent=11 // pred_fallthru
        _
      // Predicated region
      $region49: #{ir_block_forward.1} parent=11 // pred_check
        %p321 = pneg %p253
      $region50: #{ir_block_forward.1} parent=11 // pred_check_branch
        %323 = sbr.rel (%p321) target = $region52
      $region51: #{ir_block_forward.1} parent=11 // pred_region
        _
      $region52: #{ir_block_forward.1} parent=11 // pred_fallthru
        _
    $region12: #{ir_block_forward.1} parent=5 // pred_fallthru
      _
    %p324 = scmp.lt.s32.totalorder %s17, 2
    // Predicated region
    $region53: #{ir_block_forward.1} parent=5 // pred_check
      %p325 = pneg %p324
    $region54: #{ir_block_forward.1} parent=5 // pred_check_branch
      %327 = sbr.rel (%p325) target = $region56
    $region55: #{ir_block_forward.1} parent=5 // pred_region
      // Predicated region
      $region57: #{ir_block_forward.1} parent=55 // pred_check
        %p328 = pneg %p37
      $region58: #{ir_block_forward.1} parent=55 // pred_check_branch
        %330 = sbr.rel (%p328) target = $region60
      $region59: #{ir_block_forward.1} parent=55 // pred_region
        %p331 = scmp.lt.s32.totalorder %s17, 1
        %s332 = scalar_select %p331, %s17, 1
        %s333 = smul.addr %s332, 8
        %s334 = smul.addr %s333, 8
        %s335 = scalar_lea.vmem %s0, %s334
      $region60: #{ir_block_forward.1} parent=55 // pred_fallthru
        _
    $region56: #{ir_block_forward.1} parent=5 // pred_fallthru
      _
    %p336 = scmp.le.s32.totalorder 1, %s17
    %p337 = scmp.lt.s32.totalorder %s17, 3
    %p338 = pnand %p336, %p337
    %p339 = pneg %p338
    // Predicated region
    $region61: #{ir_block_forward.1} parent=5 // pred_check
      _
    $region62: #{ir_block_forward.1} parent=5 // pred_check_branch
      %341 = sbr.rel (%p338) target = $region64
    $region63: #{ir_block_forward.1} parent=5 // pred_region
      %s342 = ssub.s32 %s17, 1
      %p343 = scmp.lt.s32.totalorder %s22, 1
      %s344 = scalar_select %p343, %s22, 1
      %s345 = smul.addr %s344, 8
      %s346 = smul.addr %s345, 8
      %s347 = scalar_lea.vmem %s0, %s346
      %p348 = pneg %p43
      %p349 = pneg %p40
      %p350 = pneg %p64
      %p351 = pneg %p61
      %p352 = pneg %p85
      %p353 = pneg %p82
      %p354 = pneg %p106
      %p355 = pneg %p103
      %p356 = pneg %p127
      %p357 = pneg %p124
      %p358 = pneg %p148
      %p359 = pneg %p145
      %p360 = pneg %p169
      %p361 = pneg %p166
      %p362 = pneg %p190
      %p363 = pneg %p187
      %p364 = pneg %p211
      %p365 = pneg %p208
      %p366 = pneg %p232
      %p367 = pneg %p229
      %p368 = pneg %p253
      %p369 = pneg %p250
      %p370 = pneg %p279
      %p371 = pneg %p276
      %p372 = scmp.lt.s32.totalorder %s22, 1
      %s373 = scalar_select %p372, %s22, 1
      %s374 = smul.addr %s373, 8
      %s375 = smul.addr %s374, 8
      %s376 = scalar_lea.vmem %s11, %s375
      %p377 = scmp.lt.s32.totalorder %s22, 1
      %s378 = scalar_select %p377, %s22, 1
      %s379 = smul.addr %s378, 8
      %s380 = smul.addr %s379, 8
      %s381 = scalar_lea.vmem %s0, %s380
      %p382 = scmp.lt.s32.totalorder %s22, 1
      %s383 = scalar_select %p382, %s22, 1
      %s384 = smul.addr %s383, 8
      %s385 = smul.addr %s384, 8
      %s386 = scalar_lea.vmem %s11, %s385
      %v387 = vld [vmem:[%s381] sm:$0xff]
      %v388 = vld [vmem:[%s381 + $0x8] sm:$0xff]
      %v389 = vld [vmem:[%s381 + $0x10] sm:$0xff]
      %v390 = vld [vmem:[%s381 + $0x18] sm:$0xff]
      %v391 = vld [vmem:[%s381 + $0x20] sm:$0xff]
      %v392 = vld [vmem:[%s381 + $0x28] sm:$0xff]
      %v393 = vld [vmem:[%s381 + $0x30] sm:$0xff]
      %v394 = vld [vmem:[%s381 + $0x38] sm:$0xff]
      %vm395 = vcmask 523264
      %396 = vst.msk [vmem:[#allocation2] sm:$0xff] %vm395, 0.0
      %vm397 = vcmask 517120
      %398 = vst.msk [vmem:[#allocation2 + $0x8] sm:$0x3] %vm397, 0.0
      %399 = vst.msk [vmem:[#allocation2 + $0x10] sm:$0xff] %vm395, 0.0
      %400 = vst.msk [vmem:[#allocation2 + $0x18] sm:$0x3] %vm397, 0.0
      %401 = vst.msk [vmem:[#allocation2 + $0x20] sm:$0xff] %vm395, 0.0
      %402 = vst.msk [vmem:[#allocation2 + $0x28] sm:$0x3] %vm397, 0.0
      %403 = vst.msk [vmem:[#allocation2 + $0x30] sm:$0xff] %vm395, 0.0
      %404 = vst.msk [vmem:[#allocation2 + $0x38] sm:$0x3] %vm397, 0.0
      %405 = vst.msk [vmem:[#allocation2 + $0x40] sm:$0xff] %vm395, 0.0
      %406 = vst.msk [vmem:[#allocation2 + $0x48] sm:$0x3] %vm397, 0.0
      %407 = vst.msk [vmem:[#allocation2 + $0x50] sm:$0xff] %vm395, 0.0
      %408 = vst.msk [vmem:[#allocation2 + $0x58] sm:$0x3] %vm397, 0.0
      %409 = vst.msk [vmem:[#allocation2 + $0x60] sm:$0xff] %vm395, 0.0
      %410 = vst.msk [vmem:[#allocation2 + $0x68] sm:$0x3] %vm397, 0.0
      %411 = vst.msk [vmem:[#allocation2 + $0x70] sm:$0xff] %vm395, 0.0
      %412 = vst.msk [vmem:[#allocation2 + $0x78] sm:$0x3] %vm397, 0.0
      %413 = vst.msk [vmem:[#allocation2 + $0x80] sm:$0xff] %vm395, 0.0
      %414 = vst.msk [vmem:[#allocation2 + $0x88] sm:$0x3] %vm397, 0.0
      %415 = vst.msk [vmem:[#allocation2 + $0x90] sm:$0xff] %vm395, 0.0
      %416 = vst.msk [vmem:[#allocation2 + $0x98] sm:$0x3] %vm397, 0.0
      %s417 = scalar_lea.vmem [#allocation2], 16
      %418 = vst.msk [vmem:[%s417 + $0x1] sm:$0xff] %vm395, %v387
      %419 = vst.msk [vmem:[%s417 + $0x11] sm:$0xff] %vm395, %v388
      %420 = vst.msk [vmem:[%s417 + $0x21] sm:$0xff] %vm395, %v389
      %421 = vst.msk [vmem:[%s417 + $0x31] sm:$0xff] %vm395, %v390
      %422 = vst.msk [vmem:[%s417 + $0x41] sm:$0xff] %vm395, %v391
      %423 = vst.msk [vmem:[%s417 + $0x51] sm:$0xff] %vm395, %v392
      %424 = vst.msk [vmem:[%s417 + $0x61] sm:$0xff] %vm395, %v393
      %425 = vst.msk [vmem:[%s417 + $0x71] sm:$0xff] %vm395, %v394
      %v426 = vld [vmem:[#allocation2] sm:$0xff]
      %v427 = vld [vmem:[#allocation2 + $0x10] sm:$0xff]
      %v428 = vld [vmem:[#allocation2 + $0x20] sm:$0xff]
      %v429 = vld [vmem:[#allocation2 + $0x30] sm:$0xff]
      %v430 = vld [vmem:[#allocation2 + $0x40] sm:$0xff]
      %v431 = vld [vmem:[#allocation2 + $0x50] sm:$0xff]
      %v432 = vld [vmem:[#allocation2 + $0x60] sm:$0xff]
      %v433 = vld [vmem:[#allocation2 + $0x70] sm:$0xff]
      %v434 = vld [vmem:[%s1] sm:$0xff]
      %v435 = vld [vmem:[%s1 + $0x8] sm:$0xff]
      %v436 = vld [vmem:[%s1 + $0x10] sm:$0xff]
      %v437 = vld [vmem:[%s1 + $0x18] sm:$0xff]
      %v438 = vld [vmem:[%s1 + $0x20] sm:$0xff]
      %v439 = vld [vmem:[%s1 + $0x28] sm:$0xff]
      %v440 = vld [vmem:[%s1 + $0x30] sm:$0xff]
      %v441 = vld [vmem:[%s1 + $0x38] sm:$0xff]
      %v442 = vld [vmem:[#allocation2 + $0x1] sm:$0xff]
      %v443 = vld [vmem:[#allocation2 + $0x11] sm:$0xff]
      %v444 = vld [vmem:[#allocation2 + $0x21] sm:$0xff]
      %v445 = vld [vmem:[#allocation2 + $0x31] sm:$0xff]
      %v446 = vld [vmem:[#allocation2 + $0x41] sm:$0xff]
      %v447 = vld [vmem:[#allocation2 + $0x51] sm:$0xff]
      %v448 = vld [vmem:[#allocation2 + $0x61] sm:$0xff]
      %v449 = vld [vmem:[#allocation2 + $0x71] sm:$0xff]
      %s450 = scalar_lea.vmem %s1, 64
      %v451 = vld [vmem:[%s450] sm:$0xff]
      %v452 = vld [vmem:[%s450 + $0x8] sm:$0xff]
      %v453 = vld [vmem:[%s450 + $0x10] sm:$0xff]
      %v454 = vld [vmem:[%s450 + $0x18] sm:$0xff]
      %v455 = vld [vmem:[%s450 + $0x20] sm:$0xff]
      %v456 = vld [vmem:[%s450 + $0x28] sm:$0xff]
      %v457 = vld [vmem:[%s450 + $0x30] sm:$0xff]
      %v458 = vld [vmem:[%s450 + $0x38] sm:$0xff]
      %v460 = vsel %vm395, %v442, 0
      %v463 = vsel %vm395, %v443, 0
      %v466 = vsel %vm395, %v444, 0
      %v469 = vsel %vm395, %v445, 0
      %v472 = vsel %vm395, %v446, 0
      %v475 = vsel %vm395, %v447, 0
      %v478 = vsel %vm395, %v448, 0
      %v481 = vsel %vm395, %v449, 0
      %483 = vmatprep.subr.mxu0 0.0
      %484 = vmatpush1.msra.mxu0 0.0
      %485 = vmatprep.subr.mxu0 0.0
      %486 = vmatpush1.msra.mxu0 0.0
      %487 = vmatprep.subr.mxu0 0.0
      %488 = vmatpush1.msra.mxu0 0.0
      %489 = vmatprep.subr.mxu0 0.0
      %490 = vmatpush1.msra.mxu0 0.0
      %491 = vmatprep.subr.mxu0 0.0
      %492 = vmatpush1.msra.mxu0 0.0
      %493 = vmatprep.subr.mxu0 0.0
      %494 = vmatpush1.msra.mxu0 0.0
      %495 = vmatprep.subr.mxu0 0.0
      %496 = vmatpush1.msra.mxu0 0.0
      %497 = vmatprep.subr.mxu0 0.0
      %498 = vmatpush1.msra.mxu0 0.0
      %499 = vmatprep.subr.mxu0 0.0
      %500 = vmatpush1.msra.mxu0 %v458
      %501 = vmatprep.subr.mxu0 0.0
      %502 = vmatpush1.msra.mxu0 %v457
      %503 = vmatprep.subr.mxu0 0.0
      %504 = vmatpush1.msra.mxu0 %v456
      %505 = vmatprep.subr.mxu0 0.0
      %506 = vmatpush1.msra.mxu0 %v455
      %507 = vmatprep.subr.mxu0 0.0
      %508 = vmatpush1.msra.mxu0 %v454
      %509 = vmatprep.subr.mxu0 0.0
      %510 = vmatpush1.msra.mxu0 %v453
      %511 = vmatprep.subr.mxu0 0.0
      %512 = vmatpush1.msra.mxu0 %v452
      %513 = vmatprep.subr.mxu0 0.0
      %514 = vmatpush1.msra.mxu0 %v451
      %515 = vmatprep.subr.mxu0 0.0
      %516 = vmatpush2.msra.mxu0 0.0
      %517 = vmatprep.subr.mxu0 0.0
      %518 = vmatpush2.msra.mxu0 0.0
      %519 = vmatprep.subr.mxu0 0.0
      %520 = vmatpush2.msra.mxu0 0.0
      %521 = vmatprep.subr.mxu0 0.0
      %522 = vmatpush2.msra.mxu0 0.0
      %523 = vmatprep.subr.mxu0 0.0
      %524 = vmatpush2.msra.mxu0 0.0
      %525 = vmatprep.subr.mxu0 0.0
      %526 = vmatpush2.msra.mxu0 0.0
      %527 = vmatprep.subr.mxu0 0.0
      %528 = vmatpush2.msra.mxu0 0.0
      %529 = vmatprep.subr.mxu0 0.0
      %530 = vmatpush2.msra.mxu0 0.0
      %531 = vmatprep.subr.mxu0 0.0
      %532 = vmatpush2.msra.mxu0 0.0
      %533 = vmatprep.subr.mxu0 0.0
      %534 = vmatpush2.msra.mxu0 0.0
      %535 = vmatprep.subr.mxu0 0.0
      %536 = vmatpush2.msra.mxu0 0.0
      %537 = vmatprep.subr.mxu0 0.0
      %538 = vmatpush2.msra.mxu0 0.0
      %539 = vmatprep.subr.mxu0 0.0
      %540 = vmatpush2.msra.mxu0 0.0
      %541 = vmatprep.subr.mxu0 0.0
      %542 = vmatpush2.msra.mxu0 0.0
      %543 = vmatprep.subr.mxu0 0.0
      %544 = vmatpush2.msra.mxu0 0.0
      %545 = vmatprep.subr.mxu0 0.0
      %546 = vmatpush2.msra.mxu0 0.0
      %547 = vmatprep.mubr.f32.mxu0 0.0
      %548 = vmatmul.mubr.f32.gmra.mxu0 %v460
      %v549 = vpop.f32.mrf.mxu0
      %v550 = vadd.f32 0.0, %v549
      %v551 = vpop.f32.mrf.mxu0
      %552 = vmatprep.mubr.f32.mxu0 0.0
      %553 = vmatmul.mubr.f32.gmra.mxu0 %v463
      %v554 = vpop.f32.mrf.mxu0
      %v555 = vadd.f32 0.0, %v554
      %v556 = vpop.f32.mrf.mxu0
      %557 = vmatprep.mubr.f32.mxu0 0.0
      %558 = vmatmul.mubr.f32.gmra.mxu0 %v466
      %v559 = vpop.f32.mrf.mxu0
      %v560 = vadd.f32 0.0, %v559
      %v561 = vpop.f32.mrf.mxu0
      %562 = vmatprep.mubr.f32.mxu0 0.0
      %563 = vmatmul.mubr.f32.gmra.mxu0 %v469
      %v564 = vpop.f32.mrf.mxu0
      %v565 = vadd.f32 0.0, %v564
      %v566 = vpop.f32.mrf.mxu0
      %567 = vmatprep.mubr.f32.mxu0 0.0
      %568 = vmatmul.mubr.f32.gmra.mxu0 %v472
      %v569 = vpop.f32.mrf.mxu0
      %v570 = vadd.f32 0.0, %v569
      %v571 = vpop.f32.mrf.mxu0
      %572 = vmatprep.mubr.f32.mxu0 0.0
      %573 = vmatmul.mubr.f32.gmra.mxu0 %v475
      %v574 = vpop.f32.mrf.mxu0
      %v575 = vadd.f32 0.0, %v574
      %v576 = vpop.f32.mrf.mxu0
      %577 = vmatprep.mubr.f32.mxu0 0.0
      %578 = vmatmul.mubr.f32.gmra.mxu0 %v478
      %v579 = vpop.f32.mrf.mxu0
      %v580 = vadd.f32 0.0, %v579
      %v581 = vpop.f32.mrf.mxu0
      %582 = vmatprep.mubr.f32.mxu0 0.0
      %583 = vmatmul.mubr.f32.gmra.mxu0 %v481
      %v584 = vpop.f32.mrf.mxu0
      %v585 = vadd.f32 0.0, %v584
      %v586 = vpop.f32.mrf.mxu0
      %587 = vdwg.mxu0
      %v589 = vsel %vm395, %v426, 0
      %v592 = vsel %vm395, %v427, 0
      %v595 = vsel %vm395, %v428, 0
      %v598 = vsel %vm395, %v429, 0
      %v601 = vsel %vm395, %v430, 0
      %v604 = vsel %vm395, %v431, 0
      %v607 = vsel %vm395, %v432, 0
      %v610 = vsel %vm395, %v433, 0
      %612 = vmatprep.subr.mxu0 0.0
      %613 = vmatpush1.msra.mxu0 0.0
      %614 = vmatprep.subr.mxu0 0.0
      %615 = vmatpush1.msra.mxu0 0.0
      %616 = vmatprep.subr.mxu0 0.0
      %617 = vmatpush1.msra.mxu0 0.0
      %618 = vmatprep.subr.mxu0 0.0
      %619 = vmatpush1.msra.mxu0 0.0
      %620 = vmatprep.subr.mxu0 0.0
      %621 = vmatpush1.msra.mxu0 0.0
      %622 = vmatprep.subr.mxu0 0.0
      %623 = vmatpush1.msra.mxu0 0.0
      %624 = vmatprep.subr.mxu0 0.0
      %625 = vmatpush1.msra.mxu0 0.0
      %626 = vmatprep.subr.mxu0 0.0
      %627 = vmatpush1.msra.mxu0 0.0
      %628 = vmatprep.subr.mxu0 0.0
      %629 = vmatpush1.msra.mxu0 %v441
      %630 = vmatprep.subr.mxu0 0.0
      %631 = vmatpush1.msra.mxu0 %v440
      %632 = vmatprep.subr.mxu0 0.0
      %633 = vmatpush1.msra.mxu0 %v439
      %634 = vmatprep.subr.mxu0 0.0
      %635 = vmatpush1.msra.mxu0 %v438
      %636 = vmatprep.subr.mxu0 0.0
      %637 = vmatpush1.msra.mxu0 %v437
      %638 = vmatprep.subr.mxu0 0.0
      %639 = vmatpush1.msra.mxu0 %v436
      %640 = vmatprep.subr.mxu0 0.0
      %641 = vmatpush1.msra.mxu0 %v435
      %642 = vmatprep.subr.mxu0 0.0
      %643 = vmatpush1.msra.mxu0 %v434
      %644 = vmatprep.subr.mxu0 0.0
      %645 = vmatpush2.msra.mxu0 0.0
      %646 = vmatprep.subr.mxu0 0.0
      %647 = vmatpush2.msra.mxu0 0.0
      %648 = vmatprep.subr.mxu0 0.0
      %649 = vmatpush2.msra.mxu0 0.0
      %650 = vmatprep.subr.mxu0 0.0
      %651 = vmatpush2.msra.mxu0 0.0
      %652 = vmatprep.subr.mxu0 0.0
      %653 = vmatpush2.msra.mxu0 0.0
      %654 = vmatprep.subr.mxu0 0.0
      %655 = vmatpush2.msra.mxu0 0.0
      %656 = vmatprep.subr.mxu0 0.0
      %657 = vmatpush2.msra.mxu0 0.0
      %658 = vmatprep.subr.mxu0 0.0
      %659 = vmatpush2.msra.mxu0 0.0
      %660 = vmatprep.subr.mxu0 0.0
      %661 = vmatpush2.msra.mxu0 0.0
      %662 = vmatprep.subr.mxu0 0.0
      %663 = vmatpush2.msra.mxu0 0.0
      %664 = vmatprep.subr.mxu0 0.0
      %665 = vmatpush2.msra.mxu0 0.0
      %666 = vmatprep.subr.mxu0 0.0
      %667 = vmatpush2.msra.mxu0 0.0
      %668 = vmatprep.subr.mxu0 0.0
      %669 = vmatpush2.msra.mxu0 0.0
      %670 = vmatprep.subr.mxu0 0.0
      %671 = vmatpush2.msra.mxu0 0.0
      %672 = vmatprep.subr.mxu0 0.0
      %673 = vmatpush2.msra.mxu0 0.0
      %674 = vmatprep.subr.mxu0 0.0
      %675 = vmatpush2.msra.mxu0 0.0
      %676 = vmatprep.mubr.f32.mxu0 0.0
      %677 = vmatmul.mubr.f32.gmra.mxu0 %v589
      %v678 = vpop.f32.mrf.mxu0
      %v679 = vadd.f32 %v550, %v678
      %v680 = vpop.f32.mrf.mxu0
      %681 = vmatprep.mubr.f32.mxu0 0.0
      %682 = vmatmul.mubr.f32.gmra.mxu0 %v592
      %v683 = vpop.f32.mrf.mxu0
      %v684 = vadd.f32 %v555, %v683
      %v685 = vpop.f32.mrf.mxu0
      %686 = vmatprep.mubr.f32.mxu0 0.0
      %687 = vmatmul.mubr.f32.gmra.mxu0 %v595
      %v688 = vpop.f32.mrf.mxu0
      %v689 = vadd.f32 %v560, %v688
      %v690 = vpop.f32.mrf.mxu0
      %691 = vmatprep.mubr.f32.mxu0 0.0
      %692 = vmatmul.mubr.f32.gmra.mxu0 %v598
      %v693 = vpop.f32.mrf.mxu0
      %v694 = vadd.f32 %v565, %v693
      %v695 = vpop.f32.mrf.mxu0
      %696 = vmatprep.mubr.f32.mxu0 0.0
      %697 = vmatmul.mubr.f32.gmra.mxu0 %v601
      %v698 = vpop.f32.mrf.mxu0
      %v699 = vadd.f32 %v570, %v698
      %v700 = vpop.f32.mrf.mxu0
      %701 = vmatprep.mubr.f32.mxu0 0.0
      %702 = vmatmul.mubr.f32.gmra.mxu0 %v604
      %v703 = vpop.f32.mrf.mxu0
      %v704 = vadd.f32 %v575, %v703
      %v705 = vpop.f32.mrf.mxu0
      %706 = vmatprep.mubr.f32.mxu0 0.0
      %707 = vmatmul.mubr.f32.gmra.mxu0 %v607
      %v708 = vpop.f32.mrf.mxu0
      %v709 = vadd.f32 %v580, %v708
      %v710 = vpop.f32.mrf.mxu0
      %711 = vmatprep.mubr.f32.mxu0 0.0
      %712 = vmatmul.mubr.f32.gmra.mxu0 %v610
      %v713 = vpop.f32.mrf.mxu0
      %v714 = vadd.f32 %v585, %v713
      %v715 = vpop.f32.mrf.mxu0
      %716 = vdwg.mxu0
      %v717 = vld [vmem:[#allocation2 + $0x2] sm:$0xff]
      %v718 = vld [vmem:[#allocation2 + $0x12] sm:$0xff]
      %v719 = vld [vmem:[#allocation2 + $0x22] sm:$0xff]
      %v720 = vld [vmem:[#allocation2 + $0x32] sm:$0xff]
      %v721 = vld [vmem:[#allocation2 + $0x42] sm:$0xff]
      %v722 = vld [vmem:[#allocation2 + $0x52] sm:$0xff]
      %v723 = vld [vmem:[#allocation2 + $0x62] sm:$0xff]
      %v724 = vld [vmem:[#allocation2 + $0x72] sm:$0xff]
      %s725 = scalar_lea.vmem %s1, 128
      %v726 = vld [vmem:[%s725] sm:$0xff]
      %v727 = vld [vmem:[%s725 + $0x8] sm:$0xff]
      %v728 = vld [vmem:[%s725 + $0x10] sm:$0xff]
      %v729 = vld [vmem:[%s725 + $0x18] sm:$0xff]
      %v730 = vld [vmem:[%s725 + $0x20] sm:$0xff]
      %v731 = vld [vmem:[%s725 + $0x28] sm:$0xff]
      %v732 = vld [vmem:[%s725 + $0x30] sm:$0xff]
      %v733 = vld [vmem:[%s725 + $0x38] sm:$0xff]
      %v735 = vsel %vm395, %v717, 0
      %v738 = vsel %vm395, %v718, 0
      %v741 = vsel %vm395, %v719, 0
      %v744 = vsel %vm395, %v720, 0
      %v747 = vsel %vm395, %v721, 0
      %v750 = vsel %vm395, %v722, 0
      %v753 = vsel %vm395, %v723, 0
      %v756 = vsel %vm395, %v724, 0
      %758 = vmatprep.subr.mxu0 0.0
      %759 = vmatpush1.msra.mxu0 0.0
      %760 = vmatprep.subr.mxu0 0.0
      %761 = vmatpush1.msra.mxu0 0.0
      %762 = vmatprep.subr.mxu0 0.0
      %763 = vmatpush1.msra.mxu0 0.0
      %764 = vmatprep.subr.mxu0 0.0
      %765 = vmatpush1.msra.mxu0 0.0
      %766 = vmatprep.subr.mxu0 0.0
      %767 = vmatpush1.msra.mxu0 0.0
      %768 = vmatprep.subr.mxu0 0.0
      %769 = vmatpush1.msra.mxu0 0.0
      %770 = vmatprep.subr.mxu0 0.0
      %771 = vmatpush1.msra.mxu0 0.0
      %772 = vmatprep.subr.mxu0 0.0
      %773 = vmatpush1.msra.mxu0 0.0
      %774 = vmatprep.subr.mxu0 0.0
      %775 = vmatpush1.msra.mxu0 %v733
      %776 = vmatprep.subr.mxu0 0.0
      %777 = vmatpush1.msra.mxu0 %v732
      %778 = vmatprep.subr.mxu0 0.0
      %779 = vmatpush1.msra.mxu0 %v731
      %780 = vmatprep.subr.mxu0 0.0
      %781 = vmatpush1.msra.mxu0 %v730
      %782 = vmatprep.subr.mxu0 0.0
      %783 = vmatpush1.msra.mxu0 %v729
      %784 = vmatprep.subr.mxu0 0.0
      %785 = vmatpush1.msra.mxu0 %v728
      %786 = vmatprep.subr.mxu0 0.0
      %787 = vmatpush1.msra.mxu0 %v727
      %788 = vmatprep.subr.mxu0 0.0
      %789 = vmatpush1.msra.mxu0 %v726
      %790 = vmatprep.subr.mxu0 0.0
      %791 = vmatpush2.msra.mxu0 0.0
      %792 = vmatprep.subr.mxu0 0.0
      %793 = vmatpush2.msra.mxu0 0.0
      %794 = vmatprep.subr.mxu0 0.0
      %795 = vmatpush2.msra.mxu0 0.0
      %796 = vmatprep.subr.mxu0 0.0
      %797 = vmatpush2.msra.mxu0 0.0
      %798 = vmatprep.subr.mxu0 0.0
      %799 = vmatpush2.msra.mxu0 0.0
      %800 = vmatprep.subr.mxu0 0.0
      %801 = vmatpush2.msra.mxu0 0.0
      %802 = vmatprep.subr.mxu0 0.0
      %803 = vmatpush2.msra.mxu0 0.0
      %804 = vmatprep.subr.mxu0 0.0
      %805 = vmatpush2.msra.mxu0 0.0
      %806 = vmatprep.subr.mxu0 0.0
      %807 = vmatpush2.msra.mxu0 0.0
      %808 = vmatprep.subr.mxu0 0.0
      %809 = vmatpush2.msra.mxu0 0.0
      %810 = vmatprep.subr.mxu0 0.0
      %811 = vmatpush2.msra.mxu0 0.0
      %812 = vmatprep.subr.mxu0 0.0
      %813 = vmatpush2.msra.mxu0 0.0
      %814 = vmatprep.subr.mxu0 0.0
      %815 = vmatpush2.msra.mxu0 0.0
      %816 = vmatprep.subr.mxu0 0.0
      %817 = vmatpush2.msra.mxu0 0.0
      %818 = vmatprep.subr.mxu0 0.0
      %819 = vmatpush2.msra.mxu0 0.0
      %820 = vmatprep.subr.mxu0 0.0
      %821 = vmatpush2.msra.mxu0 0.0
      %822 = vmatprep.mubr.f32.mxu0 0.0
      %823 = vmatmul.mubr.f32.gmra.mxu0 %v735
      %v824 = vpop.f32.mrf.mxu0
      %v825 = vadd.f32 0.0, %v824
      %v826 = vpop.f32.mrf.mxu0
      %827 = vmatprep.mubr.f32.mxu0 0.0
      %828 = vmatmul.mubr.f32.gmra.mxu0 %v738
      %v829 = vpop.f32.mrf.mxu0
      %v830 = vadd.f32 0.0, %v829
      %v831 = vpop.f32.mrf.mxu0
      %832 = vmatprep.mubr.f32.mxu0 0.0
      %833 = vmatmul.mubr.f32.gmra.mxu0 %v741
      %v834 = vpop.f32.mrf.mxu0
      %v835 = vadd.f32 0.0, %v834
      %v836 = vpop.f32.mrf.mxu0
      %837 = vmatprep.mubr.f32.mxu0 0.0
      %838 = vmatmul.mubr.f32.gmra.mxu0 %v744
      %v839 = vpop.f32.mrf.mxu0
      %v840 = vadd.f32 0.0, %v839
      %v841 = vpop.f32.mrf.mxu0
      %842 = vmatprep.mubr.f32.mxu0 0.0
      %843 = vmatmul.mubr.f32.gmra.mxu0 %v747
      %v844 = vpop.f32.mrf.mxu0
      %v845 = vadd.f32 0.0, %v844
      %v846 = vpop.f32.mrf.mxu0
      %847 = vmatprep.mubr.f32.mxu0 0.0
      %848 = vmatmul.mubr.f32.gmra.mxu0 %v750
      %v849 = vpop.f32.mrf.mxu0
      %v850 = vadd.f32 0.0, %v849
      %v851 = vpop.f32.mrf.mxu0
      %852 = vmatprep.mubr.f32.mxu0 0.0
      %853 = vmatmul.mubr.f32.gmra.mxu0 %v753
      %v854 = vpop.f32.mrf.mxu0
      %v855 = vadd.f32 0.0, %v854
      %v856 = vpop.f32.mrf.mxu0
      %857 = vmatprep.mubr.f32.mxu0 0.0
      %858 = vmatmul.mubr.f32.gmra.mxu0 %v756
      %v859 = vpop.f32.mrf.mxu0
      %v860 = vadd.f32 0.0, %v859
      %v861 = vpop.f32.mrf.mxu0
      %862 = vdwg.mxu0
      %v863 = vadd.f32 %v679, %v825
      %v864 = vadd.f32 %v684, %v830
      %v865 = vadd.f32 %v689, %v835
      %v866 = vadd.f32 %v694, %v840
      %v867 = vadd.f32 %v699, %v845
      %v868 = vadd.f32 %v704, %v850
      %v869 = vadd.f32 %v709, %v855
      %v870 = vadd.f32 %v714, %v860
      %v871 = vld [vmem:[%s417] sm:$0xff]
      %v872 = vld [vmem:[%s417 + $0x10] sm:$0xff]
      %v873 = vld [vmem:[%s417 + $0x20] sm:$0xff]
      %v874 = vld [vmem:[%s417 + $0x30] sm:$0xff]
      %v875 = vld [vmem:[%s417 + $0x40] sm:$0xff]
      %v876 = vld [vmem:[%s417 + $0x50] sm:$0xff]
      %v877 = vld [vmem:[%s417 + $0x60] sm:$0xff]
      %v878 = vld [vmem:[%s417 + $0x70] sm:$0xff]
      %s879 = scalar_lea.vmem %s1, 192
      %v880 = vld [vmem:[%s879] sm:$0xff]
      %v881 = vld [vmem:[%s879 + $0x8] sm:$0xff]
      %v882 = vld [vmem:[%s879 + $0x10] sm:$0xff]
      %v883 = vld [vmem:[%s879 + $0x18] sm:$0xff]
      %v884 = vld [vmem:[%s879 + $0x20] sm:$0xff]
      %v885 = vld [vmem:[%s879 + $0x28] sm:$0xff]
      %v886 = vld [vmem:[%s879 + $0x30] sm:$0xff]
      %v887 = vld [vmem:[%s879 + $0x38] sm:$0xff]
      %v889 = vsel %vm395, %v871, 0
      %v892 = vsel %vm395, %v872, 0
      %v895 = vsel %vm395, %v873, 0
      %v898 = vsel %vm395, %v874, 0
      %v901 = vsel %vm395, %v875, 0
      %v904 = vsel %vm395, %v876, 0
      %v907 = vsel %vm395, %v877, 0
      %v910 = vsel %vm395, %v878, 0
      %912 = vmatprep.subr.mxu0 0.0
      %913 = vmatpush1.msra.mxu0 0.0
      %914 = vmatprep.subr.mxu0 0.0
      %915 = vmatpush1.msra.mxu0 0.0
      %916 = vmatprep.subr.mxu0 0.0
      %917 = vmatpush1.msra.mxu0 0.0
      %918 = vmatprep.subr.mxu0 0.0
      %919 = vmatpush1.msra.mxu0 0.0
      %920 = vmatprep.subr.mxu0 0.0
      %921 = vmatpush1.msra.mxu0 0.0
      %922 = vmatprep.subr.mxu0 0.0
      %923 = vmatpush1.msra.mxu0 0.0
      %924 = vmatprep.subr.mxu0 0.0
      %925 = vmatpush1.msra.mxu0 0.0
      %926 = vmatprep.subr.mxu0 0.0
      %927 = vmatpush1.msra.mxu0 0.0
      %928 = vmatprep.subr.mxu0 0.0
      %929 = vmatpush1.msra.mxu0 %v887
      %930 = vmatprep.subr.mxu0 0.0
      %931 = vmatpush1.msra.mxu0 %v886
      %932 = vmatprep.subr.mxu0 0.0
      %933 = vmatpush1.msra.mxu0 %v885
      %934 = vmatprep.subr.mxu0 0.0
      %935 = vmatpush1.msra.mxu0 %v884
      %936 = vmatprep.subr.mxu0 0.0
      %937 = vmatpush1.msra.mxu0 %v883
      %938 = vmatprep.subr.mxu0 0.0
      %939 = vmatpush1.msra.mxu0 %v882
      %940 = vmatprep.subr.mxu0 0.0
      %941 = vmatpush1.msra.mxu0 %v881
      %942 = vmatprep.subr.mxu0 0.0
      %943 = vmatpush1.msra.mxu0 %v880
      %944 = vmatprep.subr.mxu0 0.0
      %945 = vmatpush2.msra.mxu0 0.0
      %946 = vmatprep.subr.mxu0 0.0
      %947 = vmatpush2.msra.mxu0 0.0
      %948 = vmatprep.subr.mxu0 0.0
      %949 = vmatpush2.msra.mxu0 0.0
      %950 = vmatprep.subr.mxu0 0.0
      %951 = vmatpush2.msra.mxu0 0.0
      %952 = vmatprep.subr.mxu0 0.0
      %953 = vmatpush2.msra.mxu0 0.0
      %954 = vmatprep.subr.mxu0 0.0
      %955 = vmatpush2.msra.mxu0 0.0
      %956 = vmatprep.subr.mxu0 0.0
      %957 = vmatpush2.msra.mxu0 0.0
      %958 = vmatprep.subr.mxu0 0.0
      %959 = vmatpush2.msra.mxu0 0.0
      %960 = vmatprep.subr.mxu0 0.0
      %961 = vmatpush2.msra.mxu0 0.0
      %962 = vmatprep.subr.mxu0 0.0
      %963 = vmatpush2.msra.mxu0 0.0
      %964 = vmatprep.subr.mxu0 0.0
      %965 = vmatpush2.msra.mxu0 0.0
      %966 = vmatprep.subr.mxu0 0.0
      %967 = vmatpush2.msra.mxu0 0.0
      %968 = vmatprep.subr.mxu0 0.0
      %969 = vmatpush2.msra.mxu0 0.0
      %970 = vmatprep.subr.mxu0 0.0
      %971 = vmatpush2.msra.mxu0 0.0
      %972 = vmatprep.subr.mxu0 0.0
      %973 = vmatpush2.msra.mxu0 0.0
      %974 = vmatprep.subr.mxu0 0.0
      %975 = vmatpush2.msra.mxu0 0.0
      %976 = vmatprep.mubr.f32.mxu0 0.0
      %977 = vmatmul.mubr.f32.gmra.mxu0 %v889
      %v978 = vpop.f32.mrf.mxu0
      %v979 = vadd.f32 0.0, %v978
      %v980 = vpop.f32.mrf.mxu0
      %981 = vmatprep.mubr.f32.mxu0 0.0
      %982 = vmatmul.mubr.f32.gmra.mxu0 %v892
      %v983 = vpop.f32.mrf.mxu0
      %v984 = vadd.f32 0.0, %v983
      %v985 = vpop.f32.mrf.mxu0
      %986 = vmatprep.mubr.f32.mxu0 0.0
      %987 = vmatmul.mubr.f32.gmra.mxu0 %v895
      %v988 = vpop.f32.mrf.mxu0
      %v989 = vadd.f32 0.0, %v988
      %v990 = vpop.f32.mrf.mxu0
      %991 = vmatprep.mubr.f32.mxu0 0.0
      %992 = vmatmul.mubr.f32.gmra.mxu0 %v898
      %v993 = vpop.f32.mrf.mxu0
      %v994 = vadd.f32 0.0, %v993
      %v995 = vpop.f32.mrf.mxu0
      %996 = vmatprep.mubr.f32.mxu0 0.0
      %997 = vmatmul.mubr.f32.gmra.mxu0 %v901
      %v998 = vpop.f32.mrf.mxu0
      %v999 = vadd.f32 0.0, %v998
      %v1000 = vpop.f32.mrf.mxu0
      %1001 = vmatprep.mubr.f32.mxu0 0.0
      %1002 = vmatmul.mubr.f32.gmra.mxu0 %v904
      %v1003 = vpop.f32.mrf.mxu0
      %v1004 = vadd.f32 0.0, %v1003
      %v1005 = vpop.f32.mrf.mxu0
      %1006 = vmatprep.mubr.f32.mxu0 0.0
      %1007 = vmatmul.mubr.f32.gmra.mxu0 %v907
      %v1008 = vpop.f32.mrf.mxu0
      %v1009 = vadd.f32 0.0, %v1008
      %v1010 = vpop.f32.mrf.mxu0
      %1011 = vmatprep.mubr.f32.mxu0 0.0
      %1012 = vmatmul.mubr.f32.gmra.mxu0 %v910
      %v1013 = vpop.f32.mrf.mxu0
      %v1014 = vadd.f32 0.0, %v1013
      %v1015 = vpop.f32.mrf.mxu0
      %1016 = vdwg.mxu0
      %v1017 = vadd.f32 %v863, %v979
      %v1018 = vadd.f32 %v864, %v984
      %v1019 = vadd.f32 %v865, %v989
      %v1020 = vadd.f32 %v866, %v994
      %v1021 = vadd.f32 %v867, %v999
      %v1022 = vadd.f32 %v868, %v1004
      %v1023 = vadd.f32 %v869, %v1009
      %v1024 = vadd.f32 %v870, %v1014
      %v1025 = vld [vmem:[%s417 + $0x1] sm:$0xff]
      %v1026 = vld [vmem:[%s417 + $0x11] sm:$0xff]
      %v1027 = vld [vmem:[%s417 + $0x21] sm:$0xff]
      %v1028 = vld [vmem:[%s417 + $0x31] sm:$0xff]
      %v1029 = vld [vmem:[%s417 + $0x41] sm:$0xff]
      %v1030 = vld [vmem:[%s417 + $0x51] sm:$0xff]
      %v1031 = vld [vmem:[%s417 + $0x61] sm:$0xff]
      %v1032 = vld [vmem:[%s417 + $0x71] sm:$0xff]
      %s1033 = scalar_lea.vmem %s1, 256
      %v1034 = vld [vmem:[%s1033] sm:$0xff]
      %v1035 = vld [vmem:[%s1033 + $0x8] sm:$0xff]
      %v1036 = vld [vmem:[%s1033 + $0x10] sm:$0xff]
      %v1037 = vld [vmem:[%s1033 + $0x18] sm:$0xff]
      %v1038 = vld [vmem:[%s1033 + $0x20] sm:$0xff]
      %v1039 = vld [vmem:[%s1033 + $0x28] sm:$0xff]
      %v1040 = vld [vmem:[%s1033 + $0x30] sm:$0xff]
      %v1041 = vld [vmem:[%s1033 + $0x38] sm:$0xff]
      %v1043 = vsel %vm395, %v1025, 0
      %v1046 = vsel %vm395, %v1026, 0
      %v1049 = vsel %vm395, %v1027, 0
      %v1052 = vsel %vm395, %v1028, 0
      %v1055 = vsel %vm395, %v1029, 0
      %v1058 = vsel %vm395, %v1030, 0
      %v1061 = vsel %vm395, %v1031, 0
      %v1064 = vsel %vm395, %v1032, 0
      %1066 = vmatprep.subr.mxu0 0.0
      %1067 = vmatpush1.msra.mxu0 0.0
      %1068 = vmatprep.subr.mxu0 0.0
      %1069 = vmatpush1.msra.mxu0 0.0
      %1070 = vmatprep.subr.mxu0 0.0
      %1071 = vmatpush1.msra.mxu0 0.0
      %1072 = vmatprep.subr.mxu0 0.0
      %1073 = vmatpush1.msra.mxu0 0.0
      %1074 = vmatprep.subr.mxu0 0.0
      %1075 = vmatpush1.msra.mxu0 0.0
      %1076 = vmatprep.subr.mxu0 0.0
      %1077 = vmatpush1.msra.mxu0 0.0
      %1078 = vmatprep.subr.mxu0 0.0
      %1079 = vmatpush1.msra.mxu0 0.0
      %1080 = vmatprep.subr.mxu0 0.0
      %1081 = vmatpush1.msra.mxu0 0.0
      %1082 = vmatprep.subr.mxu0 0.0
      %1083 = vmatpush1.msra.mxu0 %v1041
      %1084 = vmatprep.subr.mxu0 0.0
      %1085 = vmatpush1.msra.mxu0 %v1040
      %1086 = vmatprep.subr.mxu0 0.0
      %1087 = vmatpush1.msra.mxu0 %v1039
      %1088 = vmatprep.subr.mxu0 0.0
      %1089 = vmatpush1.msra.mxu0 %v1038
      %1090 = vmatprep.subr.mxu0 0.0
      %1091 = vmatpush1.msra.mxu0 %v1037
      %1092 = vmatprep.subr.mxu0 0.0
      %1093 = vmatpush1.msra.mxu0 %v1036
      %1094 = vmatprep.subr.mxu0 0.0
      %1095 = vmatpush1.msra.mxu0 %v1035
      %1096 = vmatprep.subr.mxu0 0.0
      %1097 = vmatpush1.msra.mxu0 %v1034
      %1098 = vmatprep.subr.mxu0 0.0
      %1099 = vmatpush2.msra.mxu0 0.0
      %1100 = vmatprep.subr.mxu0 0.0
      %1101 = vmatpush2.msra.mxu0 0.0
      %1102 = vmatprep.subr.mxu0 0.0
      %1103 = vmatpush2.msra.mxu0 0.0
      %1104 = vmatprep.subr.mxu0 0.0
      %1105 = vmatpush2.msra.mxu0 0.0
      %1106 = vmatprep.subr.mxu0 0.0
      %1107 = vmatpush2.msra.mxu0 0.0
      %1108 = vmatprep.subr.mxu0 0.0
      %1109 = vmatpush2.msra.mxu0 0.0
      %1110 = vmatprep.subr.mxu0 0.0
      %1111 = vmatpush2.msra.mxu0 0.0
      %1112 = vmatprep.subr.mxu0 0.0
      %1113 = vmatpush2.msra.mxu0 0.0
      %1114 = vmatprep.subr.mxu0 0.0
      %1115 = vmatpush2.msra.mxu0 0.0
      %1116 = vmatprep.subr.mxu0 0.0
      %1117 = vmatpush2.msra.mxu0 0.0
      %1118 = vmatprep.subr.mxu0 0.0
      %1119 = vmatpush2.msra.mxu0 0.0
      %1120 = vmatprep.subr.mxu0 0.0
      %1121 = vmatpush2.msra.mxu0 0.0
      %1122 = vmatprep.subr.mxu0 0.0
      %1123 = vmatpush2.msra.mxu0 0.0
      %1124 = vmatprep.subr.mxu0 0.0
      %1125 = vmatpush2.msra.mxu0 0.0
      %1126 = vmatprep.subr.mxu0 0.0
      %1127 = vmatpush2.msra.mxu0 0.0
      %1128 = vmatprep.subr.mxu0 0.0
      %1129 = vmatpush2.msra.mxu0 0.0
      %1130 = vmatprep.mubr.f32.mxu0 0.0
      %1131 = vmatmul.mubr.f32.gmra.mxu0 %v1043
      %v1132 = vpop.f32.mrf.mxu0
      %v1133 = vadd.f32 0.0, %v1132
      %v1134 = vpop.f32.mrf.mxu0
      %1135 = vmatprep.mubr.f32.mxu0 0.0
      %1136 = vmatmul.mubr.f32.gmra.mxu0 %v1046
      %v1137 = vpop.f32.mrf.mxu0
      %v1138 = vadd.f32 0.0, %v1137
      %v1139 = vpop.f32.mrf.mxu0
      %1140 = vmatprep.mubr.f32.mxu0 0.0
      %1141 = vmatmul.mubr.f32.gmra.mxu0 %v1049
      %v1142 = vpop.f32.mrf.mxu0
      %v1143 = vadd.f32 0.0, %v1142
      %v1144 = vpop.f32.mrf.mxu0
      %1145 = vmatprep.mubr.f32.mxu0 0.0
      %1146 = vmatmul.mubr.f32.gmra.mxu0 %v1052
      %v1147 = vpop.f32.mrf.mxu0
      %v1148 = vadd.f32 0.0, %v1147
      %v1149 = vpop.f32.mrf.mxu0
      %1150 = vmatprep.mubr.f32.mxu0 0.0
      %1151 = vmatmul.mubr.f32.gmra.mxu0 %v1055
      %v1152 = vpop.f32.mrf.mxu0
      %v1153 = vadd.f32 0.0, %v1152
      %v1154 = vpop.f32.mrf.mxu0
      %1155 = vmatprep.mubr.f32.mxu0 0.0
      %1156 = vmatmul.mubr.f32.gmra.mxu0 %v1058
      %v1157 = vpop.f32.mrf.mxu0
      %v1158 = vadd.f32 0.0, %v1157
      %v1159 = vpop.f32.mrf.mxu0
      %1160 = vmatprep.mubr.f32.mxu0 0.0
      %1161 = vmatmul.mubr.f32.gmra.mxu0 %v1061
      %v1162 = vpop.f32.mrf.mxu0
      %v1163 = vadd.f32 0.0, %v1162
      %v1164 = vpop.f32.mrf.mxu0
      %1165 = vmatprep.mubr.f32.mxu0 0.0
      %1166 = vmatmul.mubr.f32.gmra.mxu0 %v1064
      %v1167 = vpop.f32.mrf.mxu0
      %v1168 = vadd.f32 0.0, %v1167
      %v1169 = vpop.f32.mrf.mxu0
      %1170 = vdwg.mxu0
      %v1171 = vadd.f32 %v1017, %v1133
      %v1172 = vadd.f32 %v1018, %v1138
      %v1173 = vadd.f32 %v1019, %v1143
      %v1174 = vadd.f32 %v1020, %v1148
      %v1175 = vadd.f32 %v1021, %v1153
      %v1176 = vadd.f32 %v1022, %v1158
      %v1177 = vadd.f32 %v1023, %v1163
      %v1178 = vadd.f32 %v1024, %v1168
      %v1179 = vld [vmem:[%s417 + $0x2] sm:$0xff]
      %v1180 = vld [vmem:[%s417 + $0x12] sm:$0xff]
      %v1181 = vld [vmem:[%s417 + $0x22] sm:$0xff]
      %v1182 = vld [vmem:[%s417 + $0x32] sm:$0xff]
      %v1183 = vld [vmem:[%s417 + $0x42] sm:$0xff]
      %v1184 = vld [vmem:[%s417 + $0x52] sm:$0xff]
      %v1185 = vld [vmem:[%s417 + $0x62] sm:$0xff]
      %v1186 = vld [vmem:[%s417 + $0x72] sm:$0xff]
      %s1187 = scalar_lea.vmem %s1, 320
      %v1188 = vld [vmem:[%s1187] sm:$0xff]
      %v1189 = vld [vmem:[%s1187 + $0x8] sm:$0xff]
      %v1190 = vld [vmem:[%s1187 + $0x10] sm:$0xff]
      %v1191 = vld [vmem:[%s1187 + $0x18] sm:$0xff]
      %v1192 = vld [vmem:[%s1187 + $0x20] sm:$0xff]
      %v1193 = vld [vmem:[%s1187 + $0x28] sm:$0xff]
      %v1194 = vld [vmem:[%s1187 + $0x30] sm:$0xff]
      %v1195 = vld [vmem:[%s1187 + $0x38] sm:$0xff]
      %v1197 = vsel %vm395, %v1179, 0
      %v1200 = vsel %vm395, %v1180, 0
      %v1203 = vsel %vm395, %v1181, 0
      %v1206 = vsel %vm395, %v1182, 0
      %v1209 = vsel %vm395, %v1183, 0
      %v1212 = vsel %vm395, %v1184, 0
      %v1215 = vsel %vm395, %v1185, 0
      %v1218 = vsel %vm395, %v1186, 0
      %1220 = vmatprep.subr.mxu0 0.0
      %1221 = vmatpush1.msra.mxu0 0.0
      %1222 = vmatprep.subr.mxu0 0.0
      %1223 = vmatpush1.msra.mxu0 0.0
      %1224 = vmatprep.subr.mxu0 0.0
      %1225 = vmatpush1.msra.mxu0 0.0
      %1226 = vmatprep.subr.mxu0 0.0
      %1227 = vmatpush1.msra.mxu0 0.0
      %1228 = vmatprep.subr.mxu0 0.0
      %1229 = vmatpush1.msra.mxu0 0.0
      %1230 = vmatprep.subr.mxu0 0.0
      %1231 = vmatpush1.msra.mxu0 0.0
      %1232 = vmatprep.subr.mxu0 0.0
      %1233 = vmatpush1.msra.mxu0 0.0
      %1234 = vmatprep.subr.mxu0 0.0
      %1235 = vmatpush1.msra.mxu0 0.0
      %1236 = vmatprep.subr.mxu0 0.0
      %1237 = vmatpush1.msra.mxu0 %v1195
      %1238 = vmatprep.subr.mxu0 0.0
      %1239 = vmatpush1.msra.mxu0 %v1194
      %1240 = vmatprep.subr.mxu0 0.0
      %1241 = vmatpush1.msra.mxu0 %v1193
      %1242 = vmatprep.subr.mxu0 0.0
      %1243 = vmatpush1.msra.mxu0 %v1192
      %1244 = vmatprep.subr.mxu0 0.0
      %1245 = vmatpush1.msra.mxu0 %v1191
      %1246 = vmatprep.subr.mxu0 0.0
      %1247 = vmatpush1.msra.mxu0 %v1190
      %1248 = vmatprep.subr.mxu0 0.0
      %1249 = vmatpush1.msra.mxu0 %v1189
      %1250 = vmatprep.subr.mxu0 0.0
      %1251 = vmatpush1.msra.mxu0 %v1188
      %1252 = vmatprep.subr.mxu0 0.0
      %1253 = vmatpush2.msra.mxu0 0.0
      %1254 = vmatprep.subr.mxu0 0.0
      %1255 = vmatpush2.msra.mxu0 0.0
      %1256 = vmatprep.subr.mxu0 0.0
      %1257 = vmatpush2.msra.mxu0 0.0
      %1258 = vmatprep.subr.mxu0 0.0
      %1259 = vmatpush2.msra.mxu0 0.0
      %1260 = vmatprep.subr.mxu0 0.0
      %1261 = vmatpush2.msra.mxu0 0.0
      %1262 = vmatprep.subr.mxu0 0.0
      %1263 = vmatpush2.msra.mxu0 0.0
      %1264 = vmatprep.subr.mxu0 0.0
      %1265 = vmatpush2.msra.mxu0 0.0
      %1266 = vmatprep.subr.mxu0 0.0
      %1267 = vmatpush2.msra.mxu0 0.0
      %1268 = vmatprep.subr.mxu0 0.0
      %1269 = vmatpush2.msra.mxu0 0.0
      %1270 = vmatprep.subr.mxu0 0.0
      %1271 = vmatpush2.msra.mxu0 0.0
      %1272 = vmatprep.subr.mxu0 0.0
      %1273 = vmatpush2.msra.mxu0 0.0
      %1274 = vmatprep.subr.mxu0 0.0
      %1275 = vmatpush2.msra.mxu0 0.0
      %1276 = vmatprep.subr.mxu0 0.0
      %1277 = vmatpush2.msra.mxu0 0.0
      %1278 = vmatprep.subr.mxu0 0.0
      %1279 = vmatpush2.msra.mxu0 0.0
      %1280 = vmatprep.subr.mxu0 0.0
      %1281 = vmatpush2.msra.mxu0 0.0
      %1282 = vmatprep.subr.mxu0 0.0
      %1283 = vmatpush2.msra.mxu0 0.0
      %1284 = vmatprep.mubr.f32.mxu0 0.0
      %1285 = vmatmul.mubr.f32.gmra.mxu0 %v1197
      %v1286 = vpop.f32.mrf.mxu0
      %v1287 = vadd.f32 0.0, %v1286
      %v1288 = vpop.f32.mrf.mxu0
      %1289 = vmatprep.mubr.f32.mxu0 0.0
      %1290 = vmatmul.mubr.f32.gmra.mxu0 %v1200
      %v1291 = vpop.f32.mrf.mxu0
      %v1292 = vadd.f32 0.0, %v1291
      %v1293 = vpop.f32.mrf.mxu0
      %1294 = vmatprep.mubr.f32.mxu0 0.0
      %1295 = vmatmul.mubr.f32.gmra.mxu0 %v1203
      %v1296 = vpop.f32.mrf.mxu0
      %v1297 = vadd.f32 0.0, %v1296
      %v1298 = vpop.f32.mrf.mxu0
      %1299 = vmatprep.mubr.f32.mxu0 0.0
      %1300 = vmatmul.mubr.f32.gmra.mxu0 %v1206
      %v1301 = vpop.f32.mrf.mxu0
      %v1302 = vadd.f32 0.0, %v1301
      %v1303 = vpop.f32.mrf.mxu0
      %1304 = vmatprep.mubr.f32.mxu0 0.0
      %1305 = vmatmul.mubr.f32.gmra.mxu0 %v1209
      %v1306 = vpop.f32.mrf.mxu0
      %v1307 = vadd.f32 0.0, %v1306
      %v1308 = vpop.f32.mrf.mxu0
      %1309 = vmatprep.mubr.f32.mxu0 0.0
      %1310 = vmatmul.mubr.f32.gmra.mxu0 %v1212
      %v1311 = vpop.f32.mrf.mxu0
      %v1312 = vadd.f32 0.0, %v1311
      %v1313 = vpop.f32.mrf.mxu0
      %1314 = vmatprep.mubr.f32.mxu0 0.0
      %1315 = vmatmul.mubr.f32.gmra.mxu0 %v1215
      %v1316 = vpop.f32.mrf.mxu0
      %v1317 = vadd.f32 0.0, %v1316
      %v1318 = vpop.f32.mrf.mxu0
      %1319 = vmatprep.mubr.f32.mxu0 0.0
      %1320 = vmatmul.mubr.f32.gmra.mxu0 %v1218
      %v1321 = vpop.f32.mrf.mxu0
      %v1322 = vadd.f32 0.0, %v1321
      %v1323 = vpop.f32.mrf.mxu0
      %1324 = vdwg.mxu0
      %v1325 = vadd.f32 %v1171, %v1287
      %v1326 = vadd.f32 %v1172, %v1292
      %v1327 = vadd.f32 %v1173, %v1297
      %v1328 = vadd.f32 %v1174, %v1302
      %v1329 = vadd.f32 %v1175, %v1307
      %v1330 = vadd.f32 %v1176, %v1312
      %v1331 = vadd.f32 %v1177, %v1317
      %v1332 = vadd.f32 %v1178, %v1322
      %s1333 = scalar_lea.vmem [#allocation2], 32
      %v1334 = vld [vmem:[%s1333] sm:$0xff]
      %v1335 = vld [vmem:[%s1333 + $0x10] sm:$0xff]
      %v1336 = vld [vmem:[%s1333 + $0x20] sm:$0xff]
      %v1337 = vld [vmem:[%s1333 + $0x30] sm:$0xff]
      %v1338 = vld [vmem:[%s1333 + $0x40] sm:$0xff]
      %v1339 = vld [vmem:[%s1333 + $0x50] sm:$0xff]
      %v1340 = vld [vmem:[%s1333 + $0x60] sm:$0xff]
      %v1341 = vld [vmem:[%s1333 + $0x70] sm:$0xff]
      %s1342 = scalar_lea.vmem %s1, 384
      %v1343 = vld [vmem:[%s1342] sm:$0xff]
      %v1344 = vld [vmem:[%s1342 + $0x8] sm:$0xff]
      %v1345 = vld [vmem:[%s1342 + $0x10] sm:$0xff]
      %v1346 = vld [vmem:[%s1342 + $0x18] sm:$0xff]
      %v1347 = vld [vmem:[%s1342 + $0x20] sm:$0xff]
      %v1348 = vld [vmem:[%s1342 + $0x28] sm:$0xff]
      %v1349 = vld [vmem:[%s1342 + $0x30] sm:$0xff]
      %v1350 = vld [vmem:[%s1342 + $0x38] sm:$0xff]
      %v1352 = vsel %vm395, %v1334, 0
      %v1355 = vsel %vm395, %v1335, 0
      %v1358 = vsel %vm395, %v1336, 0
      %v1361 = vsel %vm395, %v1337, 0
      %v1364 = vsel %vm395, %v1338, 0
      %v1367 = vsel %vm395, %v1339, 0
      %v1370 = vsel %vm395, %v1340, 0
      %v1373 = vsel %vm395, %v1341, 0
      %1375 = vmatprep.subr.mxu0 0.0
      %1376 = vmatpush1.msra.mxu0 0.0
      %1377 = vmatprep.subr.mxu0 0.0
      %1378 = vmatpush1.msra.mxu0 0.0
      %1379 = vmatprep.subr.mxu0 0.0
      %1380 = vmatpush1.msra.mxu0 0.0
      %1381 = vmatprep.subr.mxu0 0.0
      %1382 = vmatpush1.msra.mxu0 0.0
      %1383 = vmatprep.subr.mxu0 0.0
      %1384 = vmatpush1.msra.mxu0 0.0
      %1385 = vmatprep.subr.mxu0 0.0
      %1386 = vmatpush1.msra.mxu0 0.0
      %1387 = vmatprep.subr.mxu0 0.0
      %1388 = vmatpush1.msra.mxu0 0.0
      %1389 = vmatprep.subr.mxu0 0.0
      %1390 = vmatpush1.msra.mxu0 0.0
      %1391 = vmatprep.subr.mxu0 0.0
      %1392 = vmatpush1.msra.mxu0 %v1350
      %1393 = vmatprep.subr.mxu0 0.0
      %1394 = vmatpush1.msra.mxu0 %v1349
      %1395 = vmatprep.subr.mxu0 0.0
      %1396 = vmatpush1.msra.mxu0 %v1348
      %1397 = vmatprep.subr.mxu0 0.0
      %1398 = vmatpush1.msra.mxu0 %v1347
      %1399 = vmatprep.subr.mxu0 0.0
      %1400 = vmatpush1.msra.mxu0 %v1346
      %1401 = vmatprep.subr.mxu0 0.0
      %1402 = vmatpush1.msra.mxu0 %v1345
      %1403 = vmatprep.subr.mxu0 0.0
      %1404 = vmatpush1.msra.mxu0 %v1344
      %1405 = vmatprep.subr.mxu0 0.0
      %1406 = vmatpush1.msra.mxu0 %v1343
      %1407 = vmatprep.subr.mxu0 0.0
      %1408 = vmatpush2.msra.mxu0 0.0
      %1409 = vmatprep.subr.mxu0 0.0
      %1410 = vmatpush2.msra.mxu0 0.0
      %1411 = vmatprep.subr.mxu0 0.0
      %1412 = vmatpush2.msra.mxu0 0.0
      %1413 = vmatprep.subr.mxu0 0.0
      %1414 = vmatpush2.msra.mxu0 0.0
      %1415 = vmatprep.subr.mxu0 0.0
      %1416 = vmatpush2.msra.mxu0 0.0
      %1417 = vmatprep.subr.mxu0 0.0
      %1418 = vmatpush2.msra.mxu0 0.0
      %1419 = vmatprep.subr.mxu0 0.0
      %1420 = vmatpush2.msra.mxu0 0.0
      %1421 = vmatprep.subr.mxu0 0.0
      %1422 = vmatpush2.msra.mxu0 0.0
      %1423 = vmatprep.subr.mxu0 0.0
      %1424 = vmatpush2.msra.mxu0 0.0
      %1425 = vmatprep.subr.mxu0 0.0
      %1426 = vmatpush2.msra.mxu0 0.0
      %1427 = vmatprep.subr.mxu0 0.0
      %1428 = vmatpush2.msra.mxu0 0.0
      %1429 = vmatprep.subr.mxu0 0.0
      %1430 = vmatpush2.msra.mxu0 0.0
      %1431 = vmatprep.subr.mxu0 0.0
      %1432 = vmatpush2.msra.mxu0 0.0
      %1433 = vmatprep.subr.mxu0 0.0
      %1434 = vmatpush2.msra.mxu0 0.0
      %1435 = vmatprep.subr.mxu0 0.0
      %1436 = vmatpush2.msra.mxu0 0.0
      %1437 = vmatprep.subr.mxu0 0.0
      %1438 = vmatpush2.msra.mxu0 0.0
      %1439 = vmatprep.mubr.f32.mxu0 0.0
      %1440 = vmatmul.mubr.f32.gmra.mxu0 %v1352
      %v1441 = vpop.f32.mrf.mxu0
      %v1442 = vadd.f32 0.0, %v1441
      %v1443 = vpop.f32.mrf.mxu0
      %1444 = vmatprep.mubr.f32.mxu0 0.0
      %1445 = vmatmul.mubr.f32.gmra.mxu0 %v1355
      %v1446 = vpop.f32.mrf.mxu0
      %v1447 = vadd.f32 0.0, %v1446
      %v1448 = vpop.f32.mrf.mxu0
      %1449 = vmatprep.mubr.f32.mxu0 0.0
      %1450 = vmatmul.mubr.f32.gmra.mxu0 %v1358
      %v1451 = vpop.f32.mrf.mxu0
      %v1452 = vadd.f32 0.0, %v1451
      %v1453 = vpop.f32.mrf.mxu0
      %1454 = vmatprep.mubr.f32.mxu0 0.0
      %1455 = vmatmul.mubr.f32.gmra.mxu0 %v1361
      %v1456 = vpop.f32.mrf.mxu0
      %v1457 = vadd.f32 0.0, %v1456
      %v1458 = vpop.f32.mrf.mxu0
      %1459 = vmatprep.mubr.f32.mxu0 0.0
      %1460 = vmatmul.mubr.f32.gmra.mxu0 %v1364
      %v1461 = vpop.f32.mrf.mxu0
      %v1462 = vadd.f32 0.0, %v1461
      %v1463 = vpop.f32.mrf.mxu0
      %1464 = vmatprep.mubr.f32.mxu0 0.0
      %1465 = vmatmul.mubr.f32.gmra.mxu0 %v1367
      %v1466 = vpop.f32.mrf.mxu0
      %v1467 = vadd.f32 0.0, %v1466
      %v1468 = vpop.f32.mrf.mxu0
      %1469 = vmatprep.mubr.f32.mxu0 0.0
      %1470 = vmatmul.mubr.f32.gmra.mxu0 %v1370
      %v1471 = vpop.f32.mrf.mxu0
      %v1472 = vadd.f32 0.0, %v1471
      %v1473 = vpop.f32.mrf.mxu0
      %1474 = vmatprep.mubr.f32.mxu0 0.0
      %1475 = vmatmul.mubr.f32.gmra.mxu0 %v1373
      %v1476 = vpop.f32.mrf.mxu0
      %v1477 = vadd.f32 0.0, %v1476
      %v1478 = vpop.f32.mrf.mxu0
      %1479 = vdwg.mxu0
      %v1480 = vadd.f32 %v1325, %v1442
      %v1481 = vadd.f32 %v1326, %v1447
      %v1482 = vadd.f32 %v1327, %v1452
      %v1483 = vadd.f32 %v1328, %v1457
      %v1484 = vadd.f32 %v1329, %v1462
      %v1485 = vadd.f32 %v1330, %v1467
      %v1486 = vadd.f32 %v1331, %v1472
      %v1487 = vadd.f32 %v1332, %v1477
      %v1488 = vld [vmem:[%s1333 + $0x1] sm:$0xff]
      %v1489 = vld [vmem:[%s1333 + $0x11] sm:$0xff]
      %v1490 = vld [vmem:[%s1333 + $0x21] sm:$0xff]
      %v1491 = vld [vmem:[%s1333 + $0x31] sm:$0xff]
      %v1492 = vld [vmem:[%s1333 + $0x41] sm:$0xff]
      %v1493 = vld [vmem:[%s1333 + $0x51] sm:$0xff]
      %v1494 = vld [vmem:[%s1333 + $0x61] sm:$0xff]
      %v1495 = vld [vmem:[%s1333 + $0x71] sm:$0xff]
      %s1496 = scalar_lea.vmem %s1, 448
      %v1497 = vld [vmem:[%s1496] sm:$0xff]
      %v1498 = vld [vmem:[%s1496 + $0x8] sm:$0xff]
      %v1499 = vld [vmem:[%s1496 + $0x10] sm:$0xff]
      %v1500 = vld [vmem:[%s1496 + $0x18] sm:$0xff]
      %v1501 = vld [vmem:[%s1496 + $0x20] sm:$0xff]
      %v1502 = vld [vmem:[%s1496 + $0x28] sm:$0xff]
      %v1503 = vld [vmem:[%s1496 + $0x30] sm:$0xff]
      %v1504 = vld [vmem:[%s1496 + $0x38] sm:$0xff]
      %v1506 = vsel %vm395, %v1488, 0
      %v1509 = vsel %vm395, %v1489, 0
      %v1512 = vsel %vm395, %v1490, 0
      %v1515 = vsel %vm395, %v1491, 0
      %v1518 = vsel %vm395, %v1492, 0
      %v1521 = vsel %vm395, %v1493, 0
      %v1524 = vsel %vm395, %v1494, 0
      %v1527 = vsel %vm395, %v1495, 0
      %1529 = vmatprep.subr.mxu0 0.0
      %1530 = vmatpush1.msra.mxu0 0.0
      %1531 = vmatprep.subr.mxu0 0.0
      %1532 = vmatpush1.msra.mxu0 0.0
      %1533 = vmatprep.subr.mxu0 0.0
      %1534 = vmatpush1.msra.mxu0 0.0
      %1535 = vmatprep.subr.mxu0 0.0
      %1536 = vmatpush1.msra.mxu0 0.0
      %1537 = vmatprep.subr.mxu0 0.0
      %1538 = vmatpush1.msra.mxu0 0.0
      %1539 = vmatprep.subr.mxu0 0.0
      %1540 = vmatpush1.msra.mxu0 0.0
      %1541 = vmatprep.subr.mxu0 0.0
      %1542 = vmatpush1.msra.mxu0 0.0
      %1543 = vmatprep.subr.mxu0 0.0
      %1544 = vmatpush1.msra.mxu0 0.0
      %1545 = vmatprep.subr.mxu0 0.0
      %1546 = vmatpush1.msra.mxu0 %v1504
      %1547 = vmatprep.subr.mxu0 0.0
      %1548 = vmatpush1.msra.mxu0 %v1503
      %1549 = vmatprep.subr.mxu0 0.0
      %1550 = vmatpush1.msra.mxu0 %v1502
      %1551 = vmatprep.subr.mxu0 0.0
      %1552 = vmatpush1.msra.mxu0 %v1501
      %1553 = vmatprep.subr.mxu0 0.0
      %1554 = vmatpush1.msra.mxu0 %v1500
      %1555 = vmatprep.subr.mxu0 0.0
      %1556 = vmatpush1.msra.mxu0 %v1499
      %1557 = vmatprep.subr.mxu0 0.0
      %1558 = vmatpush1.msra.mxu0 %v1498
      %1559 = vmatprep.subr.mxu0 0.0
      %1560 = vmatpush1.msra.mxu0 %v1497
      %1561 = vmatprep.subr.mxu0 0.0
      %1562 = vmatpush2.msra.mxu0 0.0
      %1563 = vmatprep.subr.mxu0 0.0
      %1564 = vmatpush2.msra.mxu0 0.0
      %1565 = vmatprep.subr.mxu0 0.0
      %1566 = vmatpush2.msra.mxu0 0.0
      %1567 = vmatprep.subr.mxu0 0.0
      %1568 = vmatpush2.msra.mxu0 0.0
      %1569 = vmatprep.subr.mxu0 0.0
      %1570 = vmatpush2.msra.mxu0 0.0
      %1571 = vmatprep.subr.mxu0 0.0
      %1572 = vmatpush2.msra.mxu0 0.0
      %1573 = vmatprep.subr.mxu0 0.0
      %1574 = vmatpush2.msra.mxu0 0.0
      %1575 = vmatprep.subr.mxu0 0.0
      %1576 = vmatpush2.msra.mxu0 0.0
      %1577 = vmatprep.subr.mxu0 0.0
      %1578 = vmatpush2.msra.mxu0 0.0
      %1579 = vmatprep.subr.mxu0 0.0
      %1580 = vmatpush2.msra.mxu0 0.0
      %1581 = vmatprep.subr.mxu0 0.0
      %1582 = vmatpush2.msra.mxu0 0.0
      %1583 = vmatprep.subr.mxu0 0.0
      %1584 = vmatpush2.msra.mxu0 0.0
      %1585 = vmatprep.subr.mxu0 0.0
      %1586 = vmatpush2.msra.mxu0 0.0
      %1587 = vmatprep.subr.mxu0 0.0
      %1588 = vmatpush2.msra.mxu0 0.0
      %1589 = vmatprep.subr.mxu0 0.0
      %1590 = vmatpush2.msra.mxu0 0.0
      %1591 = vmatprep.subr.mxu0 0.0
      %1592 = vmatpush2.msra.mxu0 0.0
      %1593 = vmatprep.mubr.f32.mxu0 0.0
      %1594 = vmatmul.mubr.f32.gmra.mxu0 %v1506
      %v1595 = vpop.f32.mrf.mxu0
      %v1596 = vadd.f32 0.0, %v1595
      %v1597 = vpop.f32.mrf.mxu0
      %1598 = vmatprep.mubr.f32.mxu0 0.0
      %1599 = vmatmul.mubr.f32.gmra.mxu0 %v1509
      %v1600 = vpop.f32.mrf.mxu0
      %v1601 = vadd.f32 0.0, %v1600
      %v1602 = vpop.f32.mrf.mxu0
      %1603 = vmatprep.mubr.f32.mxu0 0.0
      %1604 = vmatmul.mubr.f32.gmra.mxu0 %v1512
      %v1605 = vpop.f32.mrf.mxu0
      %v1606 = vadd.f32 0.0, %v1605
      %v1607 = vpop.f32.mrf.mxu0
      %1608 = vmatprep.mubr.f32.mxu0 0.0
      %1609 = vmatmul.mubr.f32.gmra.mxu0 %v1515
      %v1610 = vpop.f32.mrf.mxu0
      %v1611 = vadd.f32 0.0, %v1610
      %v1612 = vpop.f32.mrf.mxu0
      %1613 = vmatprep.mubr.f32.mxu0 0.0
      %1614 = vmatmul.mubr.f32.gmra.mxu0 %v1518
      %v1615 = vpop.f32.mrf.mxu0
      %v1616 = vadd.f32 0.0, %v1615
      %v1617 = vpop.f32.mrf.mxu0
      %1618 = vmatprep.mubr.f32.mxu0 0.0
      %1619 = vmatmul.mubr.f32.gmra.mxu0 %v1521
      %v1620 = vpop.f32.mrf.mxu0
      %v1621 = vadd.f32 0.0, %v1620
      %v1622 = vpop.f32.mrf.mxu0
      %1623 = vmatprep.mubr.f32.mxu0 0.0
      %1624 = vmatmul.mubr.f32.gmra.mxu0 %v1524
      %v1625 = vpop.f32.mrf.mxu0
      %v1626 = vadd.f32 0.0, %v1625
      %v1627 = vpop.f32.mrf.mxu0
      %1628 = vmatprep.mubr.f32.mxu0 0.0
      %1629 = vmatmul.mubr.f32.gmra.mxu0 %v1527
      %v1630 = vpop.f32.mrf.mxu0
      %v1631 = vadd.f32 0.0, %v1630
      %v1632 = vpop.f32.mrf.mxu0
      %1633 = vdwg.mxu0
      %v1634 = vadd.f32 %v1480, %v1596
      %v1635 = vadd.f32 %v1481, %v1601
      %v1636 = vadd.f32 %v1482, %v1606
      %v1637 = vadd.f32 %v1483, %v1611
      %v1638 = vadd.f32 %v1484, %v1616
      %v1639 = vadd.f32 %v1485, %v1621
      %v1640 = vadd.f32 %v1486, %v1626
      %v1641 = vadd.f32 %v1487, %v1631
      %v1642 = vld [vmem:[%s1333 + $0x2] sm:$0xff]
      %v1643 = vld [vmem:[%s1333 + $0x12] sm:$0xff]
      %v1644 = vld [vmem:[%s1333 + $0x22] sm:$0xff]
      %v1645 = vld [vmem:[%s1333 + $0x32] sm:$0xff]
      %v1646 = vld [vmem:[%s1333 + $0x42] sm:$0xff]
      %v1647 = vld [vmem:[%s1333 + $0x52] sm:$0xff]
      %v1648 = vld [vmem:[%s1333 + $0x62] sm:$0xff]
      %v1649 = vld [vmem:[%s1333 + $0x72] sm:$0xff]
      %s1650 = scalar_lea.vmem %s1, 512
      %v1651 = vld [vmem:[%s1650] sm:$0xff]
      %v1652 = vld [vmem:[%s1650 + $0x8] sm:$0xff]
      %v1653 = vld [vmem:[%s1650 + $0x10] sm:$0xff]
      %v1654 = vld [vmem:[%s1650 + $0x18] sm:$0xff]
      %v1655 = vld [vmem:[%s1650 + $0x20] sm:$0xff]
      %v1656 = vld [vmem:[%s1650 + $0x28] sm:$0xff]
      %v1657 = vld [vmem:[%s1650 + $0x30] sm:$0xff]
      %v1658 = vld [vmem:[%s1650 + $0x38] sm:$0xff]
      %v1660 = vsel %vm395, %v1642, 0
      %v1663 = vsel %vm395, %v1643, 0
      %v1666 = vsel %vm395, %v1644, 0
      %v1669 = vsel %vm395, %v1645, 0
      %v1672 = vsel %vm395, %v1646, 0
      %v1675 = vsel %vm395, %v1647, 0
      %v1678 = vsel %vm395, %v1648, 0
      %v1681 = vsel %vm395, %v1649, 0
      %1683 = vmatprep.subr.mxu0 0.0
      %1684 = vmatpush1.msra.mxu0 0.0
      %1685 = vmatprep.subr.mxu0 0.0
      %1686 = vmatpush1.msra.mxu0 0.0
      %1687 = vmatprep.subr.mxu0 0.0
      %1688 = vmatpush1.msra.mxu0 0.0
      %1689 = vmatprep.subr.mxu0 0.0
      %1690 = vmatpush1.msra.mxu0 0.0
      %1691 = vmatprep.subr.mxu0 0.0
      %1692 = vmatpush1.msra.mxu0 0.0
      %1693 = vmatprep.subr.mxu0 0.0
      %1694 = vmatpush1.msra.mxu0 0.0
      %1695 = vmatprep.subr.mxu0 0.0
      %1696 = vmatpush1.msra.mxu0 0.0
      %1697 = vmatprep.subr.mxu0 0.0
      %1698 = vmatpush1.msra.mxu0 0.0
      %1699 = vmatprep.subr.mxu0 0.0
      %1700 = vmatpush1.msra.mxu0 %v1658
      %1701 = vmatprep.subr.mxu0 0.0
      %1702 = vmatpush1.msra.mxu0 %v1657
      %1703 = vmatprep.subr.mxu0 0.0
      %1704 = vmatpush1.msra.mxu0 %v1656
      %1705 = vmatprep.subr.mxu0 0.0
      %1706 = vmatpush1.msra.mxu0 %v1655
      %1707 = vmatprep.subr.mxu0 0.0
      %1708 = vmatpush1.msra.mxu0 %v1654
      %1709 = vmatprep.subr.mxu0 0.0
      %1710 = vmatpush1.msra.mxu0 %v1653
      %1711 = vmatprep.subr.mxu0 0.0
      %1712 = vmatpush1.msra.mxu0 %v1652
      %1713 = vmatprep.subr.mxu0 0.0
      %1714 = vmatpush1.msra.mxu0 %v1651
      %1715 = vmatprep.subr.mxu0 0.0
      %1716 = vmatpush2.msra.mxu0 0.0
      %1717 = vmatprep.subr.mxu0 0.0
      %1718 = vmatpush2.msra.mxu0 0.0
      %1719 = vmatprep.subr.mxu0 0.0
      %1720 = vmatpush2.msra.mxu0 0.0
      %1721 = vmatprep.subr.mxu0 0.0
      %1722 = vmatpush2.msra.mxu0 0.0
      %1723 = vmatprep.subr.mxu0 0.0
      %1724 = vmatpush2.msra.mxu0 0.0
      %1725 = vmatprep.subr.mxu0 0.0
      %1726 = vmatpush2.msra.mxu0 0.0
      %1727 = vmatprep.subr.mxu0 0.0
      %1728 = vmatpush2.msra.mxu0 0.0
      %1729 = vmatprep.subr.mxu0 0.0
      %1730 = vmatpush2.msra.mxu0 0.0
      %1731 = vmatprep.subr.mxu0 0.0
      %1732 = vmatpush2.msra.mxu0 0.0
      %1733 = vmatprep.subr.mxu0 0.0
      %1734 = vmatpush2.msra.mxu0 0.0
      %1735 = vmatprep.subr.mxu0 0.0
      %1736 = vmatpush2.msra.mxu0 0.0
      %1737 = vmatprep.subr.mxu0 0.0
      %1738 = vmatpush2.msra.mxu0 0.0
      %1739 = vmatprep.subr.mxu0 0.0
      %1740 = vmatpush2.msra.mxu0 0.0
      %1741 = vmatprep.subr.mxu0 0.0
      %1742 = vmatpush2.msra.mxu0 0.0
      %1743 = vmatprep.subr.mxu0 0.0
      %1744 = vmatpush2.msra.mxu0 0.0
      %1745 = vmatprep.subr.mxu0 0.0
      %1746 = vmatpush2.msra.mxu0 0.0
      %1747 = vmatprep.mubr.f32.mxu0 0.0
      %1748 = vmatmul.mubr.f32.gmra.mxu0 %v1660
      %v1749 = vpop.f32.mrf.mxu0
      %v1750 = vadd.f32 0.0, %v1749
      %v1751 = vpop.f32.mrf.mxu0
      %1752 = vmatprep.mubr.f32.mxu0 0.0
      %1753 = vmatmul.mubr.f32.gmra.mxu0 %v1663
      %v1754 = vpop.f32.mrf.mxu0
      %v1755 = vadd.f32 0.0, %v1754
      %v1756 = vpop.f32.mrf.mxu0
      %1757 = vmatprep.mubr.f32.mxu0 0.0
      %1758 = vmatmul.mubr.f32.gmra.mxu0 %v1666
      %v1759 = vpop.f32.mrf.mxu0
      %v1760 = vadd.f32 0.0, %v1759
      %v1761 = vpop.f32.mrf.mxu0
      %1762 = vmatprep.mubr.f32.mxu0 0.0
      %1763 = vmatmul.mubr.f32.gmra.mxu0 %v1669
      %v1764 = vpop.f32.mrf.mxu0
      %v1765 = vadd.f32 0.0, %v1764
      %v1766 = vpop.f32.mrf.mxu0
      %1767 = vmatprep.mubr.f32.mxu0 0.0
      %1768 = vmatmul.mubr.f32.gmra.mxu0 %v1672
      %v1769 = vpop.f32.mrf.mxu0
      %v1770 = vadd.f32 0.0, %v1769
      %v1771 = vpop.f32.mrf.mxu0
      %1772 = vmatprep.mubr.f32.mxu0 0.0
      %1773 = vmatmul.mubr.f32.gmra.mxu0 %v1675
      %v1774 = vpop.f32.mrf.mxu0
      %v1775 = vadd.f32 0.0, %v1774
      %v1776 = vpop.f32.mrf.mxu0
      %1777 = vmatprep.mubr.f32.mxu0 0.0
      %1778 = vmatmul.mubr.f32.gmra.mxu0 %v1678
      %v1779 = vpop.f32.mrf.mxu0
      %v1780 = vadd.f32 0.0, %v1779
      %v1781 = vpop.f32.mrf.mxu0
      %1782 = vmatprep.mubr.f32.mxu0 0.0
      %1783 = vmatmul.mubr.f32.gmra.mxu0 %v1681
      %v1784 = vpop.f32.mrf.mxu0
      %v1785 = vadd.f32 0.0, %v1784
      %v1786 = vpop.f32.mrf.mxu0
      %1787 = vdwg.mxu0
      %v1788 = vadd.f32 %v1634, %v1750
      %v1789 = vadd.f32 %v1635, %v1755
      %v1790 = vadd.f32 %v1636, %v1760
      %v1791 = vadd.f32 %v1637, %v1765
      %v1792 = vadd.f32 %v1638, %v1770
      %v1793 = vadd.f32 %v1639, %v1775
      %v1794 = vadd.f32 %v1640, %v1780
      %v1795 = vadd.f32 %v1641, %v1785
      %v1796 = vld [vmem:[%s2] sm:$0x1]
      %v1798 = vlaneseq
      %v1799 = vshrl.u32 %v1798, 7
      %v1800 = vsub.s32 0, %v1799
      %v1801 = vrot.slane %v1796, %v1800
      %v1803 = vadd.f32 %v1788, %v1801
      %v1804 = vadd.f32 %v1789, %v1801
      %v1805 = vadd.f32 %v1790, %v1801
      %v1806 = vadd.f32 %v1791, %v1801
      %v1807 = vadd.f32 %v1792, %v1801
      %v1808 = vadd.f32 %v1793, %v1801
      %v1809 = vadd.f32 %v1794, %v1801
      %v1810 = vadd.f32 %v1795, %v1801
      %v1811 = vmax.f32 %v1803, 0.0
      %v1812 = vmax.f32 %v1804, 0.0
      %v1813 = vmax.f32 %v1805, 0.0
      %v1814 = vmax.f32 %v1806, 0.0
      %v1815 = vmax.f32 %v1807, 0.0
      %v1816 = vmax.f32 %v1808, 0.0
      %v1817 = vmax.f32 %v1809, 0.0
      %v1818 = vmax.f32 %v1810, 0.0
      %vm1819 = vcmask 130048
      %1820 = vst.msk [vmem:[#allocation3] sm:$0xff] %vm1819, 0.0
      %vm1821 = vcmask 123904
      %1822 = vst.msk [vmem:[#allocation3 + $0x8] sm:$0x3] %vm1821, 0.0
      %1823 = vst.msk [vmem:[#allocation3 + $0x10] sm:$0xff] %vm1819, 0.0
      %1824 = vst.msk [vmem:[#allocation3 + $0x18] sm:$0x3] %vm1821, 0.0
      %1825 = vst.msk [vmem:[#allocation3 + $0x20] sm:$0xff] %vm1819, 0.0
      %1826 = vst.msk [vmem:[#allocation3 + $0x28] sm:$0x3] %vm1821, 0.0
      %1827 = vst.msk [vmem:[#allocation3 + $0x30] sm:$0xff] %vm1819, 0.0
      %1828 = vst.msk [vmem:[#allocation3 + $0x38] sm:$0x3] %vm1821, 0.0
      %1829 = vst.msk [vmem:[#allocation3 + $0x40] sm:$0xff] %vm1819, 0.0
      %1830 = vst.msk [vmem:[#allocation3 + $0x48] sm:$0x3] %vm1821, 0.0
      %1831 = vst.msk [vmem:[#allocation3 + $0x50] sm:$0xff] %vm1819, 0.0
      %1832 = vst.msk [vmem:[#allocation3 + $0x58] sm:$0x3] %vm1821, 0.0
      %1833 = vst.msk [vmem:[#allocation3 + $0x60] sm:$0xff] %vm1819, 0.0
      %1834 = vst.msk [vmem:[#allocation3 + $0x68] sm:$0x3] %vm1821, 0.0
      %1835 = vst.msk [vmem:[#allocation3 + $0x70] sm:$0xff] %vm1819, 0.0
      %1836 = vst.msk [vmem:[#allocation3 + $0x78] sm:$0x3] %vm1821, 0.0
      %1837 = vst.msk [vmem:[#allocation3 + $0x80] sm:$0xff] %vm1819, 0.0
      %1838 = vst.msk [vmem:[#allocation3 + $0x88] sm:$0x3] %vm1821, 0.0
      %1839 = vst.msk [vmem:[#allocation3 + $0x90] sm:$0xff] %vm1819, 0.0
      %1840 = vst.msk [vmem:[#allocation3 + $0x98] sm:$0x3] %vm1821, 0.0
      %s1841 = scalar_lea.vmem [#allocation3], 16
      %1842 = vst.msk [vmem:[%s1841 + $0x1] sm:$0xff] %vm1819, %v1811
      %1843 = vst.msk [vmem:[%s1841 + $0x11] sm:$0xff] %vm1819, %v1812
      %1844 = vst.msk [vmem:[%s1841 + $0x21] sm:$0xff] %vm1819, %v1813
      %1845 = vst.msk [vmem:[%s1841 + $0x31] sm:$0xff] %vm1819, %v1814
      %1846 = vst.msk [vmem:[%s1841 + $0x41] sm:$0xff] %vm1819, %v1815
      %1847 = vst.msk [vmem:[%s1841 + $0x51] sm:$0xff] %vm1819, %v1816
      %1848 = vst.msk [vmem:[%s1841 + $0x61] sm:$0xff] %vm1819, %v1817
      %1849 = vst.msk [vmem:[%s1841 + $0x71] sm:$0xff] %vm1819, %v1818
      %v1850 = vld [vmem:[#allocation3] sm:$0xff]
      %v1851 = vld [vmem:[#allocation3 + $0x10] sm:$0xff]
      %v1852 = vld [vmem:[#allocation3 + $0x20] sm:$0xff]
      %v1853 = vld [vmem:[#allocation3 + $0x30] sm:$0xff]
      %v1854 = vld [vmem:[#allocation3 + $0x40] sm:$0xff]
      %v1855 = vld [vmem:[#allocation3 + $0x50] sm:$0xff]
      %v1856 = vld [vmem:[#allocation3 + $0x60] sm:$0xff]
      %v1857 = vld [vmem:[#allocation3 + $0x70] sm:$0xff]
      %v1858 = vld [vmem:[%s3] sm:$0xff]
      %v1859 = vld [vmem:[%s3 + $0x8] sm:$0xff]
      %v1860 = vld [vmem:[#allocation3 + $0x1] sm:$0xff]
      %v1861 = vld [vmem:[#allocation3 + $0x11] sm:$0xff]
      %v1862 = vld [vmem:[#allocation3 + $0x21] sm:$0xff]
      %v1863 = vld [vmem:[#allocation3 + $0x31] sm:$0xff]
      %v1864 = vld [vmem:[#allocation3 + $0x41] sm:$0xff]
      %v1865 = vld [vmem:[#allocation3 + $0x51] sm:$0xff]
      %v1866 = vld [vmem:[#allocation3 + $0x61] sm:$0xff]
      %v1867 = vld [vmem:[#allocation3 + $0x71] sm:$0xff]
      %s1868 = scalar_lea.vmem %s3, 16
      %v1869 = vld [vmem:[%s1868] sm:$0xff]
      %v1870 = vld [vmem:[%s1868 + $0x8] sm:$0xff]
      %v1872 = vsel %vm1819, %v1860, 0
      %v1875 = vsel %vm1819, %v1861, 0
      %v1878 = vsel %vm1819, %v1862, 0
      %v1881 = vsel %vm1819, %v1863, 0
      %v1884 = vsel %vm1819, %v1864, 0
      %v1887 = vsel %vm1819, %v1865, 0
      %v1890 = vsel %vm1819, %v1866, 0
      %v1893 = vsel %vm1819, %v1867, 0
      %1895 = vmatprep.subr.mxu0 0.0
      %1896 = vmatpush1.msra.mxu0 0.0
      %1897 = vmatprep.subr.mxu0 0.0
      %1898 = vmatpush1.msra.mxu0 0.0
      %1899 = vmatprep.subr.mxu0 0.0
      %1900 = vmatpush1.msra.mxu0 0.0
      %1901 = vmatprep.subr.mxu0 0.0
      %1902 = vmatpush1.msra.mxu0 0.0
      %1903 = vmatprep.subr.mxu0 0.0
      %1904 = vmatpush1.msra.mxu0 0.0
      %1905 = vmatprep.subr.mxu0 0.0
      %1906 = vmatpush1.msra.mxu0 0.0
      %1907 = vmatprep.subr.mxu0 0.0
      %1908 = vmatpush1.msra.mxu0 0.0
      %1909 = vmatprep.subr.mxu0 0.0
      %1910 = vmatpush1.msra.mxu0 0.0
      %1911 = vmatprep.subr.mxu0 0.0
      %1912 = vmatpush1.msra.mxu0 0.0
      %1913 = vmatprep.subr.mxu0 0.0
      %1914 = vmatpush1.msra.mxu0 0.0
      %1915 = vmatprep.subr.mxu0 0.0
      %1916 = vmatpush1.msra.mxu0 0.0
      %1917 = vmatprep.subr.mxu0 0.0
      %1918 = vmatpush1.msra.mxu0 0.0
      %1919 = vmatprep.subr.mxu0 0.0
      %1920 = vmatpush1.msra.mxu0 0.0
      %1921 = vmatprep.subr.mxu0 0.0
      %1922 = vmatpush1.msra.mxu0 0.0
      %1923 = vmatprep.subr.mxu0 0.0
      %1924 = vmatpush1.msra.mxu0 %v1870
      %1925 = vmatprep.subr.mxu0 0.0
      %1926 = vmatpush1.msra.mxu0 %v1869
      %1927 = vmatprep.subr.mxu0 0.0
      %1928 = vmatpush2.msra.mxu0 0.0
      %1929 = vmatprep.subr.mxu0 0.0
      %1930 = vmatpush2.msra.mxu0 0.0
      %1931 = vmatprep.subr.mxu0 0.0
      %1932 = vmatpush2.msra.mxu0 0.0
      %1933 = vmatprep.subr.mxu0 0.0
      %1934 = vmatpush2.msra.mxu0 0.0
      %1935 = vmatprep.subr.mxu0 0.0
      %1936 = vmatpush2.msra.mxu0 0.0
      %1937 = vmatprep.subr.mxu0 0.0
      %1938 = vmatpush2.msra.mxu0 0.0
      %1939 = vmatprep.subr.mxu0 0.0
      %1940 = vmatpush2.msra.mxu0 0.0
      %1941 = vmatprep.subr.mxu0 0.0
      %1942 = vmatpush2.msra.mxu0 0.0
      %1943 = vmatprep.subr.mxu0 0.0
      %1944 = vmatpush2.msra.mxu0 0.0
      %1945 = vmatprep.subr.mxu0 0.0
      %1946 = vmatpush2.msra.mxu0 0.0
      %1947 = vmatprep.subr.mxu0 0.0
      %1948 = vmatpush2.msra.mxu0 0.0
      %1949 = vmatprep.subr.mxu0 0.0
      %1950 = vmatpush2.msra.mxu0 0.0
      %1951 = vmatprep.subr.mxu0 0.0
      %1952 = vmatpush2.msra.mxu0 0.0
      %1953 = vmatprep.subr.mxu0 0.0
      %1954 = vmatpush2.msra.mxu0 0.0
      %1955 = vmatprep.subr.mxu0 0.0
      %1956 = vmatpush2.msra.mxu0 0.0
      %1957 = vmatprep.subr.mxu0 0.0
      %1958 = vmatpush2.msra.mxu0 0.0
      %1959 = vmatprep.mubr.f32.mxu0 0.0
      %1960 = vmatmul.mubr.f32.gmra.mxu0 %v1872
      %v1961 = vpop.f32.mrf.mxu0
      %v1962 = vadd.f32 0.0, %v1961
      %v1963 = vpop.f32.mrf.mxu0
      %1964 = vmatprep.mubr.f32.mxu0 0.0
      %1965 = vmatmul.mubr.f32.gmra.mxu0 %v1875
      %v1966 = vpop.f32.mrf.mxu0
      %v1967 = vadd.f32 0.0, %v1966
      %v1968 = vpop.f32.mrf.mxu0
      %1969 = vmatprep.mubr.f32.mxu0 0.0
      %1970 = vmatmul.mubr.f32.gmra.mxu0 %v1878
      %v1971 = vpop.f32.mrf.mxu0
      %v1972 = vadd.f32 0.0, %v1971
      %v1973 = vpop.f32.mrf.mxu0
      %1974 = vmatprep.mubr.f32.mxu0 0.0
      %1975 = vmatmul.mubr.f32.gmra.mxu0 %v1881
      %v1976 = vpop.f32.mrf.mxu0
      %v1977 = vadd.f32 0.0, %v1976
      %v1978 = vpop.f32.mrf.mxu0
      %1979 = vmatprep.mubr.f32.mxu0 0.0
      %1980 = vmatmul.mubr.f32.gmra.mxu0 %v1884
      %v1981 = vpop.f32.mrf.mxu0
      %v1982 = vadd.f32 0.0, %v1981
      %v1983 = vpop.f32.mrf.mxu0
      %1984 = vmatprep.mubr.f32.mxu0 0.0
      %1985 = vmatmul.mubr.f32.gmra.mxu0 %v1887
      %v1986 = vpop.f32.mrf.mxu0
      %v1987 = vadd.f32 0.0, %v1986
      %v1988 = vpop.f32.mrf.mxu0
      %1989 = vmatprep.mubr.f32.mxu0 0.0
      %1990 = vmatmul.mubr.f32.gmra.mxu0 %v1890
      %v1991 = vpop.f32.mrf.mxu0
      %v1992 = vadd.f32 0.0, %v1991
      %v1993 = vpop.f32.mrf.mxu0
      %1994 = vmatprep.mubr.f32.mxu0 0.0
      %1995 = vmatmul.mubr.f32.gmra.mxu0 %v1893
      %v1996 = vpop.f32.mrf.mxu0
      %v1997 = vadd.f32 0.0, %v1996
      %v1998 = vpop.f32.mrf.mxu0
      %1999 = vdwg.mxu0
      %v2001 = vsel %vm1819, %v1850, 0
      %v2004 = vsel %vm1819, %v1851, 0
      %v2007 = vsel %vm1819, %v1852, 0
      %v2010 = vsel %vm1819, %v1853, 0
      %v2013 = vsel %vm1819, %v1854, 0
      %v2016 = vsel %vm1819, %v1855, 0
      %v2019 = vsel %vm1819, %v1856, 0
      %v2022 = vsel %vm1819, %v1857, 0
      %2024 = vmatprep.subr.mxu0 0.0
      %2025 = vmatpush1.msra.mxu0 0.0
      %2026 = vmatprep.subr.mxu0 0.0
      %2027 = vmatpush1.msra.mxu0 0.0
      %2028 = vmatprep.subr.mxu0 0.0
      %2029 = vmatpush1.msra.mxu0 0.0
      %2030 = vmatprep.subr.mxu0 0.0
      %2031 = vmatpush1.msra.mxu0 0.0
      %2032 = vmatprep.subr.mxu0 0.0
      %2033 = vmatpush1.msra.mxu0 0.0
      %2034 = vmatprep.subr.mxu0 0.0
      %2035 = vmatpush1.msra.mxu0 0.0
      %2036 = vmatprep.subr.mxu0 0.0
      %2037 = vmatpush1.msra.mxu0 0.0
      %2038 = vmatprep.subr.mxu0 0.0
      %2039 = vmatpush1.msra.mxu0 0.0
      %2040 = vmatprep.subr.mxu0 0.0
      %2041 = vmatpush1.msra.mxu0 0.0
      %2042 = vmatprep.subr.mxu0 0.0
      %2043 = vmatpush1.msra.mxu0 0.0
      %2044 = vmatprep.subr.mxu0 0.0
      %2045 = vmatpush1.msra.mxu0 0.0
      %2046 = vmatprep.subr.mxu0 0.0
      %2047 = vmatpush1.msra.mxu0 0.0
      %2048 = vmatprep.subr.mxu0 0.0
      %2049 = vmatpush1.msra.mxu0 0.0
      %2050 = vmatprep.subr.mxu0 0.0
      %2051 = vmatpush1.msra.mxu0 0.0
      %2052 = vmatprep.subr.mxu0 0.0
      %2053 = vmatpush1.msra.mxu0 %v1859
      %2054 = vmatprep.subr.mxu0 0.0
      %2055 = vmatpush1.msra.mxu0 %v1858
      %2056 = vmatprep.subr.mxu0 0.0
      %2057 = vmatpush2.msra.mxu0 0.0
      %2058 = vmatprep.subr.mxu0 0.0
      %2059 = vmatpush2.msra.mxu0 0.0
      %2060 = vmatprep.subr.mxu0 0.0
      %2061 = vmatpush2.msra.mxu0 0.0
      %2062 = vmatprep.subr.mxu0 0.0
      %2063 = vmatpush2.msra.mxu0 0.0
      %2064 = vmatprep.subr.mxu0 0.0
      %2065 = vmatpush2.msra.mxu0 0.0
      %2066 = vmatprep.subr.mxu0 0.0
      %2067 = vmatpush2.msra.mxu0 0.0
      %2068 = vmatprep.subr.mxu0 0.0
      %2069 = vmatpush2.msra.mxu0 0.0
      %2070 = vmatprep.subr.mxu0 0.0
      %2071 = vmatpush2.msra.mxu0 0.0
      %2072 = vmatprep.subr.mxu0 0.0
      %2073 = vmatpush2.msra.mxu0 0.0
      %2074 = vmatprep.subr.mxu0 0.0
      %2075 = vmatpush2.msra.mxu0 0.0
      %2076 = vmatprep.subr.mxu0 0.0
      %2077 = vmatpush2.msra.mxu0 0.0
      %2078 = vmatprep.subr.mxu0 0.0
      %2079 = vmatpush2.msra.mxu0 0.0
      %2080 = vmatprep.subr.mxu0 0.0
      %2081 = vmatpush2.msra.mxu0 0.0
      %2082 = vmatprep.subr.mxu0 0.0
      %2083 = vmatpush2.msra.mxu0 0.0
      %2084 = vmatprep.subr.mxu0 0.0
      %2085 = vmatpush2.msra.mxu0 0.0
      %2086 = vmatprep.subr.mxu0 0.0
      %2087 = vmatpush2.msra.mxu0 0.0
      %2088 = vmatprep.mubr.f32.mxu0 0.0
      %2089 = vmatmul.mubr.f32.gmra.mxu0 %v2001
      %v2090 = vpop.f32.mrf.mxu0
      %v2091 = vadd.f32 %v1962, %v2090
      %v2092 = vpop.f32.mrf.mxu0
      %2093 = vmatprep.mubr.f32.mxu0 0.0
      %2094 = vmatmul.mubr.f32.gmra.mxu0 %v2004
      %v2095 = vpop.f32.mrf.mxu0
      %v2096 = vadd.f32 %v1967, %v2095
      %v2097 = vpop.f32.mrf.mxu0
      %2098 = vmatprep.mubr.f32.mxu0 0.0
      %2099 = vmatmul.mubr.f32.gmra.mxu0 %v2007
      %v2100 = vpop.f32.mrf.mxu0
      %v2101 = vadd.f32 %v1972, %v2100
      %v2102 = vpop.f32.mrf.mxu0
      %2103 = vmatprep.mubr.f32.mxu0 0.0
      %2104 = vmatmul.mubr.f32.gmra.mxu0 %v2010
      %v2105 = vpop.f32.mrf.mxu0
      %v2106 = vadd.f32 %v1977, %v2105
      %v2107 = vpop.f32.mrf.mxu0
      %2108 = vmatprep.mubr.f32.mxu0 0.0
      %2109 = vmatmul.mubr.f32.gmra.mxu0 %v2013
      %v2110 = vpop.f32.mrf.mxu0
      %v2111 = vadd.f32 %v1982, %v2110
      %v2112 = vpop.f32.mrf.mxu0
      %2113 = vmatprep.mubr.f32.mxu0 0.0
      %2114 = vmatmul.mubr.f32.gmra.mxu0 %v2016
      %v2115 = vpop.f32.mrf.mxu0
      %v2116 = vadd.f32 %v1987, %v2115
      %v2117 = vpop.f32.mrf.mxu0
      %2118 = vmatprep.mubr.f32.mxu0 0.0
      %2119 = vmatmul.mubr.f32.gmra.mxu0 %v2019
      %v2120 = vpop.f32.mrf.mxu0
      %v2121 = vadd.f32 %v1992, %v2120
      %v2122 = vpop.f32.mrf.mxu0
      %2123 = vmatprep.mubr.f32.mxu0 0.0
      %2124 = vmatmul.mubr.f32.gmra.mxu0 %v2022
      %v2125 = vpop.f32.mrf.mxu0
      %v2126 = vadd.f32 %v1997, %v2125
      %v2127 = vpop.f32.mrf.mxu0
      %2128 = vdwg.mxu0
      %v2129 = vld [vmem:[#allocation3 + $0x2] sm:$0xff]
      %v2130 = vld [vmem:[#allocation3 + $0x12] sm:$0xff]
      %v2131 = vld [vmem:[#allocation3 + $0x22] sm:$0xff]
      %v2132 = vld [vmem:[#allocation3 + $0x32] sm:$0xff]
      %v2133 = vld [vmem:[#allocation3 + $0x42] sm:$0xff]
      %v2134 = vld [vmem:[#allocation3 + $0x52] sm:$0xff]
      %v2135 = vld [vmem:[#allocation3 + $0x62] sm:$0xff]
      %v2136 = vld [vmem:[#allocation3 + $0x72] sm:$0xff]
      %s2137 = scalar_lea.vmem %s3, 32
      %v2138 = vld [vmem:[%s2137] sm:$0xff]
      %v2139 = vld [vmem:[%s2137 + $0x8] sm:$0xff]
      %v2141 = vsel %vm1819, %v2129, 0
      %v2144 = vsel %vm1819, %v2130, 0
      %v2147 = vsel %vm1819, %v2131, 0
      %v2150 = vsel %vm1819, %v2132, 0
      %v2153 = vsel %vm1819, %v2133, 0
      %v2156 = vsel %vm1819, %v2134, 0
      %v2159 = vsel %vm1819, %v2135, 0
      %v2162 = vsel %vm1819, %v2136, 0
      %2164 = vmatprep.subr.mxu0 0.0
      %2165 = vmatpush1.msra.mxu0 0.0
      %2166 = vmatprep.subr.mxu0 0.0
      %2167 = vmatpush1.msra.mxu0 0.0
      %2168 = vmatprep.subr.mxu0 0.0
      %2169 = vmatpush1.msra.mxu0 0.0
      %2170 = vmatprep.subr.mxu0 0.0
      %2171 = vmatpush1.msra.mxu0 0.0
      %2172 = vmatprep.subr.mxu0 0.0
      %2173 = vmatpush1.msra.mxu0 0.0
      %2174 = vmatprep.subr.mxu0 0.0
      %2175 = vmatpush1.msra.mxu0 0.0
      %2176 = vmatprep.subr.mxu0 0.0
      %2177 = vmatpush1.msra.mxu0 0.0
      %2178 = vmatprep.subr.mxu0 0.0
      %2179 = vmatpush1.msra.mxu0 0.0
      %2180 = vmatprep.subr.mxu0 0.0
      %2181 = vmatpush1.msra.mxu0 0.0
      %2182 = vmatprep.subr.mxu0 0.0
      %2183 = vmatpush1.msra.mxu0 0.0
      %2184 = vmatprep.subr.mxu0 0.0
      %2185 = vmatpush1.msra.mxu0 0.0
      %2186 = vmatprep.subr.mxu0 0.0
      %2187 = vmatpush1.msra.mxu0 0.0
      %2188 = vmatprep.subr.mxu0 0.0
      %2189 = vmatpush1.msra.mxu0 0.0
      %2190 = vmatprep.subr.mxu0 0.0
      %2191 = vmatpush1.msra.mxu0 0.0
      %2192 = vmatprep.subr.mxu0 0.0
      %2193 = vmatpush1.msra.mxu0 %v2139
      %2194 = vmatprep.subr.mxu0 0.0
      %2195 = vmatpush1.msra.mxu0 %v2138
      %2196 = vmatprep.subr.mxu0 0.0
      %2197 = vmatpush2.msra.mxu0 0.0
      %2198 = vmatprep.subr.mxu0 0.0
      %2199 = vmatpush2.msra.mxu0 0.0
      %2200 = vmatprep.subr.mxu0 0.0
      %2201 = vmatpush2.msra.mxu0 0.0
      %2202 = vmatprep.subr.mxu0 0.0
      %2203 = vmatpush2.msra.mxu0 0.0
      %2204 = vmatprep.subr.mxu0 0.0
      %2205 = vmatpush2.msra.mxu0 0.0
      %2206 = vmatprep.subr.mxu0 0.0
      %2207 = vmatpush2.msra.mxu0 0.0
      %2208 = vmatprep.subr.mxu0 0.0
      %2209 = vmatpush2.msra.mxu0 0.0
      %2210 = vmatprep.subr.mxu0 0.0
      %2211 = vmatpush2.msra.mxu0 0.0
      %2212 = vmatprep.subr.mxu0 0.0
      %2213 = vmatpush2.msra.mxu0 0.0
      %2214 = vmatprep.subr.mxu0 0.0
      %2215 = vmatpush2.msra.mxu0 0.0
      %2216 = vmatprep.subr.mxu0 0.0
      %2217 = vmatpush2.msra.mxu0 0.0
      %2218 = vmatprep.subr.mxu0 0.0
      %2219 = vmatpush2.msra.mxu0 0.0
      %2220 = vmatprep.subr.mxu0 0.0
      %2221 = vmatpush2.msra.mxu0 0.0
      %2222 = vmatprep.subr.mxu0 0.0
      %2223 = vmatpush2.msra.mxu0 0.0
      %2224 = vmatprep.subr.mxu0 0.0
      %2225 = vmatpush2.msra.mxu0 0.0
      %2226 = vmatprep.subr.mxu0 0.0
      %2227 = vmatpush2.msra.mxu0 0.0
      %2228 = vmatprep.mubr.f32.mxu0 0.0
      %2229 = vmatmul.mubr.f32.gmra.mxu0 %v2141
      %v2230 = vpop.f32.mrf.mxu0
      %v2231 = vadd.f32 0.0, %v2230
      %v2232 = vpop.f32.mrf.mxu0
      %2233 = vmatprep.mubr.f32.mxu0 0.0
      %2234 = vmatmul.mubr.f32.gmra.mxu0 %v2144
      %v2235 = vpop.f32.mrf.mxu0
      %v2236 = vadd.f32 0.0, %v2235
      %v2237 = vpop.f32.mrf.mxu0
      %2238 = vmatprep.mubr.f32.mxu0 0.0
      %2239 = vmatmul.mubr.f32.gmra.mxu0 %v2147
      %v2240 = vpop.f32.mrf.mxu0
      %v2241 = vadd.f32 0.0, %v2240
      %v2242 = vpop.f32.mrf.mxu0
      %2243 = vmatprep.mubr.f32.mxu0 0.0
      %2244 = vmatmul.mubr.f32.gmra.mxu0 %v2150
      %v2245 = vpop.f32.mrf.mxu0
      %v2246 = vadd.f32 0.0, %v2245
      %v2247 = vpop.f32.mrf.mxu0
      %2248 = vmatprep.mubr.f32.mxu0 0.0
      %2249 = vmatmul.mubr.f32.gmra.mxu0 %v2153
      %v2250 = vpop.f32.mrf.mxu0
      %v2251 = vadd.f32 0.0, %v2250
      %v2252 = vpop.f32.mrf.mxu0
      %2253 = vmatprep.mubr.f32.mxu0 0.0
      %2254 = vmatmul.mubr.f32.gmra.mxu0 %v2156
      %v2255 = vpop.f32.mrf.mxu0
      %v2256 = vadd.f32 0.0, %v2255
      %v2257 = vpop.f32.mrf.mxu0
      %2258 = vmatprep.mubr.f32.mxu0 0.0
      %2259 = vmatmul.mubr.f32.gmra.mxu0 %v2159
      %v2260 = vpop.f32.mrf.mxu0
      %v2261 = vadd.f32 0.0, %v2260
      %v2262 = vpop.f32.mrf.mxu0
      %2263 = vmatprep.mubr.f32.mxu0 0.0
      %2264 = vmatmul.mubr.f32.gmra.mxu0 %v2162
      %v2265 = vpop.f32.mrf.mxu0
      %v2266 = vadd.f32 0.0, %v2265
      %v2267 = vpop.f32.mrf.mxu0
      %2268 = vdwg.mxu0
      %v2269 = vadd.f32 %v2091, %v2231
      %v2270 = vadd.f32 %v2096, %v2236
      %v2271 = vadd.f32 %v2101, %v2241
      %v2272 = vadd.f32 %v2106, %v2246
      %v2273 = vadd.f32 %v2111, %v2251
      %v2274 = vadd.f32 %v2116, %v2256
      %v2275 = vadd.f32 %v2121, %v2261
      %v2276 = vadd.f32 %v2126, %v2266
      %v2277 = vld [vmem:[%s1841] sm:$0xff]
      %v2278 = vld [vmem:[%s1841 + $0x10] sm:$0xff]
      %v2279 = vld [vmem:[%s1841 + $0x20] sm:$0xff]
      %v2280 = vld [vmem:[%s1841 + $0x30] sm:$0xff]
      %v2281 = vld [vmem:[%s1841 + $0x40] sm:$0xff]
      %v2282 = vld [vmem:[%s1841 + $0x50] sm:$0xff]
      %v2283 = vld [vmem:[%s1841 + $0x60] sm:$0xff]
      %v2284 = vld [vmem:[%s1841 + $0x70] sm:$0xff]
      %s2285 = scalar_lea.vmem %s3, 48
      %v2286 = vld [vmem:[%s2285] sm:$0xff]
      %v2287 = vld [vmem:[%s2285 + $0x8] sm:$0xff]
      %v2289 = vsel %vm1819, %v2277, 0
      %v2292 = vsel %vm1819, %v2278, 0
      %v2295 = vsel %vm1819, %v2279, 0
      %v2298 = vsel %vm1819, %v2280, 0
      %v2301 = vsel %vm1819, %v2281, 0
      %v2304 = vsel %vm1819, %v2282, 0
      %v2307 = vsel %vm1819, %v2283, 0
      %v2310 = vsel %vm1819, %v2284, 0
      %2312 = vmatprep.subr.mxu0 0.0
      %2313 = vmatpush1.msra.mxu0 0.0
      %2314 = vmatprep.subr.mxu0 0.0
      %2315 = vmatpush1.msra.mxu0 0.0
      %2316 = vmatprep.subr.mxu0 0.0
      %2317 = vmatpush1.msra.mxu0 0.0
      %2318 = vmatprep.subr.mxu0 0.0
      %2319 = vmatpush1.msra.mxu0 0.0
      %2320 = vmatprep.subr.mxu0 0.0
      %2321 = vmatpush1.msra.mxu0 0.0
      %2322 = vmatprep.subr.mxu0 0.0
      %2323 = vmatpush1.msra.mxu0 0.0
      %2324 = vmatprep.subr.mxu0 0.0
      %2325 = vmatpush1.msra.mxu0 0.0
      %2326 = vmatprep.subr.mxu0 0.0
      %2327 = vmatpush1.msra.mxu0 0.0
      %2328 = vmatprep.subr.mxu0 0.0
      %2329 = vmatpush1.msra.mxu0 0.0
      %2330 = vmatprep.subr.mxu0 0.0
      %2331 = vmatpush1.msra.mxu0 0.0
      %2332 = vmatprep.subr.mxu0 0.0
      %2333 = vmatpush1.msra.mxu0 0.0
      %2334 = vmatprep.subr.mxu0 0.0
      %2335 = vmatpush1.msra.mxu0 0.0
      %2336 = vmatprep.subr.mxu0 0.0
      %2337 = vmatpush1.msra.mxu0 0.0
      %2338 = vmatprep.subr.mxu0 0.0
      %2339 = vmatpush1.msra.mxu0 0.0
      %2340 = vmatprep.subr.mxu0 0.0
      %2341 = vmatpush1.msra.mxu0 %v2287
      %2342 = vmatprep.subr.mxu0 0.0
      %2343 = vmatpush1.msra.mxu0 %v2286
      %2344 = vmatprep.subr.mxu0 0.0
      %2345 = vmatpush2.msra.mxu0 0.0
      %2346 = vmatprep.subr.mxu0 0.0
      %2347 = vmatpush2.msra.mxu0 0.0
      %2348 = vmatprep.subr.mxu0 0.0
      %2349 = vmatpush2.msra.mxu0 0.0
      %2350 = vmatprep.subr.mxu0 0.0
      %2351 = vmatpush2.msra.mxu0 0.0
      %2352 = vmatprep.subr.mxu0 0.0
      %2353 = vmatpush2.msra.mxu0 0.0
      %2354 = vmatprep.subr.mxu0 0.0
      %2355 = vmatpush2.msra.mxu0 0.0
      %2356 = vmatprep.subr.mxu0 0.0
      %2357 = vmatpush2.msra.mxu0 0.0
      %2358 = vmatprep.subr.mxu0 0.0
      %2359 = vmatpush2.msra.mxu0 0.0
      %2360 = vmatprep.subr.mxu0 0.0
      %2361 = vmatpush2.msra.mxu0 0.0
      %2362 = vmatprep.subr.mxu0 0.0
      %2363 = vmatpush2.msra.mxu0 0.0
      %2364 = vmatprep.subr.mxu0 0.0
      %2365 = vmatpush2.msra.mxu0 0.0
      %2366 = vmatprep.subr.mxu0 0.0
      %2367 = vmatpush2.msra.mxu0 0.0
      %2368 = vmatprep.subr.mxu0 0.0
      %2369 = vmatpush2.msra.mxu0 0.0
      %2370 = vmatprep.subr.mxu0 0.0
      %2371 = vmatpush2.msra.mxu0 0.0
      %2372 = vmatprep.subr.mxu0 0.0
      %2373 = vmatpush2.msra.mxu0 0.0
      %2374 = vmatprep.subr.mxu0 0.0
      %2375 = vmatpush2.msra.mxu0 0.0
      %2376 = vmatprep.mubr.f32.mxu0 0.0
      %2377 = vmatmul.mubr.f32.gmra.mxu0 %v2289
      %v2378 = vpop.f32.mrf.mxu0
      %v2379 = vadd.f32 0.0, %v2378
      %v2380 = vpop.f32.mrf.mxu0
      %2381 = vmatprep.mubr.f32.mxu0 0.0
      %2382 = vmatmul.mubr.f32.gmra.mxu0 %v2292
      %v2383 = vpop.f32.mrf.mxu0
      %v2384 = vadd.f32 0.0, %v2383
      %v2385 = vpop.f32.mrf.mxu0
      %2386 = vmatprep.mubr.f32.mxu0 0.0
      %2387 = vmatmul.mubr.f32.gmra.mxu0 %v2295
      %v2388 = vpop.f32.mrf.mxu0
      %v2389 = vadd.f32 0.0, %v2388
      %v2390 = vpop.f32.mrf.mxu0
      %2391 = vmatprep.mubr.f32.mxu0 0.0
      %2392 = vmatmul.mubr.f32.gmra.mxu0 %v2298
      %v2393 = vpop.f32.mrf.mxu0
      %v2394 = vadd.f32 0.0, %v2393
      %v2395 = vpop.f32.mrf.mxu0
      %2396 = vmatprep.mubr.f32.mxu0 0.0
      %2397 = vmatmul.mubr.f32.gmra.mxu0 %v2301
      %v2398 = vpop.f32.mrf.mxu0
      %v2399 = vadd.f32 0.0, %v2398
      %v2400 = vpop.f32.mrf.mxu0
      %2401 = vmatprep.mubr.f32.mxu0 0.0
      %2402 = vmatmul.mubr.f32.gmra.mxu0 %v2304
      %v2403 = vpop.f32.mrf.mxu0
      %v2404 = vadd.f32 0.0, %v2403
      %v2405 = vpop.f32.mrf.mxu0
      %2406 = vmatprep.mubr.f32.mxu0 0.0
      %2407 = vmatmul.mubr.f32.gmra.mxu0 %v2307
      %v2408 = vpop.f32.mrf.mxu0
      %v2409 = vadd.f32 0.0, %v2408
      %v2410 = vpop.f32.mrf.mxu0
      %2411 = vmatprep.mubr.f32.mxu0 0.0
      %2412 = vmatmul.mubr.f32.gmra.mxu0 %v2310
      %v2413 = vpop.f32.mrf.mxu0
      %v2414 = vadd.f32 0.0, %v2413
      %v2415 = vpop.f32.mrf.mxu0
      %2416 = vdwg.mxu0
      %v2417 = vadd.f32 %v2269, %v2379
      %v2418 = vadd.f32 %v2270, %v2384
      %v2419 = vadd.f32 %v2271, %v2389
      %v2420 = vadd.f32 %v2272, %v2394
      %v2421 = vadd.f32 %v2273, %v2399
      %v2422 = vadd.f32 %v2274, %v2404
      %v2423 = vadd.f32 %v2275, %v2409
      %v2424 = vadd.f32 %v2276, %v2414
      %v2425 = vld [vmem:[%s1841 + $0x1] sm:$0xff]
      %v2426 = vld [vmem:[%s1841 + $0x11] sm:$0xff]
      %v2427 = vld [vmem:[%s1841 + $0x21] sm:$0xff]
      %v2428 = vld [vmem:[%s1841 + $0x31] sm:$0xff]
      %v2429 = vld [vmem:[%s1841 + $0x41] sm:$0xff]
      %v2430 = vld [vmem:[%s1841 + $0x51] sm:$0xff]
      %v2431 = vld [vmem:[%s1841 + $0x61] sm:$0xff]
      %v2432 = vld [vmem:[%s1841 + $0x71] sm:$0xff]
      %s2433 = scalar_lea.vmem %s3, 64
      %v2434 = vld [vmem:[%s2433] sm:$0xff]
      %v2435 = vld [vmem:[%s2433 + $0x8] sm:$0xff]
      %v2437 = vsel %vm1819, %v2425, 0
      %v2440 = vsel %vm1819, %v2426, 0
      %v2443 = vsel %vm1819, %v2427, 0
      %v2446 = vsel %vm1819, %v2428, 0
      %v2449 = vsel %vm1819, %v2429, 0
      %v2452 = vsel %vm1819, %v2430, 0
      %v2455 = vsel %vm1819, %v2431, 0
      %v2458 = vsel %vm1819, %v2432, 0
      %2460 = vmatprep.subr.mxu0 0.0
      %2461 = vmatpush1.msra.mxu0 0.0
      %2462 = vmatprep.subr.mxu0 0.0
      %2463 = vmatpush1.msra.mxu0 0.0
      %2464 = vmatprep.subr.mxu0 0.0
      %2465 = vmatpush1.msra.mxu0 0.0
      %2466 = vmatprep.subr.mxu0 0.0
      %2467 = vmatpush1.msra.mxu0 0.0
      %2468 = vmatprep.subr.mxu0 0.0
      %2469 = vmatpush1.msra.mxu0 0.0
      %2470 = vmatprep.subr.mxu0 0.0
      %2471 = vmatpush1.msra.mxu0 0.0
      %2472 = vmatprep.subr.mxu0 0.0
      %2473 = vmatpush1.msra.mxu0 0.0
      %2474 = vmatprep.subr.mxu0 0.0
      %2475 = vmatpush1.msra.mxu0 0.0
      %2476 = vmatprep.subr.mxu0 0.0
      %2477 = vmatpush1.msra.mxu0 0.0
      %2478 = vmatprep.subr.mxu0 0.0
      %2479 = vmatpush1.msra.mxu0 0.0
      %2480 = vmatprep.subr.mxu0 0.0
      %2481 = vmatpush1.msra.mxu0 0.0
      %2482 = vmatprep.subr.mxu0 0.0
      %2483 = vmatpush1.msra.mxu0 0.0
      %2484 = vmatprep.subr.mxu0 0.0
      %2485 = vmatpush1.msra.mxu0 0.0
      %2486 = vmatprep.subr.mxu0 0.0
      %2487 = vmatpush1.msra.mxu0 0.0
      %2488 = vmatprep.subr.mxu0 0.0
      %2489 = vmatpush1.msra.mxu0 %v2435
      %2490 = vmatprep.subr.mxu0 0.0
      %2491 = vmatpush1.msra.mxu0 %v2434
      %2492 = vmatprep.subr.mxu0 0.0
      %2493 = vmatpush2.msra.mxu0 0.0
      %2494 = vmatprep.subr.mxu0 0.0
      %2495 = vmatpush2.msra.mxu0 0.0
      %2496 = vmatprep.subr.mxu0 0.0
      %2497 = vmatpush2.msra.mxu0 0.0
      %2498 = vmatprep.subr.mxu0 0.0
      %2499 = vmatpush2.msra.mxu0 0.0
      %2500 = vmatprep.subr.mxu0 0.0
      %2501 = vmatpush2.msra.mxu0 0.0
      %2502 = vmatprep.subr.mxu0 0.0
      %2503 = vmatpush2.msra.mxu0 0.0
      %2504 = vmatprep.subr.mxu0 0.0
      %2505 = vmatpush2.msra.mxu0 0.0
      %2506 = vmatprep.subr.mxu0 0.0
      %2507 = vmatpush2.msra.mxu0 0.0
      %2508 = vmatprep.subr.mxu0 0.0
      %2509 = vmatpush2.msra.mxu0 0.0
      %2510 = vmatprep.subr.mxu0 0.0
      %2511 = vmatpush2.msra.mxu0 0.0
      %2512 = vmatprep.subr.mxu0 0.0
      %2513 = vmatpush2.msra.mxu0 0.0
      %2514 = vmatprep.subr.mxu0 0.0
      %2515 = vmatpush2.msra.mxu0 0.0
      %2516 = vmatprep.subr.mxu0 0.0
      %2517 = vmatpush2.msra.mxu0 0.0
      %2518 = vmatprep.subr.mxu0 0.0
      %2519 = vmatpush2.msra.mxu0 0.0
      %2520 = vmatprep.subr.mxu0 0.0
      %2521 = vmatpush2.msra.mxu0 0.0
      %2522 = vmatprep.subr.mxu0 0.0
      %2523 = vmatpush2.msra.mxu0 0.0
      %2524 = vmatprep.mubr.f32.mxu0 0.0
      %2525 = vmatmul.mubr.f32.gmra.mxu0 %v2437
      %v2526 = vpop.f32.mrf.mxu0
      %v2527 = vadd.f32 0.0, %v2526
      %v2528 = vpop.f32.mrf.mxu0
      %2529 = vmatprep.mubr.f32.mxu0 0.0
      %2530 = vmatmul.mubr.f32.gmra.mxu0 %v2440
      %v2531 = vpop.f32.mrf.mxu0
      %v2532 = vadd.f32 0.0, %v2531
      %v2533 = vpop.f32.mrf.mxu0
      %2534 = vmatprep.mubr.f32.mxu0 0.0
      %2535 = vmatmul.mubr.f32.gmra.mxu0 %v2443
      %v2536 = vpop.f32.mrf.mxu0
      %v2537 = vadd.f32 0.0, %v2536
      %v2538 = vpop.f32.mrf.mxu0
      %2539 = vmatprep.mubr.f32.mxu0 0.0
      %2540 = vmatmul.mubr.f32.gmra.mxu0 %v2446
      %v2541 = vpop.f32.mrf.mxu0
      %v2542 = vadd.f32 0.0, %v2541
      %v2543 = vpop.f32.mrf.mxu0
      %2544 = vmatprep.mubr.f32.mxu0 0.0
      %2545 = vmatmul.mubr.f32.gmra.mxu0 %v2449
      %v2546 = vpop.f32.mrf.mxu0
      %v2547 = vadd.f32 0.0, %v2546
      %v2548 = vpop.f32.mrf.mxu0
      %2549 = vmatprep.mubr.f32.mxu0 0.0
      %2550 = vmatmul.mubr.f32.gmra.mxu0 %v2452
      %v2551 = vpop.f32.mrf.mxu0
      %v2552 = vadd.f32 0.0, %v2551
      %v2553 = vpop.f32.mrf.mxu0
      %2554 = vmatprep.mubr.f32.mxu0 0.0
      %2555 = vmatmul.mubr.f32.gmra.mxu0 %v2455
      %v2556 = vpop.f32.mrf.mxu0
      %v2557 = vadd.f32 0.0, %v2556
      %v2558 = vpop.f32.mrf.mxu0
      %2559 = vmatprep.mubr.f32.mxu0 0.0
      %2560 = vmatmul.mubr.f32.gmra.mxu0 %v2458
      %v2561 = vpop.f32.mrf.mxu0
      %v2562 = vadd.f32 0.0, %v2561
      %v2563 = vpop.f32.mrf.mxu0
      %2564 = vdwg.mxu0
      %v2565 = vadd.f32 %v2417, %v2527
      %v2566 = vadd.f32 %v2418, %v2532
      %v2567 = vadd.f32 %v2419, %v2537
      %v2568 = vadd.f32 %v2420, %v2542
      %v2569 = vadd.f32 %v2421, %v2547
      %v2570 = vadd.f32 %v2422, %v2552
      %v2571 = vadd.f32 %v2423, %v2557
      %v2572 = vadd.f32 %v2424, %v2562
      %v2573 = vld [vmem:[%s1841 + $0x2] sm:$0xff]
      %v2574 = vld [vmem:[%s1841 + $0x12] sm:$0xff]
      %v2575 = vld [vmem:[%s1841 + $0x22] sm:$0xff]
      %v2576 = vld [vmem:[%s1841 + $0x32] sm:$0xff]
      %v2577 = vld [vmem:[%s1841 + $0x42] sm:$0xff]
      %v2578 = vld [vmem:[%s1841 + $0x52] sm:$0xff]
      %v2579 = vld [vmem:[%s1841 + $0x62] sm:$0xff]
      %v2580 = vld [vmem:[%s1841 + $0x72] sm:$0xff]
      %s2581 = scalar_lea.vmem %s3, 80
      %v2582 = vld [vmem:[%s2581] sm:$0xff]
      %v2583 = vld [vmem:[%s2581 + $0x8] sm:$0xff]
      %v2585 = vsel %vm1819, %v2573, 0
      %v2588 = vsel %vm1819, %v2574, 0
      %v2591 = vsel %vm1819, %v2575, 0
      %v2594 = vsel %vm1819, %v2576, 0
      %v2597 = vsel %vm1819, %v2577, 0
      %v2600 = vsel %vm1819, %v2578, 0
      %v2603 = vsel %vm1819, %v2579, 0
      %v2606 = vsel %vm1819, %v2580, 0
      %2608 = vmatprep.subr.mxu0 0.0
      %2609 = vmatpush1.msra.mxu0 0.0
      %2610 = vmatprep.subr.mxu0 0.0
      %2611 = vmatpush1.msra.mxu0 0.0
      %2612 = vmatprep.subr.mxu0 0.0
      %2613 = vmatpush1.msra.mxu0 0.0
      %2614 = vmatprep.subr.mxu0 0.0
      %2615 = vmatpush1.msra.mxu0 0.0
      %2616 = vmatprep.subr.mxu0 0.0
      %2617 = vmatpush1.msra.mxu0 0.0
      %2618 = vmatprep.subr.mxu0 0.0
      %2619 = vmatpush1.msra.mxu0 0.0
      %2620 = vmatprep.subr.mxu0 0.0
      %2621 = vmatpush1.msra.mxu0 0.0
      %2622 = vmatprep.subr.mxu0 0.0
      %2623 = vmatpush1.msra.mxu0 0.0
      %2624 = vmatprep.subr.mxu0 0.0
      %2625 = vmatpush1.msra.mxu0 0.0
      %2626 = vmatprep.subr.mxu0 0.0
      %2627 = vmatpush1.msra.mxu0 0.0
      %2628 = vmatprep.subr.mxu0 0.0
      %2629 = vmatpush1.msra.mxu0 0.0
      %2630 = vmatprep.subr.mxu0 0.0
      %2631 = vmatpush1.msra.mxu0 0.0
      %2632 = vmatprep.subr.mxu0 0.0
      %2633 = vmatpush1.msra.mxu0 0.0
      %2634 = vmatprep.subr.mxu0 0.0
      %2635 = vmatpush1.msra.mxu0 0.0
      %2636 = vmatprep.subr.mxu0 0.0
      %2637 = vmatpush1.msra.mxu0 %v2583
      %2638 = vmatprep.subr.mxu0 0.0
      %2639 = vmatpush1.msra.mxu0 %v2582
      %2640 = vmatprep.subr.mxu0 0.0
      %2641 = vmatpush2.msra.mxu0 0.0
      %2642 = vmatprep.subr.mxu0 0.0
      %2643 = vmatpush2.msra.mxu0 0.0
      %2644 = vmatprep.subr.mxu0 0.0
      %2645 = vmatpush2.msra.mxu0 0.0
      %2646 = vmatprep.subr.mxu0 0.0
      %2647 = vmatpush2.msra.mxu0 0.0
      %2648 = vmatprep.subr.mxu0 0.0
      %2649 = vmatpush2.msra.mxu0 0.0
      %2650 = vmatprep.subr.mxu0 0.0
      %2651 = vmatpush2.msra.mxu0 0.0
      %2652 = vmatprep.subr.mxu0 0.0
      %2653 = vmatpush2.msra.mxu0 0.0
      %2654 = vmatprep.subr.mxu0 0.0
      %2655 = vmatpush2.msra.mxu0 0.0
      %2656 = vmatprep.subr.mxu0 0.0
      %2657 = vmatpush2.msra.mxu0 0.0
      %2658 = vmatprep.subr.mxu0 0.0
      %2659 = vmatpush2.msra.mxu0 0.0
      %2660 = vmatprep.subr.mxu0 0.0
      %2661 = vmatpush2.msra.mxu0 0.0
      %2662 = vmatprep.subr.mxu0 0.0
      %2663 = vmatpush2.msra.mxu0 0.0
      %2664 = vmatprep.subr.mxu0 0.0
      %2665 = vmatpush2.msra.mxu0 0.0
      %2666 = vmatprep.subr.mxu0 0.0
      %2667 = vmatpush2.msra.mxu0 0.0
      %2668 = vmatprep.subr.mxu0 0.0
      %2669 = vmatpush2.msra.mxu0 0.0
      %2670 = vmatprep.subr.mxu0 0.0
      %2671 = vmatpush2.msra.mxu0 0.0
      %2672 = vmatprep.mubr.f32.mxu0 0.0
      %2673 = vmatmul.mubr.f32.gmra.mxu0 %v2585
      %v2674 = vpop.f32.mrf.mxu0
      %v2675 = vadd.f32 0.0, %v2674
      %v2676 = vpop.f32.mrf.mxu0
      %2677 = vmatprep.mubr.f32.mxu0 0.0
      %2678 = vmatmul.mubr.f32.gmra.mxu0 %v2588
      %v2679 = vpop.f32.mrf.mxu0
      %v2680 = vadd.f32 0.0, %v2679
      %v2681 = vpop.f32.mrf.mxu0
      %2682 = vmatprep.mubr.f32.mxu0 0.0
      %2683 = vmatmul.mubr.f32.gmra.mxu0 %v2591
      %v2684 = vpop.f32.mrf.mxu0
      %v2685 = vadd.f32 0.0, %v2684
      %v2686 = vpop.f32.mrf.mxu0
      %2687 = vmatprep.mubr.f32.mxu0 0.0
      %2688 = vmatmul.mubr.f32.gmra.mxu0 %v2594
      %v2689 = vpop.f32.mrf.mxu0
      %v2690 = vadd.f32 0.0, %v2689
      %v2691 = vpop.f32.mrf.mxu0
      %2692 = vmatprep.mubr.f32.mxu0 0.0
      %2693 = vmatmul.mubr.f32.gmra.mxu0 %v2597
      %v2694 = vpop.f32.mrf.mxu0
      %v2695 = vadd.f32 0.0, %v2694
      %v2696 = vpop.f32.mrf.mxu0
      %2697 = vmatprep.mubr.f32.mxu0 0.0
      %2698 = vmatmul.mubr.f32.gmra.mxu0 %v2600
      %v2699 = vpop.f32.mrf.mxu0
      %v2700 = vadd.f32 0.0, %v2699
      %v2701 = vpop.f32.mrf.mxu0
      %2702 = vmatprep.mubr.f32.mxu0 0.0
      %2703 = vmatmul.mubr.f32.gmra.mxu0 %v2603
      %v2704 = vpop.f32.mrf.mxu0
      %v2705 = vadd.f32 0.0, %v2704
      %v2706 = vpop.f32.mrf.mxu0
      %2707 = vmatprep.mubr.f32.mxu0 0.0
      %2708 = vmatmul.mubr.f32.gmra.mxu0 %v2606
      %v2709 = vpop.f32.mrf.mxu0
      %v2710 = vadd.f32 0.0, %v2709
      %v2711 = vpop.f32.mrf.mxu0
      %2712 = vdwg.mxu0
      %v2713 = vadd.f32 %v2565, %v2675
      %v2714 = vadd.f32 %v2566, %v2680
      %v2715 = vadd.f32 %v2567, %v2685
      %v2716 = vadd.f32 %v2568, %v2690
      %v2717 = vadd.f32 %v2569, %v2695
      %v2718 = vadd.f32 %v2570, %v2700
      %v2719 = vadd.f32 %v2571, %v2705
      %v2720 = vadd.f32 %v2572, %v2710
      %s2721 = scalar_lea.vmem [#allocation3], 32
      %v2722 = vld [vmem:[%s2721] sm:$0xff]
      %v2723 = vld [vmem:[%s2721 + $0x10] sm:$0xff]
      %v2724 = vld [vmem:[%s2721 + $0x20] sm:$0xff]
      %v2725 = vld [vmem:[%s2721 + $0x30] sm:$0xff]
      %v2726 = vld [vmem:[%s2721 + $0x40] sm:$0xff]
      %v2727 = vld [vmem:[%s2721 + $0x50] sm:$0xff]
      %v2728 = vld [vmem:[%s2721 + $0x60] sm:$0xff]
      %v2729 = vld [vmem:[%s2721 + $0x70] sm:$0xff]
      %s2730 = scalar_lea.vmem %s3, 96
      %v2731 = vld [vmem:[%s2730] sm:$0xff]
      %v2732 = vld [vmem:[%s2730 + $0x8] sm:$0xff]
      %v2734 = vsel %vm1819, %v2722, 0
      %v2737 = vsel %vm1819, %v2723, 0
      %v2740 = vsel %vm1819, %v2724, 0
      %v2743 = vsel %vm1819, %v2725, 0
      %v2746 = vsel %vm1819, %v2726, 0
      %v2749 = vsel %vm1819, %v2727, 0
      %v2752 = vsel %vm1819, %v2728, 0
      %v2755 = vsel %vm1819, %v2729, 0
      %2757 = vmatprep.subr.mxu0 0.0
      %2758 = vmatpush1.msra.mxu0 0.0
      %2759 = vmatprep.subr.mxu0 0.0
      %2760 = vmatpush1.msra.mxu0 0.0
      %2761 = vmatprep.subr.mxu0 0.0
      %2762 = vmatpush1.msra.mxu0 0.0
      %2763 = vmatprep.subr.mxu0 0.0
      %2764 = vmatpush1.msra.mxu0 0.0
      %2765 = vmatprep.subr.mxu0 0.0
      %2766 = vmatpush1.msra.mxu0 0.0
      %2767 = vmatprep.subr.mxu0 0.0
      %2768 = vmatpush1.msra.mxu0 0.0
      %2769 = vmatprep.subr.mxu0 0.0
      %2770 = vmatpush1.msra.mxu0 0.0
      %2771 = vmatprep.subr.mxu0 0.0
      %2772 = vmatpush1.msra.mxu0 0.0
      %2773 = vmatprep.subr.mxu0 0.0
      %2774 = vmatpush1.msra.mxu0 0.0
      %2775 = vmatprep.subr.mxu0 0.0
      %2776 = vmatpush1.msra.mxu0 0.0
      %2777 = vmatprep.subr.mxu0 0.0
      %2778 = vmatpush1.msra.mxu0 0.0
      %2779 = vmatprep.subr.mxu0 0.0
      %2780 = vmatpush1.msra.mxu0 0.0
      %2781 = vmatprep.subr.mxu0 0.0
      %2782 = vmatpush1.msra.mxu0 0.0
      %2783 = vmatprep.subr.mxu0 0.0
      %2784 = vmatpush1.msra.mxu0 0.0
      %2785 = vmatprep.subr.mxu0 0.0
      %2786 = vmatpush1.msra.mxu0 %v2732
      %2787 = vmatprep.subr.mxu0 0.0
      %2788 = vmatpush1.msra.mxu0 %v2731
      %2789 = vmatprep.subr.mxu0 0.0
      %2790 = vmatpush2.msra.mxu0 0.0
      %2791 = vmatprep.subr.mxu0 0.0
      %2792 = vmatpush2.msra.mxu0 0.0
      %2793 = vmatprep.subr.mxu0 0.0
      %2794 = vmatpush2.msra.mxu0 0.0
      %2795 = vmatprep.subr.mxu0 0.0
      %2796 = vmatpush2.msra.mxu0 0.0
      %2797 = vmatprep.subr.mxu0 0.0
      %2798 = vmatpush2.msra.mxu0 0.0
      %2799 = vmatprep.subr.mxu0 0.0
      %2800 = vmatpush2.msra.mxu0 0.0
      %2801 = vmatprep.subr.mxu0 0.0
      %2802 = vmatpush2.msra.mxu0 0.0
      %2803 = vmatprep.subr.mxu0 0.0
      %2804 = vmatpush2.msra.mxu0 0.0
      %2805 = vmatprep.subr.mxu0 0.0
      %2806 = vmatpush2.msra.mxu0 0.0
      %2807 = vmatprep.subr.mxu0 0.0
      %2808 = vmatpush2.msra.mxu0 0.0
      %2809 = vmatprep.subr.mxu0 0.0
      %2810 = vmatpush2.msra.mxu0 0.0
      %2811 = vmatprep.subr.mxu0 0.0
      %2812 = vmatpush2.msra.mxu0 0.0
      %2813 = vmatprep.subr.mxu0 0.0
      %2814 = vmatpush2.msra.mxu0 0.0
      %2815 = vmatprep.subr.mxu0 0.0
      %2816 = vmatpush2.msra.mxu0 0.0
      %2817 = vmatprep.subr.mxu0 0.0
      %2818 = vmatpush2.msra.mxu0 0.0
      %2819 = vmatprep.subr.mxu0 0.0
      %2820 = vmatpush2.msra.mxu0 0.0
      %2821 = vmatprep.mubr.f32.mxu0 0.0
      %2822 = vmatmul.mubr.f32.gmra.mxu0 %v2734
      %v2823 = vpop.f32.mrf.mxu0
      %v2824 = vadd.f32 0.0, %v2823
      %v2825 = vpop.f32.mrf.mxu0
      %2826 = vmatprep.mubr.f32.mxu0 0.0
      %2827 = vmatmul.mubr.f32.gmra.mxu0 %v2737
      %v2828 = vpop.f32.mrf.mxu0
      %v2829 = vadd.f32 0.0, %v2828
      %v2830 = vpop.f32.mrf.mxu0
      %2831 = vmatprep.mubr.f32.mxu0 0.0
      %2832 = vmatmul.mubr.f32.gmra.mxu0 %v2740
      %v2833 = vpop.f32.mrf.mxu0
      %v2834 = vadd.f32 0.0, %v2833
      %v2835 = vpop.f32.mrf.mxu0
      %2836 = vmatprep.mubr.f32.mxu0 0.0
      %2837 = vmatmul.mubr.f32.gmra.mxu0 %v2743
      %v2838 = vpop.f32.mrf.mxu0
      %v2839 = vadd.f32 0.0, %v2838
      %v2840 = vpop.f32.mrf.mxu0
      %2841 = vmatprep.mubr.f32.mxu0 0.0
      %2842 = vmatmul.mubr.f32.gmra.mxu0 %v2746
      %v2843 = vpop.f32.mrf.mxu0
      %v2844 = vadd.f32 0.0, %v2843
      %v2845 = vpop.f32.mrf.mxu0
      %2846 = vmatprep.mubr.f32.mxu0 0.0
      %2847 = vmatmul.mubr.f32.gmra.mxu0 %v2749
      %v2848 = vpop.f32.mrf.mxu0
      %v2849 = vadd.f32 0.0, %v2848
      %v2850 = vpop.f32.mrf.mxu0
      %2851 = vmatprep.mubr.f32.mxu0 0.0
      %2852 = vmatmul.mubr.f32.gmra.mxu0 %v2752
      %v2853 = vpop.f32.mrf.mxu0
      %v2854 = vadd.f32 0.0, %v2853
      %v2855 = vpop.f32.mrf.mxu0
      %2856 = vmatprep.mubr.f32.mxu0 0.0
      %2857 = vmatmul.mubr.f32.gmra.mxu0 %v2755
      %v2858 = vpop.f32.mrf.mxu0
      %v2859 = vadd.f32 0.0, %v2858
      %v2860 = vpop.f32.mrf.mxu0
      %2861 = vdwg.mxu0
      %v2862 = vadd.f32 %v2713, %v2824
      %v2863 = vadd.f32 %v2714, %v2829
      %v2864 = vadd.f32 %v2715, %v2834
      %v2865 = vadd.f32 %v2716, %v2839
      %v2866 = vadd.f32 %v2717, %v2844
      %v2867 = vadd.f32 %v2718, %v2849
      %v2868 = vadd.f32 %v2719, %v2854
      %v2869 = vadd.f32 %v2720, %v2859
      %v2870 = vld [vmem:[%s2721 + $0x1] sm:$0xff]
      %v2871 = vld [vmem:[%s2721 + $0x11] sm:$0xff]
      %v2872 = vld [vmem:[%s2721 + $0x21] sm:$0xff]
      %v2873 = vld [vmem:[%s2721 + $0x31] sm:$0xff]
      %v2874 = vld [vmem:[%s2721 + $0x41] sm:$0xff]
      %v2875 = vld [vmem:[%s2721 + $0x51] sm:$0xff]
      %v2876 = vld [vmem:[%s2721 + $0x61] sm:$0xff]
      %v2877 = vld [vmem:[%s2721 + $0x71] sm:$0xff]
      %s2878 = scalar_lea.vmem %s3, 112
      %v2879 = vld [vmem:[%s2878] sm:$0xff]
      %v2880 = vld [vmem:[%s2878 + $0x8] sm:$0xff]
      %v2882 = vsel %vm1819, %v2870, 0
      %v2885 = vsel %vm1819, %v2871, 0
      %v2888 = vsel %vm1819, %v2872, 0
      %v2891 = vsel %vm1819, %v2873, 0
      %v2894 = vsel %vm1819, %v2874, 0
      %v2897 = vsel %vm1819, %v2875, 0
      %v2900 = vsel %vm1819, %v2876, 0
      %v2903 = vsel %vm1819, %v2877, 0
      %2905 = vmatprep.subr.mxu0 0.0
      %2906 = vmatpush1.msra.mxu0 0.0
      %2907 = vmatprep.subr.mxu0 0.0
      %2908 = vmatpush1.msra.mxu0 0.0
      %2909 = vmatprep.subr.mxu0 0.0
      %2910 = vmatpush1.msra.mxu0 0.0
      %2911 = vmatprep.subr.mxu0 0.0
      %2912 = vmatpush1.msra.mxu0 0.0
      %2913 = vmatprep.subr.mxu0 0.0
      %2914 = vmatpush1.msra.mxu0 0.0
      %2915 = vmatprep.subr.mxu0 0.0
      %2916 = vmatpush1.msra.mxu0 0.0
      %2917 = vmatprep.subr.mxu0 0.0
      %2918 = vmatpush1.msra.mxu0 0.0
      %2919 = vmatprep.subr.mxu0 0.0
      %2920 = vmatpush1.msra.mxu0 0.0
      %2921 = vmatprep.subr.mxu0 0.0
      %2922 = vmatpush1.msra.mxu0 0.0
      %2923 = vmatprep.subr.mxu0 0.0
      %2924 = vmatpush1.msra.mxu0 0.0
      %2925 = vmatprep.subr.mxu0 0.0
      %2926 = vmatpush1.msra.mxu0 0.0
      %2927 = vmatprep.subr.mxu0 0.0
      %2928 = vmatpush1.msra.mxu0 0.0
      %2929 = vmatprep.subr.mxu0 0.0
      %2930 = vmatpush1.msra.mxu0 0.0
      %2931 = vmatprep.subr.mxu0 0.0
      %2932 = vmatpush1.msra.mxu0 0.0
      %2933 = vmatprep.subr.mxu0 0.0
      %2934 = vmatpush1.msra.mxu0 %v2880
      %2935 = vmatprep.subr.mxu0 0.0
      %2936 = vmatpush1.msra.mxu0 %v2879
      %2937 = vmatprep.subr.mxu0 0.0
      %2938 = vmatpush2.msra.mxu0 0.0
      %2939 = vmatprep.subr.mxu0 0.0
      %2940 = vmatpush2.msra.mxu0 0.0
      %2941 = vmatprep.subr.mxu0 0.0
      %2942 = vmatpush2.msra.mxu0 0.0
      %2943 = vmatprep.subr.mxu0 0.0
      %2944 = vmatpush2.msra.mxu0 0.0
      %2945 = vmatprep.subr.mxu0 0.0
      %2946 = vmatpush2.msra.mxu0 0.0
      %2947 = vmatprep.subr.mxu0 0.0
      %2948 = vmatpush2.msra.mxu0 0.0
      %2949 = vmatprep.subr.mxu0 0.0
      %2950 = vmatpush2.msra.mxu0 0.0
      %2951 = vmatprep.subr.mxu0 0.0
      %2952 = vmatpush2.msra.mxu0 0.0
      %2953 = vmatprep.subr.mxu0 0.0
      %2954 = vmatpush2.msra.mxu0 0.0
      %2955 = vmatprep.subr.mxu0 0.0
      %2956 = vmatpush2.msra.mxu0 0.0
      %2957 = vmatprep.subr.mxu0 0.0
      %2958 = vmatpush2.msra.mxu0 0.0
      %2959 = vmatprep.subr.mxu0 0.0
      %2960 = vmatpush2.msra.mxu0 0.0
      %2961 = vmatprep.subr.mxu0 0.0
      %2962 = vmatpush2.msra.mxu0 0.0
      %2963 = vmatprep.subr.mxu0 0.0
      %2964 = vmatpush2.msra.mxu0 0.0
      %2965 = vmatprep.subr.mxu0 0.0
      %2966 = vmatpush2.msra.mxu0 0.0
      %2967 = vmatprep.subr.mxu0 0.0
      %2968 = vmatpush2.msra.mxu0 0.0
      %2969 = vmatprep.mubr.f32.mxu0 0.0
      %2970 = vmatmul.mubr.f32.gmra.mxu0 %v2882
      %v2971 = vpop.f32.mrf.mxu0
      %v2972 = vadd.f32 0.0, %v2971
      %v2973 = vpop.f32.mrf.mxu0
      %2974 = vmatprep.mubr.f32.mxu0 0.0
      %2975 = vmatmul.mubr.f32.gmra.mxu0 %v2885
      %v2976 = vpop.f32.mrf.mxu0
      %v2977 = vadd.f32 0.0, %v2976
      %v2978 = vpop.f32.mrf.mxu0
      %2979 = vmatprep.mubr.f32.mxu0 0.0
      %2980 = vmatmul.mubr.f32.gmra.mxu0 %v2888
      %v2981 = vpop.f32.mrf.mxu0
      %v2982 = vadd.f32 0.0, %v2981
      %v2983 = vpop.f32.mrf.mxu0
      %2984 = vmatprep.mubr.f32.mxu0 0.0
      %2985 = vmatmul.mubr.f32.gmra.mxu0 %v2891
      %v2986 = vpop.f32.mrf.mxu0
      %v2987 = vadd.f32 0.0, %v2986
      %v2988 = vpop.f32.mrf.mxu0
      %2989 = vmatprep.mubr.f32.mxu0 0.0
      %2990 = vmatmul.mubr.f32.gmra.mxu0 %v2894
      %v2991 = vpop.f32.mrf.mxu0
      %v2992 = vadd.f32 0.0, %v2991
      %v2993 = vpop.f32.mrf.mxu0
      %2994 = vmatprep.mubr.f32.mxu0 0.0
      %2995 = vmatmul.mubr.f32.gmra.mxu0 %v2897
      %v2996 = vpop.f32.mrf.mxu0
      %v2997 = vadd.f32 0.0, %v2996
      %v2998 = vpop.f32.mrf.mxu0
      %2999 = vmatprep.mubr.f32.mxu0 0.0
      %3000 = vmatmul.mubr.f32.gmra.mxu0 %v2900
      %v3001 = vpop.f32.mrf.mxu0
      %v3002 = vadd.f32 0.0, %v3001
      %v3003 = vpop.f32.mrf.mxu0
      %3004 = vmatprep.mubr.f32.mxu0 0.0
      %3005 = vmatmul.mubr.f32.gmra.mxu0 %v2903
      %v3006 = vpop.f32.mrf.mxu0
      %v3007 = vadd.f32 0.0, %v3006
      %v3008 = vpop.f32.mrf.mxu0
      %3009 = vdwg.mxu0
      %v3010 = vadd.f32 %v2862, %v2972
      %v3011 = vadd.f32 %v2863, %v2977
      %v3012 = vadd.f32 %v2864, %v2982
      %v3013 = vadd.f32 %v2865, %v2987
      %v3014 = vadd.f32 %v2866, %v2992
      %v3015 = vadd.f32 %v2867, %v2997
      %v3016 = vadd.f32 %v2868, %v3002
      %v3017 = vadd.f32 %v2869, %v3007
      %v3018 = vld [vmem:[%s2721 + $0x2] sm:$0xff]
      %v3019 = vld [vmem:[%s2721 + $0x12] sm:$0xff]
      %v3020 = vld [vmem:[%s2721 + $0x22] sm:$0xff]
      %v3021 = vld [vmem:[%s2721 + $0x32] sm:$0xff]
      %v3022 = vld [vmem:[%s2721 + $0x42] sm:$0xff]
      %v3023 = vld [vmem:[%s2721 + $0x52] sm:$0xff]
      %v3024 = vld [vmem:[%s2721 + $0x62] sm:$0xff]
      %v3025 = vld [vmem:[%s2721 + $0x72] sm:$0xff]
      %s3026 = scalar_lea.vmem %s3, 128
      %v3027 = vld [vmem:[%s3026] sm:$0xff]
      %v3028 = vld [vmem:[%s3026 + $0x8] sm:$0xff]
      %v3030 = vsel %vm1819, %v3018, 0
      %v3033 = vsel %vm1819, %v3019, 0
      %v3036 = vsel %vm1819, %v3020, 0
      %v3039 = vsel %vm1819, %v3021, 0
      %v3042 = vsel %vm1819, %v3022, 0
      %v3045 = vsel %vm1819, %v3023, 0
      %v3048 = vsel %vm1819, %v3024, 0
      %v3051 = vsel %vm1819, %v3025, 0
      %3053 = vmatprep.subr.mxu0 0.0
      %3054 = vmatpush1.msra.mxu0 0.0
      %3055 = vmatprep.subr.mxu0 0.0
      %3056 = vmatpush1.msra.mxu0 0.0
      %3057 = vmatprep.subr.mxu0 0.0
      %3058 = vmatpush1.msra.mxu0 0.0
      %3059 = vmatprep.subr.mxu0 0.0
      %3060 = vmatpush1.msra.mxu0 0.0
      %3061 = vmatprep.subr.mxu0 0.0
      %3062 = vmatpush1.msra.mxu0 0.0
      %3063 = vmatprep.subr.mxu0 0.0
      %3064 = vmatpush1.msra.mxu0 0.0
      %3065 = vmatprep.subr.mxu0 0.0
      %3066 = vmatpush1.msra.mxu0 0.0
      %3067 = vmatprep.subr.mxu0 0.0
      %3068 = vmatpush1.msra.mxu0 0.0
      %3069 = vmatprep.subr.mxu0 0.0
      %3070 = vmatpush1.msra.mxu0 0.0
      %3071 = vmatprep.subr.mxu0 0.0
      %3072 = vmatpush1.msra.mxu0 0.0
      %3073 = vmatprep.subr.mxu0 0.0
      %3074 = vmatpush1.msra.mxu0 0.0
      %3075 = vmatprep.subr.mxu0 0.0
      %3076 = vmatpush1.msra.mxu0 0.0
      %3077 = vmatprep.subr.mxu0 0.0
      %3078 = vmatpush1.msra.mxu0 0.0
      %3079 = vmatprep.subr.mxu0 0.0
      %3080 = vmatpush1.msra.mxu0 0.0
      %3081 = vmatprep.subr.mxu0 0.0
      %3082 = vmatpush1.msra.mxu0 %v3028
      %3083 = vmatprep.subr.mxu0 0.0
      %3084 = vmatpush1.msra.mxu0 %v3027
      %3085 = vmatprep.subr.mxu0 0.0
      %3086 = vmatpush2.msra.mxu0 0.0
      %3087 = vmatprep.subr.mxu0 0.0
      %3088 = vmatpush2.msra.mxu0 0.0
      %3089 = vmatprep.subr.mxu0 0.0
      %3090 = vmatpush2.msra.mxu0 0.0
      %3091 = vmatprep.subr.mxu0 0.0
      %3092 = vmatpush2.msra.mxu0 0.0
      %3093 = vmatprep.subr.mxu0 0.0
      %3094 = vmatpush2.msra.mxu0 0.0
      %3095 = vmatprep.subr.mxu0 0.0
      %3096 = vmatpush2.msra.mxu0 0.0
      %3097 = vmatprep.subr.mxu0 0.0
      %3098 = vmatpush2.msra.mxu0 0.0
      %3099 = vmatprep.subr.mxu0 0.0
      %3100 = vmatpush2.msra.mxu0 0.0
      %3101 = vmatprep.subr.mxu0 0.0
      %3102 = vmatpush2.msra.mxu0 0.0
      %3103 = vmatprep.subr.mxu0 0.0
      %3104 = vmatpush2.msra.mxu0 0.0
      %3105 = vmatprep.subr.mxu0 0.0
      %3106 = vmatpush2.msra.mxu0 0.0
      %3107 = vmatprep.subr.mxu0 0.0
      %3108 = vmatpush2.msra.mxu0 0.0
      %3109 = vmatprep.subr.mxu0 0.0
      %3110 = vmatpush2.msra.mxu0 0.0
      %3111 = vmatprep.subr.mxu0 0.0
      %3112 = vmatpush2.msra.mxu0 0.0
      %3113 = vmatprep.subr.mxu0 0.0
      %3114 = vmatpush2.msra.mxu0 0.0
      %3115 = vmatprep.subr.mxu0 0.0
      %3116 = vmatpush2.msra.mxu0 0.0
      %3117 = vmatprep.mubr.f32.mxu0 0.0
      %3118 = vmatmul.mubr.f32.gmra.mxu0 %v3030
      %v3119 = vpop.f32.mrf.mxu0
      %v3120 = vadd.f32 0.0, %v3119
      %v3121 = vpop.f32.mrf.mxu0
      %3122 = vmatprep.mubr.f32.mxu0 0.0
      %3123 = vmatmul.mubr.f32.gmra.mxu0 %v3033
      %v3124 = vpop.f32.mrf.mxu0
      %v3125 = vadd.f32 0.0, %v3124
      %v3126 = vpop.f32.mrf.mxu0
      %3127 = vmatprep.mubr.f32.mxu0 0.0
      %3128 = vmatmul.mubr.f32.gmra.mxu0 %v3036
      %v3129 = vpop.f32.mrf.mxu0
      %v3130 = vadd.f32 0.0, %v3129
      %v3131 = vpop.f32.mrf.mxu0
      %3132 = vmatprep.mubr.f32.mxu0 0.0
      %3133 = vmatmul.mubr.f32.gmra.mxu0 %v3039
      %v3134 = vpop.f32.mrf.mxu0
      %v3135 = vadd.f32 0.0, %v3134
      %v3136 = vpop.f32.mrf.mxu0
      %3137 = vmatprep.mubr.f32.mxu0 0.0
      %3138 = vmatmul.mubr.f32.gmra.mxu0 %v3042
      %v3139 = vpop.f32.mrf.mxu0
      %v3140 = vadd.f32 0.0, %v3139
      %v3141 = vpop.f32.mrf.mxu0
      %3142 = vmatprep.mubr.f32.mxu0 0.0
      %3143 = vmatmul.mubr.f32.gmra.mxu0 %v3045
      %v3144 = vpop.f32.mrf.mxu0
      %v3145 = vadd.f32 0.0, %v3144
      %v3146 = vpop.f32.mrf.mxu0
      %3147 = vmatprep.mubr.f32.mxu0 0.0
      %3148 = vmatmul.mubr.f32.gmra.mxu0 %v3048
      %v3149 = vpop.f32.mrf.mxu0
      %v3150 = vadd.f32 0.0, %v3149
      %v3151 = vpop.f32.mrf.mxu0
      %3152 = vmatprep.mubr.f32.mxu0 0.0
      %3153 = vmatmul.mubr.f32.gmra.mxu0 %v3051
      %v3154 = vpop.f32.mrf.mxu0
      %v3155 = vadd.f32 0.0, %v3154
      %v3156 = vpop.f32.mrf.mxu0
      %3157 = vdwg.mxu0
      %v3158 = vadd.f32 %v3010, %v3120
      %v3159 = vadd.f32 %v3011, %v3125
      %v3160 = vadd.f32 %v3012, %v3130
      %v3161 = vadd.f32 %v3013, %v3135
      %v3162 = vadd.f32 %v3014, %v3140
      %v3163 = vadd.f32 %v3015, %v3145
      %v3164 = vadd.f32 %v3016, %v3150
      %v3165 = vadd.f32 %v3017, %v3155
      %v3166 = vld [vmem:[%s4] sm:$0x1]
      %v3168 = vlaneseq
      %v3169 = vshrl.u32 %v3168, 7
      %v3170 = vsub.s32 0, %v3169
      %v3171 = vrot.slane %v3166, %v3170
      %v3173 = vadd.f32 %v3158, %v3171
      %v3174 = vadd.f32 %v3159, %v3171
      %v3175 = vadd.f32 %v3160, %v3171
      %v3176 = vadd.f32 %v3161, %v3171
      %v3177 = vadd.f32 %v3162, %v3171
      %v3178 = vadd.f32 %v3163, %v3171
      %v3179 = vadd.f32 %v3164, %v3171
      %v3180 = vadd.f32 %v3165, %v3171
      %v3181 = vmax.f32 %v3173, 0.0
      %v3182 = vmax.f32 %v3174, 0.0
      %v3183 = vmax.f32 %v3175, 0.0
      %v3184 = vmax.f32 %v3176, 0.0
      %v3185 = vmax.f32 %v3177, 0.0
      %v3186 = vmax.f32 %v3178, 0.0
      %v3187 = vmax.f32 %v3179, 0.0
      %v3188 = vmax.f32 %v3180, 0.0
      %v3189 = vld [vmem:[%s5] sm:$0xff]
      %v3190 = vld [vmem:[%s5 + $0x8] sm:$0xff]
      %v3191 = vld [vmem:[%s5 + $0x10] sm:$0xff]
      %v3192 = vld [vmem:[%s5 + $0x18] sm:$0xff]
      %v3193 = vld [vmem:[%s5 + $0x20] sm:$0xff]
      %v3194 = vld [vmem:[%s5 + $0x28] sm:$0xff]
      %v3195 = vld [vmem:[%s5 + $0x30] sm:$0xff]
      %v3196 = vld [vmem:[%s5 + $0x38] sm:$0xff]
      %v3197 = vld [vmem:[%s6] sm:$0x1]
      %v3199 = vlaneseq
      %v3200 = vshrl.u32 %v3199, 7
      %v3201 = vsub.s32 0, %v3200
      %v3202 = vrot.slane %v3197, %v3201
      %v3205 = vsel %vm395, %v387, 0
      %v3208 = vsel %vm395, %v388, 0
      %v3211 = vsel %vm395, %v389, 0
      %v3214 = vsel %vm395, %v390, 0
      %v3217 = vsel %vm395, %v391, 0
      %v3220 = vsel %vm395, %v392, 0
      %v3223 = vsel %vm395, %v393, 0
      %v3226 = vsel %vm395, %v394, 0
      %3228 = vmatprep.subr.mxu0 0.0
      %3229 = vmatpush1.msra.mxu0 0.0
      %3230 = vmatprep.subr.mxu0 0.0
      %3231 = vmatpush1.msra.mxu0 0.0
      %3232 = vmatprep.subr.mxu0 0.0
      %3233 = vmatpush1.msra.mxu0 0.0
      %3234 = vmatprep.subr.mxu0 0.0
      %3235 = vmatpush1.msra.mxu0 0.0
      %3236 = vmatprep.subr.mxu0 0.0
      %3237 = vmatpush1.msra.mxu0 0.0
      %3238 = vmatprep.subr.mxu0 0.0
      %3239 = vmatpush1.msra.mxu0 0.0
      %3240 = vmatprep.subr.mxu0 0.0
      %3241 = vmatpush1.msra.mxu0 0.0
      %3242 = vmatprep.subr.mxu0 0.0
      %3243 = vmatpush1.msra.mxu0 0.0
      %3244 = vmatprep.subr.mxu0 0.0
      %3245 = vmatpush1.msra.mxu0 %v3196
      %3246 = vmatprep.subr.mxu0 0.0
      %3247 = vmatpush1.msra.mxu0 %v3195
      %3248 = vmatprep.subr.mxu0 0.0
      %3249 = vmatpush1.msra.mxu0 %v3194
      %3250 = vmatprep.subr.mxu0 0.0
      %3251 = vmatpush1.msra.mxu0 %v3193
      %3252 = vmatprep.subr.mxu0 0.0
      %3253 = vmatpush1.msra.mxu0 %v3192
      %3254 = vmatprep.subr.mxu0 0.0
      %3255 = vmatpush1.msra.mxu0 %v3191
      %3256 = vmatprep.subr.mxu0 0.0
      %3257 = vmatpush1.msra.mxu0 %v3190
      %3258 = vmatprep.subr.mxu0 0.0
      %3259 = vmatpush1.msra.mxu0 %v3189
      %3260 = vmatprep.subr.mxu0 0.0
      %3261 = vmatpush2.msra.mxu0 0.0
      %3262 = vmatprep.subr.mxu0 0.0
      %3263 = vmatpush2.msra.mxu0 0.0
      %3264 = vmatprep.subr.mxu0 0.0
      %3265 = vmatpush2.msra.mxu0 0.0
      %3266 = vmatprep.subr.mxu0 0.0
      %3267 = vmatpush2.msra.mxu0 0.0
      %3268 = vmatprep.subr.mxu0 0.0
      %3269 = vmatpush2.msra.mxu0 0.0
      %3270 = vmatprep.subr.mxu0 0.0
      %3271 = vmatpush2.msra.mxu0 0.0
      %3272 = vmatprep.subr.mxu0 0.0
      %3273 = vmatpush2.msra.mxu0 0.0
      %3274 = vmatprep.subr.mxu0 0.0
      %3275 = vmatpush2.msra.mxu0 0.0
      %3276 = vmatprep.subr.mxu0 0.0
      %3277 = vmatpush2.msra.mxu0 0.0
      %3278 = vmatprep.subr.mxu0 0.0
      %3279 = vmatpush2.msra.mxu0 0.0
      %3280 = vmatprep.subr.mxu0 0.0
      %3281 = vmatpush2.msra.mxu0 0.0
      %3282 = vmatprep.subr.mxu0 0.0
      %3283 = vmatpush2.msra.mxu0 0.0
      %3284 = vmatprep.subr.mxu0 0.0
      %3285 = vmatpush2.msra.mxu0 0.0
      %3286 = vmatprep.subr.mxu0 0.0
      %3287 = vmatpush2.msra.mxu0 0.0
      %3288 = vmatprep.subr.mxu0 0.0
      %3289 = vmatpush2.msra.mxu0 0.0
      %3290 = vmatprep.subr.mxu0 0.0
      %3291 = vmatpush2.msra.mxu0 0.0
      %3292 = vmatprep.mubr.f32.mxu0 0.0
      %3293 = vmatmul.mubr.f32.gmra.mxu0 %v3205
      %v3294 = vpop.f32.mrf.mxu0
      %v3295 = vadd.f32 %v3202, %v3294
      %v3296 = vpop.f32.mrf.mxu0
      %3297 = vmatprep.mubr.f32.mxu0 0.0
      %3298 = vmatmul.mubr.f32.gmra.mxu0 %v3208
      %v3299 = vpop.f32.mrf.mxu0
      %v3300 = vadd.f32 %v3202, %v3299
      %v3301 = vpop.f32.mrf.mxu0
      %3302 = vmatprep.mubr.f32.mxu0 0.0
      %3303 = vmatmul.mubr.f32.gmra.mxu0 %v3211
      %v3304 = vpop.f32.mrf.mxu0
      %v3305 = vadd.f32 %v3202, %v3304
      %v3306 = vpop.f32.mrf.mxu0
      %3307 = vmatprep.mubr.f32.mxu0 0.0
      %3308 = vmatmul.mubr.f32.gmra.mxu0 %v3214
      %v3309 = vpop.f32.mrf.mxu0
      %v3310 = vadd.f32 %v3202, %v3309
      %v3311 = vpop.f32.mrf.mxu0
      %3312 = vmatprep.mubr.f32.mxu0 0.0
      %3313 = vmatmul.mubr.f32.gmra.mxu0 %v3217
      %v3314 = vpop.f32.mrf.mxu0
      %v3315 = vadd.f32 %v3202, %v3314
      %v3316 = vpop.f32.mrf.mxu0
      %3317 = vmatprep.mubr.f32.mxu0 0.0
      %3318 = vmatmul.mubr.f32.gmra.mxu0 %v3220
      %v3319 = vpop.f32.mrf.mxu0
      %v3320 = vadd.f32 %v3202, %v3319
      %v3321 = vpop.f32.mrf.mxu0
      %3322 = vmatprep.mubr.f32.mxu0 0.0
      %3323 = vmatmul.mubr.f32.gmra.mxu0 %v3223
      %v3324 = vpop.f32.mrf.mxu0
      %v3325 = vadd.f32 %v3202, %v3324
      %v3326 = vpop.f32.mrf.mxu0
      %3327 = vmatprep.mubr.f32.mxu0 0.0
      %3328 = vmatmul.mubr.f32.gmra.mxu0 %v3226
      %v3329 = vpop.f32.mrf.mxu0
      %v3330 = vadd.f32 %v3202, %v3329
      %v3331 = vpop.f32.mrf.mxu0
      %3332 = vdwg.mxu0
      %v3333 = vmax.f32 %v3295, 0.0
      %v3334 = vmax.f32 %v3300, 0.0
      %v3335 = vmax.f32 %v3305, 0.0
      %v3336 = vmax.f32 %v3310, 0.0
      %v3337 = vmax.f32 %v3315, 0.0
      %v3338 = vmax.f32 %v3320, 0.0
      %v3339 = vmax.f32 %v3325, 0.0
      %v3340 = vmax.f32 %v3330, 0.0
      %3341 = vst.msk [vmem:[#allocation4] sm:$0xff] %vm1819, 0.0
      %3342 = vst.msk [vmem:[#allocation4 + $0x8] sm:$0x3] %vm1821, 0.0
      %3343 = vst.msk [vmem:[#allocation4 + $0x10] sm:$0xff] %vm1819, 0.0
      %3344 = vst.msk [vmem:[#allocation4 + $0x18] sm:$0x3] %vm1821, 0.0
      %3345 = vst.msk [vmem:[#allocation4 + $0x20] sm:$0xff] %vm1819, 0.0
      %3346 = vst.msk [vmem:[#allocation4 + $0x28] sm:$0x3] %vm1821, 0.0
      %3347 = vst.msk [vmem:[#allocation4 + $0x30] sm:$0xff] %vm1819, 0.0
      %3348 = vst.msk [vmem:[#allocation4 + $0x38] sm:$0x3] %vm1821, 0.0
      %3349 = vst.msk [vmem:[#allocation4 + $0x40] sm:$0xff] %vm1819, 0.0
      %3350 = vst.msk [vmem:[#allocation4 + $0x48] sm:$0x3] %vm1821, 0.0
      %3351 = vst.msk [vmem:[#allocation4 + $0x50] sm:$0xff] %vm1819, 0.0
      %3352 = vst.msk [vmem:[#allocation4 + $0x58] sm:$0x3] %vm1821, 0.0
      %3353 = vst.msk [vmem:[#allocation4 + $0x60] sm:$0xff] %vm1819, 0.0
      %3354 = vst.msk [vmem:[#allocation4 + $0x68] sm:$0x3] %vm1821, 0.0
      %3355 = vst.msk [vmem:[#allocation4 + $0x70] sm:$0xff] %vm1819, 0.0
      %3356 = vst.msk [vmem:[#allocation4 + $0x78] sm:$0x3] %vm1821, 0.0
      %3357 = vst.msk [vmem:[#allocation4 + $0x80] sm:$0xff] %vm1819, 0.0
      %3358 = vst.msk [vmem:[#allocation4 + $0x88] sm:$0x3] %vm1821, 0.0
      %3359 = vst.msk [vmem:[#allocation4 + $0x90] sm:$0xff] %vm1819, 0.0
      %3360 = vst.msk [vmem:[#allocation4 + $0x98] sm:$0x3] %vm1821, 0.0
      %s3361 = scalar_lea.vmem [#allocation4], 16
      %3362 = vst.msk [vmem:[%s3361 + $0x1] sm:$0xff] %vm1819, %v3333
      %3363 = vst.msk [vmem:[%s3361 + $0x11] sm:$0xff] %vm1819, %v3334
      %3364 = vst.msk [vmem:[%s3361 + $0x21] sm:$0xff] %vm1819, %v3335
      %3365 = vst.msk [vmem:[%s3361 + $0x31] sm:$0xff] %vm1819, %v3336
      %3366 = vst.msk [vmem:[%s3361 + $0x41] sm:$0xff] %vm1819, %v3337
      %3367 = vst.msk [vmem:[%s3361 + $0x51] sm:$0xff] %vm1819, %v3338
      %3368 = vst.msk [vmem:[%s3361 + $0x61] sm:$0xff] %vm1819, %v3339
      %3369 = vst.msk [vmem:[%s3361 + $0x71] sm:$0xff] %vm1819, %v3340
      %v3370 = vld [vmem:[#allocation4] sm:$0xff]
      %v3371 = vld [vmem:[#allocation4 + $0x10] sm:$0xff]
      %v3372 = vld [vmem:[#allocation4 + $0x20] sm:$0xff]
      %v3373 = vld [vmem:[#allocation4 + $0x30] sm:$0xff]
      %v3374 = vld [vmem:[#allocation4 + $0x40] sm:$0xff]
      %v3375 = vld [vmem:[#allocation4 + $0x50] sm:$0xff]
      %v3376 = vld [vmem:[#allocation4 + $0x60] sm:$0xff]
      %v3377 = vld [vmem:[#allocation4 + $0x70] sm:$0xff]
      %v3378 = vld [vmem:[%s7] sm:$0xff]
      %v3379 = vld [vmem:[%s7 + $0x8] sm:$0xff]
      %v3380 = vld [vmem:[#allocation4 + $0x1] sm:$0xff]
      %v3381 = vld [vmem:[#allocation4 + $0x11] sm:$0xff]
      %v3382 = vld [vmem:[#allocation4 + $0x21] sm:$0xff]
      %v3383 = vld [vmem:[#allocation4 + $0x31] sm:$0xff]
      %v3384 = vld [vmem:[#allocation4 + $0x41] sm:$0xff]
      %v3385 = vld [vmem:[#allocation4 + $0x51] sm:$0xff]
      %v3386 = vld [vmem:[#allocation4 + $0x61] sm:$0xff]
      %v3387 = vld [vmem:[#allocation4 + $0x71] sm:$0xff]
      %s3388 = scalar_lea.vmem %s7, 16
      %v3389 = vld [vmem:[%s3388] sm:$0xff]
      %v3390 = vld [vmem:[%s3388 + $0x8] sm:$0xff]
      %v3392 = vsel %vm1819, %v3380, 0
      %v3395 = vsel %vm1819, %v3381, 0
      %v3398 = vsel %vm1819, %v3382, 0
      %v3401 = vsel %vm1819, %v3383, 0
      %v3404 = vsel %vm1819, %v3384, 0
      %v3407 = vsel %vm1819, %v3385, 0
      %v3410 = vsel %vm1819, %v3386, 0
      %v3413 = vsel %vm1819, %v3387, 0
      %3415 = vmatprep.subr.mxu0 0.0
      %3416 = vmatpush1.msra.mxu0 0.0
      %3417 = vmatprep.subr.mxu0 0.0
      %3418 = vmatpush1.msra.mxu0 0.0
      %3419 = vmatprep.subr.mxu0 0.0
      %3420 = vmatpush1.msra.mxu0 0.0
      %3421 = vmatprep.subr.mxu0 0.0
      %3422 = vmatpush1.msra.mxu0 0.0
      %3423 = vmatprep.subr.mxu0 0.0
      %3424 = vmatpush1.msra.mxu0 0.0
      %3425 = vmatprep.subr.mxu0 0.0
      %3426 = vmatpush1.msra.mxu0 0.0
      %3427 = vmatprep.subr.mxu0 0.0
      %3428 = vmatpush1.msra.mxu0 0.0
      %3429 = vmatprep.subr.mxu0 0.0
      %3430 = vmatpush1.msra.mxu0 0.0
      %3431 = vmatprep.subr.mxu0 0.0
      %3432 = vmatpush1.msra.mxu0 0.0
      %3433 = vmatprep.subr.mxu0 0.0
      %3434 = vmatpush1.msra.mxu0 0.0
      %3435 = vmatprep.subr.mxu0 0.0
      %3436 = vmatpush1.msra.mxu0 0.0
      %3437 = vmatprep.subr.mxu0 0.0
      %3438 = vmatpush1.msra.mxu0 0.0
      %3439 = vmatprep.subr.mxu0 0.0
      %3440 = vmatpush1.msra.mxu0 0.0
      %3441 = vmatprep.subr.mxu0 0.0
      %3442 = vmatpush1.msra.mxu0 0.0
      %3443 = vmatprep.subr.mxu0 0.0
      %3444 = vmatpush1.msra.mxu0 %v3390
      %3445 = vmatprep.subr.mxu0 0.0
      %3446 = vmatpush1.msra.mxu0 %v3389
      %3447 = vmatprep.subr.mxu0 0.0
      %3448 = vmatpush2.msra.mxu0 0.0
      %3449 = vmatprep.subr.mxu0 0.0
      %3450 = vmatpush2.msra.mxu0 0.0
      %3451 = vmatprep.subr.mxu0 0.0
      %3452 = vmatpush2.msra.mxu0 0.0
      %3453 = vmatprep.subr.mxu0 0.0
      %3454 = vmatpush2.msra.mxu0 0.0
      %3455 = vmatprep.subr.mxu0 0.0
      %3456 = vmatpush2.msra.mxu0 0.0
      %3457 = vmatprep.subr.mxu0 0.0
      %3458 = vmatpush2.msra.mxu0 0.0
      %3459 = vmatprep.subr.mxu0 0.0
      %3460 = vmatpush2.msra.mxu0 0.0
      %3461 = vmatprep.subr.mxu0 0.0
      %3462 = vmatpush2.msra.mxu0 0.0
      %3463 = vmatprep.subr.mxu0 0.0
      %3464 = vmatpush2.msra.mxu0 0.0
      %3465 = vmatprep.subr.mxu0 0.0
      %3466 = vmatpush2.msra.mxu0 0.0
      %3467 = vmatprep.subr.mxu0 0.0
      %3468 = vmatpush2.msra.mxu0 0.0
      %3469 = vmatprep.subr.mxu0 0.0
      %3470 = vmatpush2.msra.mxu0 0.0
      %3471 = vmatprep.subr.mxu0 0.0
      %3472 = vmatpush2.msra.mxu0 0.0
      %3473 = vmatprep.subr.mxu0 0.0
      %3474 = vmatpush2.msra.mxu0 0.0
      %3475 = vmatprep.subr.mxu0 0.0
      %3476 = vmatpush2.msra.mxu0 0.0
      %3477 = vmatprep.subr.mxu0 0.0
      %3478 = vmatpush2.msra.mxu0 0.0
      %3479 = vmatprep.mubr.f32.mxu0 0.0
      %3480 = vmatmul.mubr.f32.gmra.mxu0 %v3392
      %v3481 = vpop.f32.mrf.mxu0
      %v3482 = vadd.f32 0.0, %v3481
      %v3483 = vpop.f32.mrf.mxu0
      %3484 = vmatprep.mubr.f32.mxu0 0.0
      %3485 = vmatmul.mubr.f32.gmra.mxu0 %v3395
      %v3486 = vpop.f32.mrf.mxu0
      %v3487 = vadd.f32 0.0, %v3486
      %v3488 = vpop.f32.mrf.mxu0
      %3489 = vmatprep.mubr.f32.mxu0 0.0
      %3490 = vmatmul.mubr.f32.gmra.mxu0 %v3398
      %v3491 = vpop.f32.mrf.mxu0
      %v3492 = vadd.f32 0.0, %v3491
      %v3493 = vpop.f32.mrf.mxu0
      %3494 = vmatprep.mubr.f32.mxu0 0.0
      %3495 = vmatmul.mubr.f32.gmra.mxu0 %v3401
      %v3496 = vpop.f32.mrf.mxu0
      %v3497 = vadd.f32 0.0, %v3496
      %v3498 = vpop.f32.mrf.mxu0
      %3499 = vmatprep.mubr.f32.mxu0 0.0
      %3500 = vmatmul.mubr.f32.gmra.mxu0 %v3404
      %v3501 = vpop.f32.mrf.mxu0
      %v3502 = vadd.f32 0.0, %v3501
      %v3503 = vpop.f32.mrf.mxu0
      %3504 = vmatprep.mubr.f32.mxu0 0.0
      %3505 = vmatmul.mubr.f32.gmra.mxu0 %v3407
      %v3506 = vpop.f32.mrf.mxu0
      %v3507 = vadd.f32 0.0, %v3506
      %v3508 = vpop.f32.mrf.mxu0
      %3509 = vmatprep.mubr.f32.mxu0 0.0
      %3510 = vmatmul.mubr.f32.gmra.mxu0 %v3410
      %v3511 = vpop.f32.mrf.mxu0
      %v3512 = vadd.f32 0.0, %v3511
      %v3513 = vpop.f32.mrf.mxu0
      %3514 = vmatprep.mubr.f32.mxu0 0.0
      %3515 = vmatmul.mubr.f32.gmra.mxu0 %v3413
      %v3516 = vpop.f32.mrf.mxu0
      %v3517 = vadd.f32 0.0, %v3516
      %v3518 = vpop.f32.mrf.mxu0
      %3519 = vdwg.mxu0
      %v3521 = vsel %vm1819, %v3370, 0
      %v3524 = vsel %vm1819, %v3371, 0
      %v3527 = vsel %vm1819, %v3372, 0
      %v3530 = vsel %vm1819, %v3373, 0
      %v3533 = vsel %vm1819, %v3374, 0
      %v3536 = vsel %vm1819, %v3375, 0
      %v3539 = vsel %vm1819, %v3376, 0
      %v3542 = vsel %vm1819, %v3377, 0
      %3544 = vmatprep.subr.mxu0 0.0
      %3545 = vmatpush1.msra.mxu0 0.0
      %3546 = vmatprep.subr.mxu0 0.0
      %3547 = vmatpush1.msra.mxu0 0.0
      %3548 = vmatprep.subr.mxu0 0.0
      %3549 = vmatpush1.msra.mxu0 0.0
      %3550 = vmatprep.subr.mxu0 0.0
      %3551 = vmatpush1.msra.mxu0 0.0
      %3552 = vmatprep.subr.mxu0 0.0
      %3553 = vmatpush1.msra.mxu0 0.0
      %3554 = vmatprep.subr.mxu0 0.0
      %3555 = vmatpush1.msra.mxu0 0.0
      %3556 = vmatprep.subr.mxu0 0.0
      %3557 = vmatpush1.msra.mxu0 0.0
      %3558 = vmatprep.subr.mxu0 0.0
      %3559 = vmatpush1.msra.mxu0 0.0
      %3560 = vmatprep.subr.mxu0 0.0
      %3561 = vmatpush1.msra.mxu0 0.0
      %3562 = vmatprep.subr.mxu0 0.0
      %3563 = vmatpush1.msra.mxu0 0.0
      %3564 = vmatprep.subr.mxu0 0.0
      %3565 = vmatpush1.msra.mxu0 0.0
      %3566 = vmatprep.subr.mxu0 0.0
      %3567 = vmatpush1.msra.mxu0 0.0
      %3568 = vmatprep.subr.mxu0 0.0
      %3569 = vmatpush1.msra.mxu0 0.0
      %3570 = vmatprep.subr.mxu0 0.0
      %3571 = vmatpush1.msra.mxu0 0.0
      %3572 = vmatprep.subr.mxu0 0.0
      %3573 = vmatpush1.msra.mxu0 %v3379
      %3574 = vmatprep.subr.mxu0 0.0
      %3575 = vmatpush1.msra.mxu0 %v3378
      %3576 = vmatprep.subr.mxu0 0.0
      %3577 = vmatpush2.msra.mxu0 0.0
      %3578 = vmatprep.subr.mxu0 0.0
      %3579 = vmatpush2.msra.mxu0 0.0
      %3580 = vmatprep.subr.mxu0 0.0
      %3581 = vmatpush2.msra.mxu0 0.0
      %3582 = vmatprep.subr.mxu0 0.0
      %3583 = vmatpush2.msra.mxu0 0.0
      %3584 = vmatprep.subr.mxu0 0.0
      %3585 = vmatpush2.msra.mxu0 0.0
      %3586 = vmatprep.subr.mxu0 0.0
      %3587 = vmatpush2.msra.mxu0 0.0
      %3588 = vmatprep.subr.mxu0 0.0
      %3589 = vmatpush2.msra.mxu0 0.0
      %3590 = vmatprep.subr.mxu0 0.0
      %3591 = vmatpush2.msra.mxu0 0.0
      %3592 = vmatprep.subr.mxu0 0.0
      %3593 = vmatpush2.msra.mxu0 0.0
      %3594 = vmatprep.subr.mxu0 0.0
      %3595 = vmatpush2.msra.mxu0 0.0
      %3596 = vmatprep.subr.mxu0 0.0
      %3597 = vmatpush2.msra.mxu0 0.0
      %3598 = vmatprep.subr.mxu0 0.0
      %3599 = vmatpush2.msra.mxu0 0.0
      %3600 = vmatprep.subr.mxu0 0.0
      %3601 = vmatpush2.msra.mxu0 0.0
      %3602 = vmatprep.subr.mxu0 0.0
      %3603 = vmatpush2.msra.mxu0 0.0
      %3604 = vmatprep.subr.mxu0 0.0
      %3605 = vmatpush2.msra.mxu0 0.0
      %3606 = vmatprep.subr.mxu0 0.0
      %3607 = vmatpush2.msra.mxu0 0.0
      %3608 = vmatprep.mubr.f32.mxu0 0.0
      %3609 = vmatmul.mubr.f32.gmra.mxu0 %v3521
      %v3610 = vpop.f32.mrf.mxu0
      %v3611 = vadd.f32 %v3482, %v3610
      %v3612 = vpop.f32.mrf.mxu0
      %3613 = vmatprep.mubr.f32.mxu0 0.0
      %3614 = vmatmul.mubr.f32.gmra.mxu0 %v3524
      %v3615 = vpop.f32.mrf.mxu0
      %v3616 = vadd.f32 %v3487, %v3615
      %v3617 = vpop.f32.mrf.mxu0
      %3618 = vmatprep.mubr.f32.mxu0 0.0
      %3619 = vmatmul.mubr.f32.gmra.mxu0 %v3527
      %v3620 = vpop.f32.mrf.mxu0
      %v3621 = vadd.f32 %v3492, %v3620
      %v3622 = vpop.f32.mrf.mxu0
      %3623 = vmatprep.mubr.f32.mxu0 0.0
      %3624 = vmatmul.mubr.f32.gmra.mxu0 %v3530
      %v3625 = vpop.f32.mrf.mxu0
      %v3626 = vadd.f32 %v3497, %v3625
      %v3627 = vpop.f32.mrf.mxu0
      %3628 = vmatprep.mubr.f32.mxu0 0.0
      %3629 = vmatmul.mubr.f32.gmra.mxu0 %v3533
      %v3630 = vpop.f32.mrf.mxu0
      %v3631 = vadd.f32 %v3502, %v3630
      %v3632 = vpop.f32.mrf.mxu0
      %3633 = vmatprep.mubr.f32.mxu0 0.0
      %3634 = vmatmul.mubr.f32.gmra.mxu0 %v3536
      %v3635 = vpop.f32.mrf.mxu0
      %v3636 = vadd.f32 %v3507, %v3635
      %v3637 = vpop.f32.mrf.mxu0
      %3638 = vmatprep.mubr.f32.mxu0 0.0
      %3639 = vmatmul.mubr.f32.gmra.mxu0 %v3539
      %v3640 = vpop.f32.mrf.mxu0
      %v3641 = vadd.f32 %v3512, %v3640
      %v3642 = vpop.f32.mrf.mxu0
      %3643 = vmatprep.mubr.f32.mxu0 0.0
      %3644 = vmatmul.mubr.f32.gmra.mxu0 %v3542
      %v3645 = vpop.f32.mrf.mxu0
      %v3646 = vadd.f32 %v3517, %v3645
      %v3647 = vpop.f32.mrf.mxu0
      %3648 = vdwg.mxu0
      %v3649 = vld [vmem:[#allocation4 + $0x2] sm:$0xff]
      %v3650 = vld [vmem:[#allocation4 + $0x12] sm:$0xff]
      %v3651 = vld [vmem:[#allocation4 + $0x22] sm:$0xff]
      %v3652 = vld [vmem:[#allocation4 + $0x32] sm:$0xff]
      %v3653 = vld [vmem:[#allocation4 + $0x42] sm:$0xff]
      %v3654 = vld [vmem:[#allocation4 + $0x52] sm:$0xff]
      %v3655 = vld [vmem:[#allocation4 + $0x62] sm:$0xff]
      %v3656 = vld [vmem:[#allocation4 + $0x72] sm:$0xff]
      %s3657 = scalar_lea.vmem %s7, 32
      %v3658 = vld [vmem:[%s3657] sm:$0xff]
      %v3659 = vld [vmem:[%s3657 + $0x8] sm:$0xff]
      %v3661 = vsel %vm1819, %v3649, 0
      %v3664 = vsel %vm1819, %v3650, 0
      %v3667 = vsel %vm1819, %v3651, 0
      %v3670 = vsel %vm1819, %v3652, 0
      %v3673 = vsel %vm1819, %v3653, 0
      %v3676 = vsel %vm1819, %v3654, 0
      %v3679 = vsel %vm1819, %v3655, 0
      %v3682 = vsel %vm1819, %v3656, 0
      %3684 = vmatprep.subr.mxu0 0.0
      %3685 = vmatpush1.msra.mxu0 0.0
      %3686 = vmatprep.subr.mxu0 0.0
      %3687 = vmatpush1.msra.mxu0 0.0
      %3688 = vmatprep.subr.mxu0 0.0
      %3689 = vmatpush1.msra.mxu0 0.0
      %3690 = vmatprep.subr.mxu0 0.0
      %3691 = vmatpush1.msra.mxu0 0.0
      %3692 = vmatprep.subr.mxu0 0.0
      %3693 = vmatpush1.msra.mxu0 0.0
      %3694 = vmatprep.subr.mxu0 0.0
      %3695 = vmatpush1.msra.mxu0 0.0
      %3696 = vmatprep.subr.mxu0 0.0
      %3697 = vmatpush1.msra.mxu0 0.0
      %3698 = vmatprep.subr.mxu0 0.0
      %3699 = vmatpush1.msra.mxu0 0.0
      %3700 = vmatprep.subr.mxu0 0.0
      %3701 = vmatpush1.msra.mxu0 0.0
      %3702 = vmatprep.subr.mxu0 0.0
      %3703 = vmatpush1.msra.mxu0 0.0
      %3704 = vmatprep.subr.mxu0 0.0
      %3705 = vmatpush1.msra.mxu0 0.0
      %3706 = vmatprep.subr.mxu0 0.0
      %3707 = vmatpush1.msra.mxu0 0.0
      %3708 = vmatprep.subr.mxu0 0.0
      %3709 = vmatpush1.msra.mxu0 0.0
      %3710 = vmatprep.subr.mxu0 0.0
      %3711 = vmatpush1.msra.mxu0 0.0
      %3712 = vmatprep.subr.mxu0 0.0
      %3713 = vmatpush1.msra.mxu0 %v3659
      %3714 = vmatprep.subr.mxu0 0.0
      %3715 = vmatpush1.msra.mxu0 %v3658
      %3716 = vmatprep.subr.mxu0 0.0
      %3717 = vmatpush2.msra.mxu0 0.0
      %3718 = vmatprep.subr.mxu0 0.0
      %3719 = vmatpush2.msra.mxu0 0.0
      %3720 = vmatprep.subr.mxu0 0.0
      %3721 = vmatpush2.msra.mxu0 0.0
      %3722 = vmatprep.subr.mxu0 0.0
      %3723 = vmatpush2.msra.mxu0 0.0
      %3724 = vmatprep.subr.mxu0 0.0
      %3725 = vmatpush2.msra.mxu0 0.0
      %3726 = vmatprep.subr.mxu0 0.0
      %3727 = vmatpush2.msra.mxu0 0.0
      %3728 = vmatprep.subr.mxu0 0.0
      %3729 = vmatpush2.msra.mxu0 0.0
      %3730 = vmatprep.subr.mxu0 0.0
      %3731 = vmatpush2.msra.mxu0 0.0
      %3732 = vmatprep.subr.mxu0 0.0
      %3733 = vmatpush2.msra.mxu0 0.0
      %3734 = vmatprep.subr.mxu0 0.0
      %3735 = vmatpush2.msra.mxu0 0.0
      %3736 = vmatprep.subr.mxu0 0.0
      %3737 = vmatpush2.msra.mxu0 0.0
      %3738 = vmatprep.subr.mxu0 0.0
      %3739 = vmatpush2.msra.mxu0 0.0
      %3740 = vmatprep.subr.mxu0 0.0
      %3741 = vmatpush2.msra.mxu0 0.0
      %3742 = vmatprep.subr.mxu0 0.0
      %3743 = vmatpush2.msra.mxu0 0.0
      %3744 = vmatprep.subr.mxu0 0.0
      %3745 = vmatpush2.msra.mxu0 0.0
      %3746 = vmatprep.subr.mxu0 0.0
      %3747 = vmatpush2.msra.mxu0 0.0
      %3748 = vmatprep.mubr.f32.mxu0 0.0
      %3749 = vmatmul.mubr.f32.gmra.mxu0 %v3661
      %v3750 = vpop.f32.mrf.mxu0
      %v3751 = vadd.f32 0.0, %v3750
      %v3752 = vpop.f32.mrf.mxu0
      %3753 = vmatprep.mubr.f32.mxu0 0.0
      %3754 = vmatmul.mubr.f32.gmra.mxu0 %v3664
      %v3755 = vpop.f32.mrf.mxu0
      %v3756 = vadd.f32 0.0, %v3755
      %v3757 = vpop.f32.mrf.mxu0
      %3758 = vmatprep.mubr.f32.mxu0 0.0
      %3759 = vmatmul.mubr.f32.gmra.mxu0 %v3667
      %v3760 = vpop.f32.mrf.mxu0
      %v3761 = vadd.f32 0.0, %v3760
      %v3762 = vpop.f32.mrf.mxu0
      %3763 = vmatprep.mubr.f32.mxu0 0.0
      %3764 = vmatmul.mubr.f32.gmra.mxu0 %v3670
      %v3765 = vpop.f32.mrf.mxu0
      %v3766 = vadd.f32 0.0, %v3765
      %v3767 = vpop.f32.mrf.mxu0
      %3768 = vmatprep.mubr.f32.mxu0 0.0
      %3769 = vmatmul.mubr.f32.gmra.mxu0 %v3673
      %v3770 = vpop.f32.mrf.mxu0
      %v3771 = vadd.f32 0.0, %v3770
      %v3772 = vpop.f32.mrf.mxu0
      %3773 = vmatprep.mubr.f32.mxu0 0.0
      %3774 = vmatmul.mubr.f32.gmra.mxu0 %v3676
      %v3775 = vpop.f32.mrf.mxu0
      %v3776 = vadd.f32 0.0, %v3775
      %v3777 = vpop.f32.mrf.mxu0
      %3778 = vmatprep.mubr.f32.mxu0 0.0
      %3779 = vmatmul.mubr.f32.gmra.mxu0 %v3679
      %v3780 = vpop.f32.mrf.mxu0
      %v3781 = vadd.f32 0.0, %v3780
      %v3782 = vpop.f32.mrf.mxu0
      %3783 = vmatprep.mubr.f32.mxu0 0.0
      %3784 = vmatmul.mubr.f32.gmra.mxu0 %v3682
      %v3785 = vpop.f32.mrf.mxu0
      %v3786 = vadd.f32 0.0, %v3785
      %v3787 = vpop.f32.mrf.mxu0
      %3788 = vdwg.mxu0
      %v3789 = vadd.f32 %v3611, %v3751
      %v3790 = vadd.f32 %v3616, %v3756
      %v3791 = vadd.f32 %v3621, %v3761
      %v3792 = vadd.f32 %v3626, %v3766
      %v3793 = vadd.f32 %v3631, %v3771
      %v3794 = vadd.f32 %v3636, %v3776
      %v3795 = vadd.f32 %v3641, %v3781
      %v3796 = vadd.f32 %v3646, %v3786
      %v3797 = vld [vmem:[%s3361] sm:$0xff]
      %v3798 = vld [vmem:[%s3361 + $0x10] sm:$0xff]
      %v3799 = vld [vmem:[%s3361 + $0x20] sm:$0xff]
      %v3800 = vld [vmem:[%s3361 + $0x30] sm:$0xff]
      %v3801 = vld [vmem:[%s3361 + $0x40] sm:$0xff]
      %v3802 = vld [vmem:[%s3361 + $0x50] sm:$0xff]
      %v3803 = vld [vmem:[%s3361 + $0x60] sm:$0xff]
      %v3804 = vld [vmem:[%s3361 + $0x70] sm:$0xff]
      %s3805 = scalar_lea.vmem %s7, 48
      %v3806 = vld [vmem:[%s3805] sm:$0xff]
      %v3807 = vld [vmem:[%s3805 + $0x8] sm:$0xff]
      %v3809 = vsel %vm1819, %v3797, 0
      %v3812 = vsel %vm1819, %v3798, 0
      %v3815 = vsel %vm1819, %v3799, 0
      %v3818 = vsel %vm1819, %v3800, 0
      %v3821 = vsel %vm1819, %v3801, 0
      %v3824 = vsel %vm1819, %v3802, 0
      %v3827 = vsel %vm1819, %v3803, 0
      %v3830 = vsel %vm1819, %v3804, 0
      %3832 = vmatprep.subr.mxu0 0.0
      %3833 = vmatpush1.msra.mxu0 0.0
      %3834 = vmatprep.subr.mxu0 0.0
      %3835 = vmatpush1.msra.mxu0 0.0
      %3836 = vmatprep.subr.mxu0 0.0
      %3837 = vmatpush1.msra.mxu0 0.0
      %3838 = vmatprep.subr.mxu0 0.0
      %3839 = vmatpush1.msra.mxu0 0.0
      %3840 = vmatprep.subr.mxu0 0.0
      %3841 = vmatpush1.msra.mxu0 0.0
      %3842 = vmatprep.subr.mxu0 0.0
      %3843 = vmatpush1.msra.mxu0 0.0
      %3844 = vmatprep.subr.mxu0 0.0
      %3845 = vmatpush1.msra.mxu0 0.0
      %3846 = vmatprep.subr.mxu0 0.0
      %3847 = vmatpush1.msra.mxu0 0.0
      %3848 = vmatprep.subr.mxu0 0.0
      %3849 = vmatpush1.msra.mxu0 0.0
      %3850 = vmatprep.subr.mxu0 0.0
      %3851 = vmatpush1.msra.mxu0 0.0
      %3852 = vmatprep.subr.mxu0 0.0
      %3853 = vmatpush1.msra.mxu0 0.0
      %3854 = vmatprep.subr.mxu0 0.0
      %3855 = vmatpush1.msra.mxu0 0.0
      %3856 = vmatprep.subr.mxu0 0.0
      %3857 = vmatpush1.msra.mxu0 0.0
      %3858 = vmatprep.subr.mxu0 0.0
      %3859 = vmatpush1.msra.mxu0 0.0
      %3860 = vmatprep.subr.mxu0 0.0
      %3861 = vmatpush1.msra.mxu0 %v3807
      %3862 = vmatprep.subr.mxu0 0.0
      %3863 = vmatpush1.msra.mxu0 %v3806
      %3864 = vmatprep.subr.mxu0 0.0
      %3865 = vmatpush2.msra.mxu0 0.0
      %3866 = vmatprep.subr.mxu0 0.0
      %3867 = vmatpush2.msra.mxu0 0.0
      %3868 = vmatprep.subr.mxu0 0.0
      %3869 = vmatpush2.msra.mxu0 0.0
      %3870 = vmatprep.subr.mxu0 0.0
      %3871 = vmatpush2.msra.mxu0 0.0
      %3872 = vmatprep.subr.mxu0 0.0
      %3873 = vmatpush2.msra.mxu0 0.0
      %3874 = vmatprep.subr.mxu0 0.0
      %3875 = vmatpush2.msra.mxu0 0.0
      %3876 = vmatprep.subr.mxu0 0.0
      %3877 = vmatpush2.msra.mxu0 0.0
      %3878 = vmatprep.subr.mxu0 0.0
      %3879 = vmatpush2.msra.mxu0 0.0
      %3880 = vmatprep.subr.mxu0 0.0
      %3881 = vmatpush2.msra.mxu0 0.0
      %3882 = vmatprep.subr.mxu0 0.0
      %3883 = vmatpush2.msra.mxu0 0.0
      %3884 = vmatprep.subr.mxu0 0.0
      %3885 = vmatpush2.msra.mxu0 0.0
      %3886 = vmatprep.subr.mxu0 0.0
      %3887 = vmatpush2.msra.mxu0 0.0
      %3888 = vmatprep.subr.mxu0 0.0
      %3889 = vmatpush2.msra.mxu0 0.0
      %3890 = vmatprep.subr.mxu0 0.0
      %3891 = vmatpush2.msra.mxu0 0.0
      %3892 = vmatprep.subr.mxu0 0.0
      %3893 = vmatpush2.msra.mxu0 0.0
      %3894 = vmatprep.subr.mxu0 0.0
      %3895 = vmatpush2.msra.mxu0 0.0
      %3896 = vmatprep.mubr.f32.mxu0 0.0
      %3897 = vmatmul.mubr.f32.gmra.mxu0 %v3809
      %v3898 = vpop.f32.mrf.mxu0
      %v3899 = vadd.f32 0.0, %v3898
      %v3900 = vpop.f32.mrf.mxu0
      %3901 = vmatprep.mubr.f32.mxu0 0.0
      %3902 = vmatmul.mubr.f32.gmra.mxu0 %v3812
      %v3903 = vpop.f32.mrf.mxu0
      %v3904 = vadd.f32 0.0, %v3903
      %v3905 = vpop.f32.mrf.mxu0
      %3906 = vmatprep.mubr.f32.mxu0 0.0
      %3907 = vmatmul.mubr.f32.gmra.mxu0 %v3815
      %v3908 = vpop.f32.mrf.mxu0
      %v3909 = vadd.f32 0.0, %v3908
      %v3910 = vpop.f32.mrf.mxu0
      %3911 = vmatprep.mubr.f32.mxu0 0.0
      %3912 = vmatmul.mubr.f32.gmra.mxu0 %v3818
      %v3913 = vpop.f32.mrf.mxu0
      %v3914 = vadd.f32 0.0, %v3913
      %v3915 = vpop.f32.mrf.mxu0
      %3916 = vmatprep.mubr.f32.mxu0 0.0
      %3917 = vmatmul.mubr.f32.gmra.mxu0 %v3821
      %v3918 = vpop.f32.mrf.mxu0
      %v3919 = vadd.f32 0.0, %v3918
      %v3920 = vpop.f32.mrf.mxu0
      %3921 = vmatprep.mubr.f32.mxu0 0.0
      %3922 = vmatmul.mubr.f32.gmra.mxu0 %v3824
      %v3923 = vpop.f32.mrf.mxu0
      %v3924 = vadd.f32 0.0, %v3923
      %v3925 = vpop.f32.mrf.mxu0
      %3926 = vmatprep.mubr.f32.mxu0 0.0
      %3927 = vmatmul.mubr.f32.gmra.mxu0 %v3827
      %v3928 = vpop.f32.mrf.mxu0
      %v3929 = vadd.f32 0.0, %v3928
      %v3930 = vpop.f32.mrf.mxu0
      %3931 = vmatprep.mubr.f32.mxu0 0.0
      %3932 = vmatmul.mubr.f32.gmra.mxu0 %v3830
      %v3933 = vpop.f32.mrf.mxu0
      %v3934 = vadd.f32 0.0, %v3933
      %v3935 = vpop.f32.mrf.mxu0
      %3936 = vdwg.mxu0
      %v3937 = vadd.f32 %v3789, %v3899
      %v3938 = vadd.f32 %v3790, %v3904
      %v3939 = vadd.f32 %v3791, %v3909
      %v3940 = vadd.f32 %v3792, %v3914
      %v3941 = vadd.f32 %v3793, %v3919
      %v3942 = vadd.f32 %v3794, %v3924
      %v3943 = vadd.f32 %v3795, %v3929
      %v3944 = vadd.f32 %v3796, %v3934
      %v3945 = vld [vmem:[%s3361 + $0x1] sm:$0xff]
      %v3946 = vld [vmem:[%s3361 + $0x11] sm:$0xff]
      %v3947 = vld [vmem:[%s3361 + $0x21] sm:$0xff]
      %v3948 = vld [vmem:[%s3361 + $0x31] sm:$0xff]
      %v3949 = vld [vmem:[%s3361 + $0x41] sm:$0xff]
      %v3950 = vld [vmem:[%s3361 + $0x51] sm:$0xff]
      %v3951 = vld [vmem:[%s3361 + $0x61] sm:$0xff]
      %v3952 = vld [vmem:[%s3361 + $0x71] sm:$0xff]
      %s3953 = scalar_lea.vmem %s7, 64
      %v3954 = vld [vmem:[%s3953] sm:$0xff]
      %v3955 = vld [vmem:[%s3953 + $0x8] sm:$0xff]
      %v3957 = vsel %vm1819, %v3945, 0
      %v3960 = vsel %vm1819, %v3946, 0
      %v3963 = vsel %vm1819, %v3947, 0
      %v3966 = vsel %vm1819, %v3948, 0
      %v3969 = vsel %vm1819, %v3949, 0
      %v3972 = vsel %vm1819, %v3950, 0
      %v3975 = vsel %vm1819, %v3951, 0
      %v3978 = vsel %vm1819, %v3952, 0
      %3980 = vmatprep.subr.mxu0 0.0
      %3981 = vmatpush1.msra.mxu0 0.0
      %3982 = vmatprep.subr.mxu0 0.0
      %3983 = vmatpush1.msra.mxu0 0.0
      %3984 = vmatprep.subr.mxu0 0.0
      %3985 = vmatpush1.msra.mxu0 0.0
      %3986 = vmatprep.subr.mxu0 0.0
      %3987 = vmatpush1.msra.mxu0 0.0
      %3988 = vmatprep.subr.mxu0 0.0
      %3989 = vmatpush1.msra.mxu0 0.0
      %3990 = vmatprep.subr.mxu0 0.0
      %3991 = vmatpush1.msra.mxu0 0.0
      %3992 = vmatprep.subr.mxu0 0.0
      %3993 = vmatpush1.msra.mxu0 0.0
      %3994 = vmatprep.subr.mxu0 0.0
      %3995 = vmatpush1.msra.mxu0 0.0
      %3996 = vmatprep.subr.mxu0 0.0
      %3997 = vmatpush1.msra.mxu0 0.0
      %3998 = vmatprep.subr.mxu0 0.0
      %3999 = vmatpush1.msra.mxu0 0.0
      %4000 = vmatprep.subr.mxu0 0.0
      %4001 = vmatpush1.msra.mxu0 0.0
      %4002 = vmatprep.subr.mxu0 0.0
      %4003 = vmatpush1.msra.mxu0 0.0
      %4004 = vmatprep.subr.mxu0 0.0
      %4005 = vmatpush1.msra.mxu0 0.0
      %4006 = vmatprep.subr.mxu0 0.0
      %4007 = vmatpush1.msra.mxu0 0.0
      %4008 = vmatprep.subr.mxu0 0.0
      %4009 = vmatpush1.msra.mxu0 %v3955
      %4010 = vmatprep.subr.mxu0 0.0
      %4011 = vmatpush1.msra.mxu0 %v3954
      %4012 = vmatprep.subr.mxu0 0.0
      %4013 = vmatpush2.msra.mxu0 0.0
      %4014 = vmatprep.subr.mxu0 0.0
      %4015 = vmatpush2.msra.mxu0 0.0
      %4016 = vmatprep.subr.mxu0 0.0
      %4017 = vmatpush2.msra.mxu0 0.0
      %4018 = vmatprep.subr.mxu0 0.0
      %4019 = vmatpush2.msra.mxu0 0.0
      %4020 = vmatprep.subr.mxu0 0.0
      %4021 = vmatpush2.msra.mxu0 0.0
      %4022 = vmatprep.subr.mxu0 0.0
      %4023 = vmatpush2.msra.mxu0 0.0
      %4024 = vmatprep.subr.mxu0 0.0
      %4025 = vmatpush2.msra.mxu0 0.0
      %4026 = vmatprep.subr.mxu0 0.0
      %4027 = vmatpush2.msra.mxu0 0.0
      %4028 = vmatprep.subr.mxu0 0.0
      %4029 = vmatpush2.msra.mxu0 0.0
      %4030 = vmatprep.subr.mxu0 0.0
      %4031 = vmatpush2.msra.mxu0 0.0
      %4032 = vmatprep.subr.mxu0 0.0
      %4033 = vmatpush2.msra.mxu0 0.0
      %4034 = vmatprep.subr.mxu0 0.0
      %4035 = vmatpush2.msra.mxu0 0.0
      %4036 = vmatprep.subr.mxu0 0.0
      %4037 = vmatpush2.msra.mxu0 0.0
      %4038 = vmatprep.subr.mxu0 0.0
      %4039 = vmatpush2.msra.mxu0 0.0
      %4040 = vmatprep.subr.mxu0 0.0
      %4041 = vmatpush2.msra.mxu0 0.0
      %4042 = vmatprep.subr.mxu0 0.0
      %4043 = vmatpush2.msra.mxu0 0.0
      %4044 = vmatprep.mubr.f32.mxu0 0.0
      %4045 = vmatmul.mubr.f32.gmra.mxu0 %v3957
      %v4046 = vpop.f32.mrf.mxu0
      %v4047 = vadd.f32 0.0, %v4046
      %v4048 = vpop.f32.mrf.mxu0
      %4049 = vmatprep.mubr.f32.mxu0 0.0
      %4050 = vmatmul.mubr.f32.gmra.mxu0 %v3960
      %v4051 = vpop.f32.mrf.mxu0
      %v4052 = vadd.f32 0.0, %v4051
      %v4053 = vpop.f32.mrf.mxu0
      %4054 = vmatprep.mubr.f32.mxu0 0.0
      %4055 = vmatmul.mubr.f32.gmra.mxu0 %v3963
      %v4056 = vpop.f32.mrf.mxu0
      %v4057 = vadd.f32 0.0, %v4056
      %v4058 = vpop.f32.mrf.mxu0
      %4059 = vmatprep.mubr.f32.mxu0 0.0
      %4060 = vmatmul.mubr.f32.gmra.mxu0 %v3966
      %v4061 = vpop.f32.mrf.mxu0
      %v4062 = vadd.f32 0.0, %v4061
      %v4063 = vpop.f32.mrf.mxu0
      %4064 = vmatprep.mubr.f32.mxu0 0.0
      %4065 = vmatmul.mubr.f32.gmra.mxu0 %v3969
      %v4066 = vpop.f32.mrf.mxu0
      %v4067 = vadd.f32 0.0, %v4066
      %v4068 = vpop.f32.mrf.mxu0
      %4069 = vmatprep.mubr.f32.mxu0 0.0
      %4070 = vmatmul.mubr.f32.gmra.mxu0 %v3972
      %v4071 = vpop.f32.mrf.mxu0
      %v4072 = vadd.f32 0.0, %v4071
      %v4073 = vpop.f32.mrf.mxu0
      %4074 = vmatprep.mubr.f32.mxu0 0.0
      %4075 = vmatmul.mubr.f32.gmra.mxu0 %v3975
      %v4076 = vpop.f32.mrf.mxu0
      %v4077 = vadd.f32 0.0, %v4076
      %v4078 = vpop.f32.mrf.mxu0
      %4079 = vmatprep.mubr.f32.mxu0 0.0
      %4080 = vmatmul.mubr.f32.gmra.mxu0 %v3978
      %v4081 = vpop.f32.mrf.mxu0
      %v4082 = vadd.f32 0.0, %v4081
      %v4083 = vpop.f32.mrf.mxu0
      %4084 = vdwg.mxu0
      %v4085 = vadd.f32 %v3937, %v4047
      %v4086 = vadd.f32 %v3938, %v4052
      %v4087 = vadd.f32 %v3939, %v4057
      %v4088 = vadd.f32 %v3940, %v4062
      %v4089 = vadd.f32 %v3941, %v4067
      %v4090 = vadd.f32 %v3942, %v4072
      %v4091 = vadd.f32 %v3943, %v4077
      %v4092 = vadd.f32 %v3944, %v4082
      %v4093 = vld [vmem:[%s3361 + $0x2] sm:$0xff]
      %v4094 = vld [vmem:[%s3361 + $0x12] sm:$0xff]
      %v4095 = vld [vmem:[%s3361 + $0x22] sm:$0xff]
      %v4096 = vld [vmem:[%s3361 + $0x32] sm:$0xff]
      %v4097 = vld [vmem:[%s3361 + $0x42] sm:$0xff]
      %v4098 = vld [vmem:[%s3361 + $0x52] sm:$0xff]
      %v4099 = vld [vmem:[%s3361 + $0x62] sm:$0xff]
      %v4100 = vld [vmem:[%s3361 + $0x72] sm:$0xff]
      %s4101 = scalar_lea.vmem %s7, 80
      %v4102 = vld [vmem:[%s4101] sm:$0xff]
      %v4103 = vld [vmem:[%s4101 + $0x8] sm:$0xff]
      %v4105 = vsel %vm1819, %v4093, 0
      %v4108 = vsel %vm1819, %v4094, 0
      %v4111 = vsel %vm1819, %v4095, 0
      %v4114 = vsel %vm1819, %v4096, 0
      %v4117 = vsel %vm1819, %v4097, 0
      %v4120 = vsel %vm1819, %v4098, 0
      %v4123 = vsel %vm1819, %v4099, 0
      %v4126 = vsel %vm1819, %v4100, 0
      %4128 = vmatprep.subr.mxu0 0.0
      %4129 = vmatpush1.msra.mxu0 0.0
      %4130 = vmatprep.subr.mxu0 0.0
      %4131 = vmatpush1.msra.mxu0 0.0
      %4132 = vmatprep.subr.mxu0 0.0
      %4133 = vmatpush1.msra.mxu0 0.0
      %4134 = vmatprep.subr.mxu0 0.0
      %4135 = vmatpush1.msra.mxu0 0.0
      %4136 = vmatprep.subr.mxu0 0.0
      %4137 = vmatpush1.msra.mxu0 0.0
      %4138 = vmatprep.subr.mxu0 0.0
      %4139 = vmatpush1.msra.mxu0 0.0
      %4140 = vmatprep.subr.mxu0 0.0
      %4141 = vmatpush1.msra.mxu0 0.0
      %4142 = vmatprep.subr.mxu0 0.0
      %4143 = vmatpush1.msra.mxu0 0.0
      %4144 = vmatprep.subr.mxu0 0.0
      %4145 = vmatpush1.msra.mxu0 0.0
      %4146 = vmatprep.subr.mxu0 0.0
      %4147 = vmatpush1.msra.mxu0 0.0
      %4148 = vmatprep.subr.mxu0 0.0
      %4149 = vmatpush1.msra.mxu0 0.0
      %4150 = vmatprep.subr.mxu0 0.0
      %4151 = vmatpush1.msra.mxu0 0.0
      %4152 = vmatprep.subr.mxu0 0.0
      %4153 = vmatpush1.msra.mxu0 0.0
      %4154 = vmatprep.subr.mxu0 0.0
      %4155 = vmatpush1.msra.mxu0 0.0
      %4156 = vmatprep.subr.mxu0 0.0
      %4157 = vmatpush1.msra.mxu0 %v4103
      %4158 = vmatprep.subr.mxu0 0.0
      %4159 = vmatpush1.msra.mxu0 %v4102
      %4160 = vmatprep.subr.mxu0 0.0
      %4161 = vmatpush2.msra.mxu0 0.0
      %4162 = vmatprep.subr.mxu0 0.0
      %4163 = vmatpush2.msra.mxu0 0.0
      %4164 = vmatprep.subr.mxu0 0.0
      %4165 = vmatpush2.msra.mxu0 0.0
      %4166 = vmatprep.subr.mxu0 0.0
      %4167 = vmatpush2.msra.mxu0 0.0
      %4168 = vmatprep.subr.mxu0 0.0
      %4169 = vmatpush2.msra.mxu0 0.0
      %4170 = vmatprep.subr.mxu0 0.0
      %4171 = vmatpush2.msra.mxu0 0.0
      %4172 = vmatprep.subr.mxu0 0.0
      %4173 = vmatpush2.msra.mxu0 0.0
      %4174 = vmatprep.subr.mxu0 0.0
      %4175 = vmatpush2.msra.mxu0 0.0
      %4176 = vmatprep.subr.mxu0 0.0
      %4177 = vmatpush2.msra.mxu0 0.0
      %4178 = vmatprep.subr.mxu0 0.0
      %4179 = vmatpush2.msra.mxu0 0.0
      %4180 = vmatprep.subr.mxu0 0.0
      %4181 = vmatpush2.msra.mxu0 0.0
      %4182 = vmatprep.subr.mxu0 0.0
      %4183 = vmatpush2.msra.mxu0 0.0
      %4184 = vmatprep.subr.mxu0 0.0
      %4185 = vmatpush2.msra.mxu0 0.0
      %4186 = vmatprep.subr.mxu0 0.0
      %4187 = vmatpush2.msra.mxu0 0.0
      %4188 = vmatprep.subr.mxu0 0.0
      %4189 = vmatpush2.msra.mxu0 0.0
      %4190 = vmatprep.subr.mxu0 0.0
      %4191 = vmatpush2.msra.mxu0 0.0
      %4192 = vmatprep.mubr.f32.mxu0 0.0
      %4193 = vmatmul.mubr.f32.gmra.mxu0 %v4105
      %v4194 = vpop.f32.mrf.mxu0
      %v4195 = vadd.f32 0.0, %v4194
      %v4196 = vpop.f32.mrf.mxu0
      %4197 = vmatprep.mubr.f32.mxu0 0.0
      %4198 = vmatmul.mubr.f32.gmra.mxu0 %v4108
      %v4199 = vpop.f32.mrf.mxu0
      %v4200 = vadd.f32 0.0, %v4199
      %v4201 = vpop.f32.mrf.mxu0
      %4202 = vmatprep.mubr.f32.mxu0 0.0
      %4203 = vmatmul.mubr.f32.gmra.mxu0 %v4111
      %v4204 = vpop.f32.mrf.mxu0
      %v4205 = vadd.f32 0.0, %v4204
      %v4206 = vpop.f32.mrf.mxu0
      %4207 = vmatprep.mubr.f32.mxu0 0.0
      %4208 = vmatmul.mubr.f32.gmra.mxu0 %v4114
      %v4209 = vpop.f32.mrf.mxu0
      %v4210 = vadd.f32 0.0, %v4209
      %v4211 = vpop.f32.mrf.mxu0
      %4212 = vmatprep.mubr.f32.mxu0 0.0
      %4213 = vmatmul.mubr.f32.gmra.mxu0 %v4117
      %v4214 = vpop.f32.mrf.mxu0
      %v4215 = vadd.f32 0.0, %v4214
      %v4216 = vpop.f32.mrf.mxu0
      %4217 = vmatprep.mubr.f32.mxu0 0.0
      %4218 = vmatmul.mubr.f32.gmra.mxu0 %v4120
      %v4219 = vpop.f32.mrf.mxu0
      %v4220 = vadd.f32 0.0, %v4219
      %v4221 = vpop.f32.mrf.mxu0
      %4222 = vmatprep.mubr.f32.mxu0 0.0
      %4223 = vmatmul.mubr.f32.gmra.mxu0 %v4123
      %v4224 = vpop.f32.mrf.mxu0
      %v4225 = vadd.f32 0.0, %v4224
      %v4226 = vpop.f32.mrf.mxu0
      %4227 = vmatprep.mubr.f32.mxu0 0.0
      %4228 = vmatmul.mubr.f32.gmra.mxu0 %v4126
      %v4229 = vpop.f32.mrf.mxu0
      %v4230 = vadd.f32 0.0, %v4229
      %v4231 = vpop.f32.mrf.mxu0
      %4232 = vdwg.mxu0
      %v4233 = vadd.f32 %v4085, %v4195
      %v4234 = vadd.f32 %v4086, %v4200
      %v4235 = vadd.f32 %v4087, %v4205
      %v4236 = vadd.f32 %v4088, %v4210
      %v4237 = vadd.f32 %v4089, %v4215
      %v4238 = vadd.f32 %v4090, %v4220
      %v4239 = vadd.f32 %v4091, %v4225
      %v4240 = vadd.f32 %v4092, %v4230
      %s4241 = scalar_lea.vmem [#allocation4], 32
      %v4242 = vld [vmem:[%s4241] sm:$0xff]
      %v4243 = vld [vmem:[%s4241 + $0x10] sm:$0xff]
      %v4244 = vld [vmem:[%s4241 + $0x20] sm:$0xff]
      %v4245 = vld [vmem:[%s4241 + $0x30] sm:$0xff]
      %v4246 = vld [vmem:[%s4241 + $0x40] sm:$0xff]
      %v4247 = vld [vmem:[%s4241 + $0x50] sm:$0xff]
      %v4248 = vld [vmem:[%s4241 + $0x60] sm:$0xff]
      %v4249 = vld [vmem:[%s4241 + $0x70] sm:$0xff]
      %s4250 = scalar_lea.vmem %s7, 96
      %v4251 = vld [vmem:[%s4250] sm:$0xff]
      %v4252 = vld [vmem:[%s4250 + $0x8] sm:$0xff]
      %v4254 = vsel %vm1819, %v4242, 0
      %v4257 = vsel %vm1819, %v4243, 0
      %v4260 = vsel %vm1819, %v4244, 0
      %v4263 = vsel %vm1819, %v4245, 0
      %v4266 = vsel %vm1819, %v4246, 0
      %v4269 = vsel %vm1819, %v4247, 0
      %v4272 = vsel %vm1819, %v4248, 0
      %v4275 = vsel %vm1819, %v4249, 0
      %4277 = vmatprep.subr.mxu0 0.0
      %4278 = vmatpush1.msra.mxu0 0.0
      %4279 = vmatprep.subr.mxu0 0.0
      %4280 = vmatpush1.msra.mxu0 0.0
      %4281 = vmatprep.subr.mxu0 0.0
      %4282 = vmatpush1.msra.mxu0 0.0
      %4283 = vmatprep.subr.mxu0 0.0
      %4284 = vmatpush1.msra.mxu0 0.0
      %4285 = vmatprep.subr.mxu0 0.0
      %4286 = vmatpush1.msra.mxu0 0.0
      %4287 = vmatprep.subr.mxu0 0.0
      %4288 = vmatpush1.msra.mxu0 0.0
      %4289 = vmatprep.subr.mxu0 0.0
      %4290 = vmatpush1.msra.mxu0 0.0
      %4291 = vmatprep.subr.mxu0 0.0
      %4292 = vmatpush1.msra.mxu0 0.0
      %4293 = vmatprep.subr.mxu0 0.0
      %4294 = vmatpush1.msra.mxu0 0.0
      %4295 = vmatprep.subr.mxu0 0.0
      %4296 = vmatpush1.msra.mxu0 0.0
      %4297 = vmatprep.subr.mxu0 0.0
      %4298 = vmatpush1.msra.mxu0 0.0
      %4299 = vmatprep.subr.mxu0 0.0
      %4300 = vmatpush1.msra.mxu0 0.0
      %4301 = vmatprep.subr.mxu0 0.0
      %4302 = vmatpush1.msra.mxu0 0.0
      %4303 = vmatprep.subr.mxu0 0.0
      %4304 = vmatpush1.msra.mxu0 0.0
      %4305 = vmatprep.subr.mxu0 0.0
      %4306 = vmatpush1.msra.mxu0 %v4252
      %4307 = vmatprep.subr.mxu0 0.0
      %4308 = vmatpush1.msra.mxu0 %v4251
      %4309 = vmatprep.subr.mxu0 0.0
      %4310 = vmatpush2.msra.mxu0 0.0
      %4311 = vmatprep.subr.mxu0 0.0
      %4312 = vmatpush2.msra.mxu0 0.0
      %4313 = vmatprep.subr.mxu0 0.0
      %4314 = vmatpush2.msra.mxu0 0.0
      %4315 = vmatprep.subr.mxu0 0.0
      %4316 = vmatpush2.msra.mxu0 0.0
      %4317 = vmatprep.subr.mxu0 0.0
      %4318 = vmatpush2.msra.mxu0 0.0
      %4319 = vmatprep.subr.mxu0 0.0
      %4320 = vmatpush2.msra.mxu0 0.0
      %4321 = vmatprep.subr.mxu0 0.0
      %4322 = vmatpush2.msra.mxu0 0.0
      %4323 = vmatprep.subr.mxu0 0.0
      %4324 = vmatpush2.msra.mxu0 0.0
      %4325 = vmatprep.subr.mxu0 0.0
      %4326 = vmatpush2.msra.mxu0 0.0
      %4327 = vmatprep.subr.mxu0 0.0
      %4328 = vmatpush2.msra.mxu0 0.0
      %4329 = vmatprep.subr.mxu0 0.0
      %4330 = vmatpush2.msra.mxu0 0.0
      %4331 = vmatprep.subr.mxu0 0.0
      %4332 = vmatpush2.msra.mxu0 0.0
      %4333 = vmatprep.subr.mxu0 0.0
      %4334 = vmatpush2.msra.mxu0 0.0
      %4335 = vmatprep.subr.mxu0 0.0
      %4336 = vmatpush2.msra.mxu0 0.0
      %4337 = vmatprep.subr.mxu0 0.0
      %4338 = vmatpush2.msra.mxu0 0.0
      %4339 = vmatprep.subr.mxu0 0.0
      %4340 = vmatpush2.msra.mxu0 0.0
      %4341 = vmatprep.mubr.f32.mxu0 0.0
      %4342 = vmatmul.mubr.f32.gmra.mxu0 %v4254
      %v4343 = vpop.f32.mrf.mxu0
      %v4344 = vadd.f32 0.0, %v4343
      %v4345 = vpop.f32.mrf.mxu0
      %4346 = vmatprep.mubr.f32.mxu0 0.0
      %4347 = vmatmul.mubr.f32.gmra.mxu0 %v4257
      %v4348 = vpop.f32.mrf.mxu0
      %v4349 = vadd.f32 0.0, %v4348
      %v4350 = vpop.f32.mrf.mxu0
      %4351 = vmatprep.mubr.f32.mxu0 0.0
      %4352 = vmatmul.mubr.f32.gmra.mxu0 %v4260
      %v4353 = vpop.f32.mrf.mxu0
      %v4354 = vadd.f32 0.0, %v4353
      %v4355 = vpop.f32.mrf.mxu0
      %4356 = vmatprep.mubr.f32.mxu0 0.0
      %4357 = vmatmul.mubr.f32.gmra.mxu0 %v4263
      %v4358 = vpop.f32.mrf.mxu0
      %v4359 = vadd.f32 0.0, %v4358
      %v4360 = vpop.f32.mrf.mxu0
      %4361 = vmatprep.mubr.f32.mxu0 0.0
      %4362 = vmatmul.mubr.f32.gmra.mxu0 %v4266
      %v4363 = vpop.f32.mrf.mxu0
      %v4364 = vadd.f32 0.0, %v4363
      %v4365 = vpop.f32.mrf.mxu0
      %4366 = vmatprep.mubr.f32.mxu0 0.0
      %4367 = vmatmul.mubr.f32.gmra.mxu0 %v4269
      %v4368 = vpop.f32.mrf.mxu0
      %v4369 = vadd.f32 0.0, %v4368
      %v4370 = vpop.f32.mrf.mxu0
      %4371 = vmatprep.mubr.f32.mxu0 0.0
      %4372 = vmatmul.mubr.f32.gmra.mxu0 %v4272
      %v4373 = vpop.f32.mrf.mxu0
      %v4374 = vadd.f32 0.0, %v4373
      %v4375 = vpop.f32.mrf.mxu0
      %4376 = vmatprep.mubr.f32.mxu0 0.0
      %4377 = vmatmul.mubr.f32.gmra.mxu0 %v4275
      %v4378 = vpop.f32.mrf.mxu0
      %v4379 = vadd.f32 0.0, %v4378
      %v4380 = vpop.f32.mrf.mxu0
      %4381 = vdwg.mxu0
      %v4382 = vadd.f32 %v4233, %v4344
      %v4383 = vadd.f32 %v4234, %v4349
      %v4384 = vadd.f32 %v4235, %v4354
      %v4385 = vadd.f32 %v4236, %v4359
      %v4386 = vadd.f32 %v4237, %v4364
      %v4387 = vadd.f32 %v4238, %v4369
      %v4388 = vadd.f32 %v4239, %v4374
      %v4389 = vadd.f32 %v4240, %v4379
      %v4390 = vld [vmem:[%s4241 + $0x1] sm:$0xff]
      %v4391 = vld [vmem:[%s4241 + $0x11] sm:$0xff]
      %v4392 = vld [vmem:[%s4241 + $0x21] sm:$0xff]
      %v4393 = vld [vmem:[%s4241 + $0x31] sm:$0xff]
      %v4394 = vld [vmem:[%s4241 + $0x41] sm:$0xff]
      %v4395 = vld [vmem:[%s4241 + $0x51] sm:$0xff]
      %v4396 = vld [vmem:[%s4241 + $0x61] sm:$0xff]
      %v4397 = vld [vmem:[%s4241 + $0x71] sm:$0xff]
      %s4398 = scalar_lea.vmem %s7, 112
      %v4399 = vld [vmem:[%s4398] sm:$0xff]
      %v4400 = vld [vmem:[%s4398 + $0x8] sm:$0xff]
      %v4402 = vsel %vm1819, %v4390, 0
      %v4405 = vsel %vm1819, %v4391, 0
      %v4408 = vsel %vm1819, %v4392, 0
      %v4411 = vsel %vm1819, %v4393, 0
      %v4414 = vsel %vm1819, %v4394, 0
      %v4417 = vsel %vm1819, %v4395, 0
      %v4420 = vsel %vm1819, %v4396, 0
      %v4423 = vsel %vm1819, %v4397, 0
      %4425 = vmatprep.subr.mxu0 0.0
      %4426 = vmatpush1.msra.mxu0 0.0
      %4427 = vmatprep.subr.mxu0 0.0
      %4428 = vmatpush1.msra.mxu0 0.0
      %4429 = vmatprep.subr.mxu0 0.0
      %4430 = vmatpush1.msra.mxu0 0.0
      %4431 = vmatprep.subr.mxu0 0.0
      %4432 = vmatpush1.msra.mxu0 0.0
      %4433 = vmatprep.subr.mxu0 0.0
      %4434 = vmatpush1.msra.mxu0 0.0
      %4435 = vmatprep.subr.mxu0 0.0
      %4436 = vmatpush1.msra.mxu0 0.0
      %4437 = vmatprep.subr.mxu0 0.0
      %4438 = vmatpush1.msra.mxu0 0.0
      %4439 = vmatprep.subr.mxu0 0.0
      %4440 = vmatpush1.msra.mxu0 0.0
      %4441 = vmatprep.subr.mxu0 0.0
      %4442 = vmatpush1.msra.mxu0 0.0
      %4443 = vmatprep.subr.mxu0 0.0
      %4444 = vmatpush1.msra.mxu0 0.0
      %4445 = vmatprep.subr.mxu0 0.0
      %4446 = vmatpush1.msra.mxu0 0.0
      %4447 = vmatprep.subr.mxu0 0.0
      %4448 = vmatpush1.msra.mxu0 0.0
      %4449 = vmatprep.subr.mxu0 0.0
      %4450 = vmatpush1.msra.mxu0 0.0
      %4451 = vmatprep.subr.mxu0 0.0
      %4452 = vmatpush1.msra.mxu0 0.0
      %4453 = vmatprep.subr.mxu0 0.0
      %4454 = vmatpush1.msra.mxu0 %v4400
      %4455 = vmatprep.subr.mxu0 0.0
      %4456 = vmatpush1.msra.mxu0 %v4399
      %4457 = vmatprep.subr.mxu0 0.0
      %4458 = vmatpush2.msra.mxu0 0.0
      %4459 = vmatprep.subr.mxu0 0.0
      %4460 = vmatpush2.msra.mxu0 0.0
      %4461 = vmatprep.subr.mxu0 0.0
      %4462 = vmatpush2.msra.mxu0 0.0
      %4463 = vmatprep.subr.mxu0 0.0
      %4464 = vmatpush2.msra.mxu0 0.0
      %4465 = vmatprep.subr.mxu0 0.0
      %4466 = vmatpush2.msra.mxu0 0.0
      %4467 = vmatprep.subr.mxu0 0.0
      %4468 = vmatpush2.msra.mxu0 0.0
      %4469 = vmatprep.subr.mxu0 0.0
      %4470 = vmatpush2.msra.mxu0 0.0
      %4471 = vmatprep.subr.mxu0 0.0
      %4472 = vmatpush2.msra.mxu0 0.0
      %4473 = vmatprep.subr.mxu0 0.0
      %4474 = vmatpush2.msra.mxu0 0.0
      %4475 = vmatprep.subr.mxu0 0.0
      %4476 = vmatpush2.msra.mxu0 0.0
      %4477 = vmatprep.subr.mxu0 0.0
      %4478 = vmatpush2.msra.mxu0 0.0
      %4479 = vmatprep.subr.mxu0 0.0
      %4480 = vmatpush2.msra.mxu0 0.0
      %4481 = vmatprep.subr.mxu0 0.0
      %4482 = vmatpush2.msra.mxu0 0.0
      %4483 = vmatprep.subr.mxu0 0.0
      %4484 = vmatpush2.msra.mxu0 0.0
      %4485 = vmatprep.subr.mxu0 0.0
      %4486 = vmatpush2.msra.mxu0 0.0
      %4487 = vmatprep.subr.mxu0 0.0
      %4488 = vmatpush2.msra.mxu0 0.0
      %4489 = vmatprep.mubr.f32.mxu0 0.0
      %4490 = vmatmul.mubr.f32.gmra.mxu0 %v4402
      %v4491 = vpop.f32.mrf.mxu0
      %v4492 = vadd.f32 0.0, %v4491
      %v4493 = vpop.f32.mrf.mxu0
      %4494 = vmatprep.mubr.f32.mxu0 0.0
      %4495 = vmatmul.mubr.f32.gmra.mxu0 %v4405
      %v4496 = vpop.f32.mrf.mxu0
      %v4497 = vadd.f32 0.0, %v4496
      %v4498 = vpop.f32.mrf.mxu0
      %4499 = vmatprep.mubr.f32.mxu0 0.0
      %4500 = vmatmul.mubr.f32.gmra.mxu0 %v4408
      %v4501 = vpop.f32.mrf.mxu0
      %v4502 = vadd.f32 0.0, %v4501
      %v4503 = vpop.f32.mrf.mxu0
      %4504 = vmatprep.mubr.f32.mxu0 0.0
      %4505 = vmatmul.mubr.f32.gmra.mxu0 %v4411
      %v4506 = vpop.f32.mrf.mxu0
      %v4507 = vadd.f32 0.0, %v4506
      %v4508 = vpop.f32.mrf.mxu0
      %4509 = vmatprep.mubr.f32.mxu0 0.0
      %4510 = vmatmul.mubr.f32.gmra.mxu0 %v4414
      %v4511 = vpop.f32.mrf.mxu0
      %v4512 = vadd.f32 0.0, %v4511
      %v4513 = vpop.f32.mrf.mxu0
      %4514 = vmatprep.mubr.f32.mxu0 0.0
      %4515 = vmatmul.mubr.f32.gmra.mxu0 %v4417
      %v4516 = vpop.f32.mrf.mxu0
      %v4517 = vadd.f32 0.0, %v4516
      %v4518 = vpop.f32.mrf.mxu0
      %4519 = vmatprep.mubr.f32.mxu0 0.0
      %4520 = vmatmul.mubr.f32.gmra.mxu0 %v4420
      %v4521 = vpop.f32.mrf.mxu0
      %v4522 = vadd.f32 0.0, %v4521
      %v4523 = vpop.f32.mrf.mxu0
      %4524 = vmatprep.mubr.f32.mxu0 0.0
      %4525 = vmatmul.mubr.f32.gmra.mxu0 %v4423
      %v4526 = vpop.f32.mrf.mxu0
      %v4527 = vadd.f32 0.0, %v4526
      %v4528 = vpop.f32.mrf.mxu0
      %4529 = vdwg.mxu0
      %v4530 = vadd.f32 %v4382, %v4492
      %v4531 = vadd.f32 %v4383, %v4497
      %v4532 = vadd.f32 %v4384, %v4502
      %v4533 = vadd.f32 %v4385, %v4507
      %v4534 = vadd.f32 %v4386, %v4512
      %v4535 = vadd.f32 %v4387, %v4517
      %v4536 = vadd.f32 %v4388, %v4522
      %v4537 = vadd.f32 %v4389, %v4527
      %v4538 = vld [vmem:[%s4241 + $0x2] sm:$0xff]
      %v4539 = vld [vmem:[%s4241 + $0x12] sm:$0xff]
      %v4540 = vld [vmem:[%s4241 + $0x22] sm:$0xff]
      %v4541 = vld [vmem:[%s4241 + $0x32] sm:$0xff]
      %v4542 = vld [vmem:[%s4241 + $0x42] sm:$0xff]
      %v4543 = vld [vmem:[%s4241 + $0x52] sm:$0xff]
      %v4544 = vld [vmem:[%s4241 + $0x62] sm:$0xff]
      %v4545 = vld [vmem:[%s4241 + $0x72] sm:$0xff]
      %s4546 = scalar_lea.vmem %s7, 128
      %v4547 = vld [vmem:[%s4546] sm:$0xff]
      %v4548 = vld [vmem:[%s4546 + $0x8] sm:$0xff]
      %v4550 = vsel %vm1819, %v4538, 0
      %v4553 = vsel %vm1819, %v4539, 0
      %v4556 = vsel %vm1819, %v4540, 0
      %v4559 = vsel %vm1819, %v4541, 0
      %v4562 = vsel %vm1819, %v4542, 0
      %v4565 = vsel %vm1819, %v4543, 0
      %v4568 = vsel %vm1819, %v4544, 0
      %v4571 = vsel %vm1819, %v4545, 0
      %4573 = vmatprep.subr.mxu0 0.0
      %4574 = vmatpush1.msra.mxu0 0.0
      %4575 = vmatprep.subr.mxu0 0.0
      %4576 = vmatpush1.msra.mxu0 0.0
      %4577 = vmatprep.subr.mxu0 0.0
      %4578 = vmatpush1.msra.mxu0 0.0
      %4579 = vmatprep.subr.mxu0 0.0
      %4580 = vmatpush1.msra.mxu0 0.0
      %4581 = vmatprep.subr.mxu0 0.0
      %4582 = vmatpush1.msra.mxu0 0.0
      %4583 = vmatprep.subr.mxu0 0.0
      %4584 = vmatpush1.msra.mxu0 0.0
      %4585 = vmatprep.subr.mxu0 0.0
      %4586 = vmatpush1.msra.mxu0 0.0
      %4587 = vmatprep.subr.mxu0 0.0
      %4588 = vmatpush1.msra.mxu0 0.0
      %4589 = vmatprep.subr.mxu0 0.0
      %4590 = vmatpush1.msra.mxu0 0.0
      %4591 = vmatprep.subr.mxu0 0.0
      %4592 = vmatpush1.msra.mxu0 0.0
      %4593 = vmatprep.subr.mxu0 0.0
      %4594 = vmatpush1.msra.mxu0 0.0
      %4595 = vmatprep.subr.mxu0 0.0
      %4596 = vmatpush1.msra.mxu0 0.0
      %4597 = vmatprep.subr.mxu0 0.0
      %4598 = vmatpush1.msra.mxu0 0.0
      %4599 = vmatprep.subr.mxu0 0.0
      %4600 = vmatpush1.msra.mxu0 0.0
      %4601 = vmatprep.subr.mxu0 0.0
      %4602 = vmatpush1.msra.mxu0 %v4548
      %4603 = vmatprep.subr.mxu0 0.0
      %4604 = vmatpush1.msra.mxu0 %v4547
      %4605 = vmatprep.subr.mxu0 0.0
      %4606 = vmatpush2.msra.mxu0 0.0
      %4607 = vmatprep.subr.mxu0 0.0
      %4608 = vmatpush2.msra.mxu0 0.0
      %4609 = vmatprep.subr.mxu0 0.0
      %4610 = vmatpush2.msra.mxu0 0.0
      %4611 = vmatprep.subr.mxu0 0.0
      %4612 = vmatpush2.msra.mxu0 0.0
      %4613 = vmatprep.subr.mxu0 0.0
      %4614 = vmatpush2.msra.mxu0 0.0
      %4615 = vmatprep.subr.mxu0 0.0
      %4616 = vmatpush2.msra.mxu0 0.0
      %4617 = vmatprep.subr.mxu0 0.0
      %4618 = vmatpush2.msra.mxu0 0.0
      %4619 = vmatprep.subr.mxu0 0.0
      %4620 = vmatpush2.msra.mxu0 0.0
      %4621 = vmatprep.subr.mxu0 0.0
      %4622 = vmatpush2.msra.mxu0 0.0
      %4623 = vmatprep.subr.mxu0 0.0
      %4624 = vmatpush2.msra.mxu0 0.0
      %4625 = vmatprep.subr.mxu0 0.0
      %4626 = vmatpush2.msra.mxu0 0.0
      %4627 = vmatprep.subr.mxu0 0.0
      %4628 = vmatpush2.msra.mxu0 0.0
      %4629 = vmatprep.subr.mxu0 0.0
      %4630 = vmatpush2.msra.mxu0 0.0
      %4631 = vmatprep.subr.mxu0 0.0
      %4632 = vmatpush2.msra.mxu0 0.0
      %4633 = vmatprep.subr.mxu0 0.0
      %4634 = vmatpush2.msra.mxu0 0.0
      %4635 = vmatprep.subr.mxu0 0.0
      %4636 = vmatpush2.msra.mxu0 0.0
      %4637 = vmatprep.mubr.f32.mxu0 0.0
      %4638 = vmatmul.mubr.f32.gmra.mxu0 %v4550
      %v4639 = vpop.f32.mrf.mxu0
      %v4640 = vadd.f32 0.0, %v4639
      %v4641 = vpop.f32.mrf.mxu0
      %4642 = vmatprep.mubr.f32.mxu0 0.0
      %4643 = vmatmul.mubr.f32.gmra.mxu0 %v4553
      %v4644 = vpop.f32.mrf.mxu0
      %v4645 = vadd.f32 0.0, %v4644
      %v4646 = vpop.f32.mrf.mxu0
      %4647 = vmatprep.mubr.f32.mxu0 0.0
      %4648 = vmatmul.mubr.f32.gmra.mxu0 %v4556
      %v4649 = vpop.f32.mrf.mxu0
      %v4650 = vadd.f32 0.0, %v4649
      %v4651 = vpop.f32.mrf.mxu0
      %4652 = vmatprep.mubr.f32.mxu0 0.0
      %4653 = vmatmul.mubr.f32.gmra.mxu0 %v4559
      %v4654 = vpop.f32.mrf.mxu0
      %v4655 = vadd.f32 0.0, %v4654
      %v4656 = vpop.f32.mrf.mxu0
      %4657 = vmatprep.mubr.f32.mxu0 0.0
      %4658 = vmatmul.mubr.f32.gmra.mxu0 %v4562
      %v4659 = vpop.f32.mrf.mxu0
      %v4660 = vadd.f32 0.0, %v4659
      %v4661 = vpop.f32.mrf.mxu0
      %4662 = vmatprep.mubr.f32.mxu0 0.0
      %4663 = vmatmul.mubr.f32.gmra.mxu0 %v4565
      %v4664 = vpop.f32.mrf.mxu0
      %v4665 = vadd.f32 0.0, %v4664
      %v4666 = vpop.f32.mrf.mxu0
      %4667 = vmatprep.mubr.f32.mxu0 0.0
      %4668 = vmatmul.mubr.f32.gmra.mxu0 %v4568
      %v4669 = vpop.f32.mrf.mxu0
      %v4670 = vadd.f32 0.0, %v4669
      %v4671 = vpop.f32.mrf.mxu0
      %4672 = vmatprep.mubr.f32.mxu0 0.0
      %4673 = vmatmul.mubr.f32.gmra.mxu0 %v4571
      %v4674 = vpop.f32.mrf.mxu0
      %v4675 = vadd.f32 0.0, %v4674
      %v4676 = vpop.f32.mrf.mxu0
      %4677 = vdwg.mxu0
      %v4678 = vadd.f32 %v4530, %v4640
      %v4679 = vadd.f32 %v4531, %v4645
      %v4680 = vadd.f32 %v4532, %v4650
      %v4681 = vadd.f32 %v4533, %v4655
      %v4682 = vadd.f32 %v4534, %v4660
      %v4683 = vadd.f32 %v4535, %v4665
      %v4684 = vadd.f32 %v4536, %v4670
      %v4685 = vadd.f32 %v4537, %v4675
      %v4686 = vld [vmem:[%s8] sm:$0x1]
      %v4688 = vlaneseq
      %v4689 = vshrl.u32 %v4688, 7
      %v4690 = vsub.s32 0, %v4689
      %v4691 = vrot.slane %v4686, %v4690
      %v4693 = vadd.f32 %v4678, %v4691
      %v4694 = vadd.f32 %v4679, %v4691
      %v4695 = vadd.f32 %v4680, %v4691
      %v4696 = vadd.f32 %v4681, %v4691
      %v4697 = vadd.f32 %v4682, %v4691
      %v4698 = vadd.f32 %v4683, %v4691
      %v4699 = vadd.f32 %v4684, %v4691
      %v4700 = vadd.f32 %v4685, %v4691
      %v4701 = vmax.f32 %v4693, 0.0
      %v4702 = vmax.f32 %v4694, 0.0
      %v4703 = vmax.f32 %v4695, 0.0
      %v4704 = vmax.f32 %v4696, 0.0
      %v4705 = vmax.f32 %v4697, 0.0
      %v4706 = vmax.f32 %v4698, 0.0
      %v4707 = vmax.f32 %v4699, 0.0
      %v4708 = vmax.f32 %v4700, 0.0
      %v4709 = vld [vmem:[%s9] sm:$0xff]
      %v4710 = vld [vmem:[%s9 + $0x8] sm:$0xff]
      %v4711 = vld [vmem:[%s10] sm:$0x1]
      %v4713 = vlaneseq
      %v4714 = vshrl.u32 %v4713, 7
      %v4715 = vsub.s32 0, %v4714
      %v4716 = vrot.slane %v4711, %v4715
      %v4719 = vsel %vm1819, %v4701, 0
      %v4722 = vsel %vm1819, %v4702, 0
      %v4725 = vsel %vm1819, %v4703, 0
      %v4728 = vsel %vm1819, %v4704, 0
      %v4731 = vsel %vm1819, %v4705, 0
      %v4734 = vsel %vm1819, %v4706, 0
      %v4737 = vsel %vm1819, %v4707, 0
      %v4740 = vsel %vm1819, %v4708, 0
      %4742 = vmatprep.subr.mxu0 0.0
      %4743 = vmatpush1.msra.mxu0 0.0
      %4744 = vmatprep.subr.mxu0 0.0
      %4745 = vmatpush1.msra.mxu0 0.0
      %4746 = vmatprep.subr.mxu0 0.0
      %4747 = vmatpush1.msra.mxu0 0.0
      %4748 = vmatprep.subr.mxu0 0.0
      %4749 = vmatpush1.msra.mxu0 0.0
      %4750 = vmatprep.subr.mxu0 0.0
      %4751 = vmatpush1.msra.mxu0 0.0
      %4752 = vmatprep.subr.mxu0 0.0
      %4753 = vmatpush1.msra.mxu0 0.0
      %4754 = vmatprep.subr.mxu0 0.0
      %4755 = vmatpush1.msra.mxu0 0.0
      %4756 = vmatprep.subr.mxu0 0.0
      %4757 = vmatpush1.msra.mxu0 0.0
      %4758 = vmatprep.subr.mxu0 0.0
      %4759 = vmatpush1.msra.mxu0 0.0
      %4760 = vmatprep.subr.mxu0 0.0
      %4761 = vmatpush1.msra.mxu0 0.0
      %4762 = vmatprep.subr.mxu0 0.0
      %4763 = vmatpush1.msra.mxu0 0.0
      %4764 = vmatprep.subr.mxu0 0.0
      %4765 = vmatpush1.msra.mxu0 0.0
      %4766 = vmatprep.subr.mxu0 0.0
      %4767 = vmatpush1.msra.mxu0 0.0
      %4768 = vmatprep.subr.mxu0 0.0
      %4769 = vmatpush1.msra.mxu0 0.0
      %4770 = vmatprep.subr.mxu0 0.0
      %4771 = vmatpush1.msra.mxu0 %v4710
      %4772 = vmatprep.subr.mxu0 0.0
      %4773 = vmatpush1.msra.mxu0 %v4709
      %4774 = vmatprep.subr.mxu0 0.0
      %4775 = vmatpush2.msra.mxu0 0.0
      %4776 = vmatprep.subr.mxu0 0.0
      %4777 = vmatpush2.msra.mxu0 0.0
      %4778 = vmatprep.subr.mxu0 0.0
      %4779 = vmatpush2.msra.mxu0 0.0
      %4780 = vmatprep.subr.mxu0 0.0
      %4781 = vmatpush2.msra.mxu0 0.0
      %4782 = vmatprep.subr.mxu0 0.0
      %4783 = vmatpush2.msra.mxu0 0.0
      %4784 = vmatprep.subr.mxu0 0.0
      %4785 = vmatpush2.msra.mxu0 0.0
      %4786 = vmatprep.subr.mxu0 0.0
      %4787 = vmatpush2.msra.mxu0 0.0
      %4788 = vmatprep.subr.mxu0 0.0
      %4789 = vmatpush2.msra.mxu0 0.0
      %4790 = vmatprep.subr.mxu0 0.0
      %4791 = vmatpush2.msra.mxu0 0.0
      %4792 = vmatprep.subr.mxu0 0.0
      %4793 = vmatpush2.msra.mxu0 0.0
      %4794 = vmatprep.subr.mxu0 0.0
      %4795 = vmatpush2.msra.mxu0 0.0
      %4796 = vmatprep.subr.mxu0 0.0
      %4797 = vmatpush2.msra.mxu0 0.0
      %4798 = vmatprep.subr.mxu0 0.0
      %4799 = vmatpush2.msra.mxu0 0.0
      %4800 = vmatprep.subr.mxu0 0.0
      %4801 = vmatpush2.msra.mxu0 0.0
      %4802 = vmatprep.subr.mxu0 0.0
      %4803 = vmatpush2.msra.mxu0 0.0
      %4804 = vmatprep.subr.mxu0 0.0
      %4805 = vmatpush2.msra.mxu0 0.0
      %4806 = vmatprep.mubr.f32.mxu0 0.0
      %4807 = vmatmul.mubr.f32.gmra.mxu0 %v4719
      %v4808 = vpop.f32.mrf.mxu0
      %v4809 = vadd.f32 %v4716, %v4808
      %v4810 = vpop.f32.mrf.mxu0
      %4811 = vmatprep.mubr.f32.mxu0 0.0
      %4812 = vmatmul.mubr.f32.gmra.mxu0 %v4722
      %v4813 = vpop.f32.mrf.mxu0
      %v4814 = vadd.f32 %v4716, %v4813
      %v4815 = vpop.f32.mrf.mxu0
      %4816 = vmatprep.mubr.f32.mxu0 0.0
      %4817 = vmatmul.mubr.f32.gmra.mxu0 %v4725
      %v4818 = vpop.f32.mrf.mxu0
      %v4819 = vadd.f32 %v4716, %v4818
      %v4820 = vpop.f32.mrf.mxu0
      %4821 = vmatprep.mubr.f32.mxu0 0.0
      %4822 = vmatmul.mubr.f32.gmra.mxu0 %v4728
      %v4823 = vpop.f32.mrf.mxu0
      %v4824 = vadd.f32 %v4716, %v4823
      %v4825 = vpop.f32.mrf.mxu0
      %4826 = vmatprep.mubr.f32.mxu0 0.0
      %4827 = vmatmul.mubr.f32.gmra.mxu0 %v4731
      %v4828 = vpop.f32.mrf.mxu0
      %v4829 = vadd.f32 %v4716, %v4828
      %v4830 = vpop.f32.mrf.mxu0
      %4831 = vmatprep.mubr.f32.mxu0 0.0
      %4832 = vmatmul.mubr.f32.gmra.mxu0 %v4734
      %v4833 = vpop.f32.mrf.mxu0
      %v4834 = vadd.f32 %v4716, %v4833
      %v4835 = vpop.f32.mrf.mxu0
      %4836 = vmatprep.mubr.f32.mxu0 0.0
      %4837 = vmatmul.mubr.f32.gmra.mxu0 %v4737
      %v4838 = vpop.f32.mrf.mxu0
      %v4839 = vadd.f32 %v4716, %v4838
      %v4840 = vpop.f32.mrf.mxu0
      %4841 = vmatprep.mubr.f32.mxu0 0.0
      %4842 = vmatmul.mubr.f32.gmra.mxu0 %v4740
      %v4843 = vpop.f32.mrf.mxu0
      %v4844 = vadd.f32 %v4716, %v4843
      %v4845 = vpop.f32.mrf.mxu0
      %4846 = vdwg.mxu0
      %v4847 = vmax.f32 %v4809, 0.0
      %v4848 = vmax.f32 %v4814, 0.0
      %v4849 = vmax.f32 %v4819, 0.0
      %v4850 = vmax.f32 %v4824, 0.0
      %v4851 = vmax.f32 %v4829, 0.0
      %v4852 = vmax.f32 %v4834, 0.0
      %v4853 = vmax.f32 %v4839, 0.0
      %v4854 = vmax.f32 %v4844, 0.0
      %v4855 = vadd.f32 %v387, %v3181
      %v4856 = vadd.f32 %v388, %v3182
      %v4857 = vadd.f32 %v389, %v3183
      %v4858 = vadd.f32 %v390, %v3184
      %v4859 = vadd.f32 %v391, %v3185
      %v4860 = vadd.f32 %v392, %v3186
      %v4861 = vadd.f32 %v393, %v3187
      %v4862 = vadd.f32 %v394, %v3188
      %v4863 = vadd.f32 %v4855, %v4847
      %v4864 = vadd.f32 %v4856, %v4848
      %v4865 = vadd.f32 %v4857, %v4849
      %v4866 = vadd.f32 %v4858, %v4850
      %v4867 = vadd.f32 %v4859, %v4851
      %v4868 = vadd.f32 %v4860, %v4852
      %v4869 = vadd.f32 %v4861, %v4853
      %v4870 = vadd.f32 %v4862, %v4854
      %4871 = vst.msk [vmem:[%s386] sm:$0xff] %vm395, %v4863
      %4872 = vst.msk [vmem:[%s386 + $0x8] sm:$0xff] %vm395, %v4864
      %4873 = vst.msk [vmem:[%s386 + $0x10] sm:$0xff] %vm395, %v4865
      %4874 = vst.msk [vmem:[%s386 + $0x18] sm:$0xff] %vm395, %v4866
      %4875 = vst.msk [vmem:[%s386 + $0x20] sm:$0xff] %vm395, %v4867
      %4876 = vst.msk [vmem:[%s386 + $0x28] sm:$0xff] %vm395, %v4868
      %4877 = vst.msk [vmem:[%s386 + $0x30] sm:$0xff] %vm395, %v4869
      %4878 = vst.msk [vmem:[%s386 + $0x38] sm:$0xff] %vm395, %v4870
      %p4879 = scmp.lt.s32.totalorder %s22, 1
      %s4880 = scalar_select %p4879, %s22, 1
      %s4881 = smul.addr %s4880, 8
      %s4882 = smul.addr %s4881, 8
      %s4883 = scalar_lea.vmem %s11, %s4882
      // Predicated region
      $region65: #{ir_block_forward.1} parent=63 // pred_check
        %p4884 = pneg %p276
      $region66: #{ir_block_forward.1} parent=63 // pred_check_branch
        %4886 = sbr.rel (%p4884) target = $region68
      $region67: #{ir_block_forward.1} parent=63 // pred_region
        _
      $region68: #{ir_block_forward.1} parent=63 // pred_fallthru
        _
    $region64: #{ir_block_forward.1} parent=5 // pred_fallthru
      _
    %p4887 = scmp.le.s32.totalorder 2, %s17
    // Predicated region
    $region69: #{ir_block_forward.1} parent=5 // pred_check
      %p4888 = pneg %p4887
    $region70: #{ir_block_forward.1} parent=5 // pred_check_branch
      %4890 = sbr.rel (%p4888) target = $region72
    $region71: #{ir_block_forward.1} parent=5 // pred_region
      %s4891 = ssub.s32 %s17, 2
      // Predicated region
      $region73: #{ir_block_forward.1} parent=71 // pred_check
        %p4892 = pneg %p282
      $region74: #{ir_block_forward.1} parent=71 // pred_check_branch
        %4894 = sbr.rel (%p4892) target = $region76
      $region75: #{ir_block_forward.1} parent=71 // pred_region
        %p4895 = scmp.lt.s32.totalorder %s23, 1
        %s4896 = scalar_select %p4895, %s23, 1
        %s4897 = smul.addr %s4896, 8
        %s4898 = smul.addr %s4897, 8
        %s4899 = scalar_lea.vmem %s11, %s4898
      $region76: #{ir_block_forward.1} parent=71 // pred_fallthru
        _
    $region72: #{ir_block_forward.1} parent=5 // pred_fallthru
      _
  $region6: #{ir_block_forward.1} parent=0 // loop_footer
    %s21 = sadd.s32 1, %s17
  $region7: #{ir_block_forward.1} parent=0 // loop_footer_branch
    %16 = sbr.rel target = $region3
  $region8: #{ir_block_forward.1} parent=0 // loop_exit
    _

</llo_original>
